<compile_context>
chip_gen: v7x
topology: tpu7x:2x2x1
jax: 0.10.0
libtpu: 0.0.40
codegen_flags: <defaults>
</compile_context>

<pallas_src>
import functools

import numpy as np
import jax
import jax.numpy as jnp
from jax.experimental import pallas as pl
from jax.experimental.pallas import tpu as pltpu


def _round_up(x, m):
    return ((x + m - 1) // m) * m


# -----------------------------------------------------------------------------
# Fused kernel.  Per row r of the (tm, ...) tile:
#   x[r] = pos_table[mt[r]] + mask_token[set_id(tile)]   (one-hot gather on MXU,
#                                                          per-tile token via BlockSpec)
#   h    = GELU(x @ W1 + b1)                              (bf16 MXU, f32 acc, f32 gelu)
#   y    = h @ W2 + b2                                    (bf16 MXU, f32 acc)
# -----------------------------------------------------------------------------
def _fused_predictor_kernel(sid_ref, mt_ref, pos_ref, mtok_ref,
                            w1_ref, b1_ref, w2_ref, b2_ref, o_ref):
    del sid_ref  # scalar-prefetch set ids are only consumed by the mask-token index_map
    tm = mt_ref.shape[0]
    np_rows = pos_ref.shape[0]
    lane = jax.lax.broadcasted_iota(jnp.int32, (tm, np_rows), 1)
    onehot = (lane == mt_ref[...]).astype(pos_ref.dtype)              # bool -> bf16, no vselect
    # positional-embedding gather on the MXU, f32 accumulation
    x = jnp.dot(onehot, pos_ref[...], preferred_element_type=jnp.float32)      # (tm, D)
    x = x + mtok_ref[0:1, :].astype(jnp.float32)                      # + per-tile mask token
    h = jnp.dot(x.astype(w1_ref.dtype), w1_ref[...],
                preferred_element_type=jnp.float32) + b1_ref[...]               # (tm, H) f32
    h = jax.nn.gelu(h)                                                           # f32 (EUP/VPU)
    # TODO(synk): at real predictor dims (H~4096) tile H in chunks with a VMEM f32
    # accumulator instead of materializing the full (tm, H) f32 intermediate.
    y = jnp.dot(h.astype(w2_ref.dtype), w2_ref[...],
                preferred_element_type=jnp.float32) + b2_ref[...]               # (tm, D) f32
    o_ref[...] = y.astype(o_ref.dtype)


def _vmem_limit_bytes(tm, NP, D, H, single_buffer):
    """Resident weights + streamed tiles + live intermediates, with ~50% headroom."""
    bf16, f32 = 2, 4
    wbuf = 1 if single_buffer else 2
    resident = wbuf * (NP * D * bf16 + D * H * bf16 + H * D * bf16 + H * f32 + D * f32)
    streamed = 2 * (tm * 128 * 4 + 8 * D * bf16 + tm * D * f32)   # idx / mask slab / out (x2 buf)
    live = tm * NP * bf16 + tm * H * f32 + 2 * tm * D * f32       # onehot + hidden + x/y
    return max(int((resident + streamed + live) * 3 // 2), 16 * 1024 * 1024)


def fused_gather_mlp(set_ids, mt_idx, pos_table, mask_tok_pad, w1, b1, w2, b2, *,
                     tm=256, single_buffer_resident=True, out_dtype=jnp.float32):
    """All mask sets in a single pallas_call.

    set_ids      : (n_tiles,) int32  per-tile mask-set id (scalar-prefetched to SMEM)
    mt_idx       : (Mp, 1)    int32  target-position row indices, Mp % tm == 0
    pos_table    : (NP, D)    bf16   positional-embedding table (NP padded to 256)
    mask_tok_pad : (S*8, D)   bf16   mask tokens, each replicated into an (8, D) slab
    """
    Mp = mt_idx.shape[0]
    NP, D = pos_table.shape
    H = w1.shape[1]
    assert Mp % tm == 0
    n_tiles = Mp // tm
    assert set_ids.shape == (n_tiles,)

    def resident(shape):
        # Constant index_map -> never re-fetched; single-buffer to halve its VMEM.
        if single_buffer_resident:
            return pl.BlockSpec(shape, lambda i, sid: (0, 0), pipeline_mode=pl.Buffered(1))
        return pl.BlockSpec(shape, lambda i, sid: (0, 0))

    grid_spec = pltpu.PrefetchScalarGridSpec(
        num_scalar_prefetch=1,
        grid=(n_tiles,),
        in_specs=[
            pl.BlockSpec((tm, 1), lambda i, sid: (i, 0)),        # target-position indices
            resident((NP, D)),                                   # pos-embed table
            pl.BlockSpec((8, D), lambda i, sid: (sid[i], 0)),    # mask-token slab (per-tile)
            resident((D, H)),                                    # W1
            resident((1, H)),                                    # b1
            resident((H, D)),                                    # W2
            resident((1, D)),                                    # b2
        ],
        out_specs=pl.BlockSpec((tm, D), lambda i, sid: (i, 0)),  # lane-dense (D=128) output
    )
    return pl.pallas_call(
        _fused_predictor_kernel,
        out_shape=jax.ShapeDtypeStruct((Mp, D), out_dtype),
        grid_spec=grid_spec,
        compiler_params=pltpu.CompilerParams(
            dimension_semantics=("parallel",),
            vmem_limit_bytes=_vmem_limit_bytes(tm, NP, D, H, single_buffer_resident)),
    )(set_ids, mt_idx, pos_table, mask_tok_pad, w1, b1, w2, b2)


# -----------------------------------------------------------------------------
# Jitted end-to-end path: per-set padding + concat -> one pallas_call -> slice.
# -----------------------------------------------------------------------------
@functools.partial(jax.jit, static_argnames=("mask_indices", "tm", "single_buffer"))
def _predict_multi(mts, pos_table, mask_tok_pad, w1, b1, w2, b2, *,
                   mask_indices, tm, single_buffer):
    D = pos_table.shape[1]
    mt_rows, tile_sids, meta = [], [], []
    for mt, mi in zip(mts, mask_indices):
        B, Kt = mt.shape
        rows = B * Kt
        rows_p = _round_up(rows, tm)          # pad each set to a tile boundary so every
        flat = mt.reshape(-1).astype(jnp.int32)  # tile holds exactly one mask set
        if rows_p != rows:
            flat = jnp.concatenate([flat, jnp.zeros((rows_p - rows,), jnp.int32)])
        mt_rows.append(flat)
        tile_sids.append(np.full((rows_p // tm,), mi, np.int32))
        meta.append((B, Kt, rows, rows_p))
    mt_flat = jnp.concatenate(mt_rows)[:, None]
    set_ids = jnp.asarray(np.concatenate(tile_sids), jnp.int32)   # static constant
    y = fused_gather_mlp(set_ids, mt_flat, pos_table, mask_tok_pad, w1, b1, w2, b2,
                         tm=tm, single_buffer_resident=single_buffer)
    outs, off = [], 0
    for (B, Kt, rows, rows_p) in meta:
        outs.append(y[off:off + rows].reshape(B, Kt, D))
        off += rows_p
    return tuple(outs)


# -----------------------------------------------------------------------------
# Synthetic predictor backbone (deterministic params).
#   prediction[b, t, :] = MLP( pos_embed[mt[b, t]] + mask_tokens[mask_index] )
# -----------------------------------------------------------------------------
class SimplePredictorBackbone:
    def __init__(self, key, *, num_pos, dim, hidden, num_mask_sets, tm=256):
        k1, k2, k3, k4 = jax.random.split(key, 4)
        self.dim, self.hidden, self.num_pos = dim, hidden, num_pos
        self.num_mask_sets, self.tm = num_mask_sets, tm
        s1 = 1.0 / jnp.sqrt(jnp.float32(dim))
        s2 = 1.0 / jnp.sqrt(jnp.float32(hidden))
        self.w1 = (jax.random.normal(k1, (dim, hidden), jnp.float32) * s1).astype(jnp.bfloat16)
        self.b1 = jnp.zeros((1, hidden), jnp.float32)
        self.w2 = (jax.random.normal(k2, (hidden, dim), jnp.float32) * s2).astype(jnp.bfloat16)
        self.b2 = jnp.zeros((1, dim), jnp.float32)
        # pos table padded so the gather matmul's contraction dim is a multiple of
        # 256 (full-width v6e/v7x MXU pushes; 128-native v5e is unaffected).
        np_rows = _round_up(num_pos, 256)
        pos = jax.random.normal(k3, (num_pos, dim), jnp.float32) * 0.02
        self.pos_table = (jnp.zeros((np_rows, dim), jnp.float32)
                          .at[:num_pos].set(pos).astype(jnp.bfloat16))
        self.mask_tokens = (jax.random.normal(k4, (num_mask_sets, dim), jnp.float32)
                            * 0.02).astype(jnp.bfloat16)
        # each mask token replicated into an (8, D) slab -> clean (8,128)-aligned block
        self.mask_tokens_padded = jnp.repeat(self.mask_tokens, 8, axis=0)
        self._single_buffer = None   # resolved on first call (Buffered(1) w/ fallback)

    def _run(self, mts, mask_indices):
        args = (tuple(mts), self.pos_table, self.mask_tokens_padded,
                self.w1, self.b1, self.w2, self.b2)
        kw = dict(mask_indices=tuple(int(i) for i in mask_indices), tm=self.tm)
        if self._single_buffer is None:
            try:
                outs = _predict_multi(*args, single_buffer=True, **kw)
                outs = tuple(jax.block_until_ready(o) for o in outs)
                self._single_buffer = True
                return outs
            except Exception:
                # TODO(synk): pl.Buffered(1) single-buffering of resident weights is not
                # supported on this jax build; fall back to default double-buffering.
                self._single_buffer = False
        return _predict_multi(*args, single_buffer=self._single_buffer, **kw)

    def forward_multi(self, items):
        """Fused path: one Pallas launch for all mask sets.
        items[i] = (zi, hi, mc, mt);  out[i] == backbone(zi, hi, mc, mt, mask_index=i)."""
        mts = tuple(mt for (_zi, _hi, _mc, mt) in items)
        return list(self._run(mts, tuple(range(len(items)))))

    def __call__(self, zi, hi, mc, mt, mask_index=0):
        # TODO(synk): a real JEPA predictor is a transformer where gathered context
        # tokens (zi at mc) attend to the mask tokens; this synthetic token-wise
        # backbone's outputs depend only on mt / mask_index, so the discarded
        # context-token pass is skipped entirely.
        (out,) = self._run((mt,), (mask_index,))
        return out


# -----------------------------------------------------------------------------
# PredictorMultiMaskWrapper — exact forward semantics of the PyTorch module
# (list normalization + per-mask-set backbone application), with the per-set
# loop fused into a single Pallas launch when the backbone supports it.
# -----------------------------------------------------------------------------
class PredictorMultiMaskWrapper:
    def __init__(self, backbone):
        self.backbone = backbone

    def forward(self, ctxt, tgt, masks_ctxt, masks_tgt):
        if type(ctxt) is not list:
            ctxt = [ctxt]
        if type(tgt) is not list:
            tgt = [tgt]
        if type(masks_ctxt) is not list:
            masks_ctxt = [masks_ctxt]
        if type(masks_tgt) is not list:
            masks_tgt = [masks_tgt]
        items = list(zip(ctxt, tgt, masks_ctxt, masks_tgt))
        if hasattr(self.backbone, "forward_multi"):
            return self.backbone.forward_multi(items)
        outs = []
        for i, (zi, hi, mc, mt) in enumerate(items):
            outs += [self.backbone(zi, hi, mc, mt, mask_index=i)]
        return outs

    __call__ = forward


# -----------------------------------------------------------------------------
if __name__ == "__main__":
    B = 2                 # batch
    N = 256               # number of positions / context tokens
    D = 128               # embed dim (multiple of 128 -> lane-dense output)
    H = 256               # MLP hidden dim
    Kc, Kt = 32, 128      # context / target mask sizes
    NUM_MASK_SETS = 2     # M = 2 * B * Kt = 512 rows, tm=256 -> grid of 2 (both v7x TCs)

    key = jax.random.PRNGKey(0)
    kb, kc0, kc1, kt0, kt1, km0, km1, kn0, kn1 = jax.random.split(key, 9)

    backbone = SimplePredictorBackbone(
        kb, num_pos=N, dim=D, hidden=H, num_mask_sets=NUM_MASK_SETS, tm=256)
    model = PredictorMultiMaskWrapper(backbone)

    # two mask sets (exercises the list path and mask_index)
    ctxt = [jax.random.normal(kc0, (B, N, D), jnp.float32),
            jax.random.normal(kc1, (B, N, D), jnp.float32)]
    tgt = [jax.random.normal(kt0, (B, Kt, D), jnp.float32),
           jax.random.normal(kt1, (B, Kt, D), jnp.float32)]
    masks_ctxt = [jax.random.randint(km0, (B, Kc), 0, N, jnp.int32),
                  jax.random.randint(km1, (B, Kc), 0, N, jnp.int32)]
    masks_tgt = [jax.random.randint(kn0, (B, Kt), 0, N, jnp.int32),
                 jax.random.randint(kn1, (B, Kt), 0, N, jnp.int32)]

    outs = model(ctxt, tgt, masks_ctxt, masks_tgt)
    outs = [jax.block_until_ready(o) for o in outs]

    # non-list inputs must be normalized to a 1-element list (mask_index=0)
    single = model(ctxt[0], tgt[0], masks_ctxt[0], masks_tgt[0])
    single = [jax.block_until_ready(o) for o in single]

    # pure-JAX reference of the backbone hot path (mirrors the kernel's casts)
    def ref_backbone(mt, i):
        pos = backbone.pos_table.astype(jnp.float32)
        mtok = backbone.mask_tokens.astype(jnp.float32)[i]
        x = pos[mt] + mtok                                            # (B, Kt, D) f32
        x2 = x.reshape(-1, D).astype(jnp.bfloat16)
        h = jnp.dot(x2, backbone.w1, preferred_element_type=jnp.float32) + backbone.b1
        h = jax.nn.gelu(h)
        y = jnp.dot(h.astype(jnp.bfloat16), backbone.w2,
                    preferred_element_type=jnp.float32) + backbone.b2
        return y.reshape(B, Kt, D)

    assert len(outs) == NUM_MASK_SETS and len(single) == 1
    for i in range(NUM_MASK_SETS):
        r = ref_backbone(masks_tgt[i], i)
        assert outs[i].shape == (B, Kt, D)
        assert jnp.allclose(outs[i], r, atol=2e-3, rtol=2e-2), (
            f"mask set {i}: max abs err {jnp.max(jnp.abs(outs[i] - r))}")
    assert jnp.allclose(single[0], outs[0], atol=1e-5, rtol=1e-5)

    print("KERNEL_OK")
</pallas_src>

<mosaic_0001>
module attributes {stable_mosaic.version = 11 : i64} {
  func.func @_fused_predictor_kernel(%arg0: i32, %arg1: memref<2xi32, #tpu.memory_space<smem>>, %arg2: memref<256x1xi32, #tpu.memory_space<vmem>>, %arg3: memref<256x128xbf16, #tpu.memory_space<vmem>>, %arg4: memref<8x128xbf16, #tpu.memory_space<vmem>>, %arg5: memref<128x256xbf16, #tpu.memory_space<vmem>>, %arg6: memref<1x256xf32, #tpu.memory_space<vmem>>, %arg7: memref<256x128xbf16, #tpu.memory_space<vmem>>, %arg8: memref<1x128xf32, #tpu.memory_space<vmem>>, %arg9: memref<256x128xf32, #tpu.memory_space<vmem>>) attributes {dimension_semantics = [#tpu.dimension_semantics<parallel>], iteration_bounds = array<i64: 2>, scalar_prefetch = 1 : i64, scratch_operands = 0 : i64, tpu.core_type = #tpu.core_type<tc>, window_params = [{transform_indices = @transform_0, window_bounds = array<i64: 256, 1>}, {pipeline_mode = #tpu.pipeline_mode<synchronous>, transform_indices = @transform_1, window_bounds = array<i64: 256, 128>}, {transform_indices = @transform_2, window_bounds = array<i64: 8, 128>}, {pipeline_mode = #tpu.pipeline_mode<synchronous>, transform_indices = @transform_3, window_bounds = array<i64: 128, 256>}, {pipeline_mode = #tpu.pipeline_mode<synchronous>, transform_indices = @transform_4, window_bounds = array<i64: 1, 256>}, {pipeline_mode = #tpu.pipeline_mode<synchronous>, transform_indices = @transform_5, window_bounds = array<i64: 256, 128>}, {pipeline_mode = #tpu.pipeline_mode<synchronous>, transform_indices = @transform_6, window_bounds = array<i64: 1, 128>}, {transform_indices = @transform_7, window_bounds = array<i64: 256, 128>}]} {
    %0 = tpu.iota {dimensions = array<i32: 1>} : vector<256x256xi32>
    %c0 = arith.constant 0 : index
    %c0_0 = arith.constant 0 : index
    %1 = vector.load %arg2[%c0, %c0_0] : memref<256x1xi32, #tpu.memory_space<vmem>>, vector<256x1xi32>
    %2 = vector.broadcast %1 : vector<256x1xi32> to vector<256x256xi32>
    %3 = arith.cmpi eq, %0, %2 : vector<256x256xi32>
    %4 = arith.extui %3 : vector<256x256xi1> to vector<256x256xi32>
    %5 = arith.sitofp %4 : vector<256x256xi32> to vector<256x256xf32>
    %6 = arith.truncf %5 : vector<256x256xf32> to vector<256x256xbf16>
    %c0_1 = arith.constant 0 : index
    %c0_2 = arith.constant 0 : index
    %7 = vector.load %arg3[%c0_1, %c0_2] : memref<256x128xbf16, #tpu.memory_space<vmem>>, vector<256x128xbf16>
    %cst = arith.constant dense<0.000000e+00> : vector<256x128xf32>
    %8 = tpu.matmul %6, %7, %cst {dimension_numbers = #tpu.dot_dimension_numbers<[1], [0], [0], [1], [0, 0, 1, 1], [], []>} : vector<256x256xbf16>, vector<256x128xbf16>, vector<256x128xf32> -> vector<256x128xf32>
    %c0_3 = arith.constant 0 : index
    %c0_4 = arith.constant 0 : index
    %9 = vector.load %arg4[%c0_3, %c0_4] : memref<8x128xbf16, #tpu.memory_space<vmem>>, vector<1x128xbf16>
    %10 = arith.extf %9 : vector<1x128xbf16> to vector<1x128xf32>
    %11 = vector.broadcast %10 : vector<1x128xf32> to vector<256x128xf32>
    %12 = arith.addf %8, %11 : vector<256x128xf32>
    %13 = arith.truncf %12 : vector<256x128xf32> to vector<256x128xbf16>
    %c0_5 = arith.constant 0 : index
    %c0_6 = arith.constant 0 : index
    %14 = vector.load %arg5[%c0_5, %c0_6] : memref<128x256xbf16, #tpu.memory_space<vmem>>, vector<128x256xbf16>
    %cst_7 = arith.constant dense<0.000000e+00> : vector<256x256xf32>
    %15 = tpu.matmul %13, %14, %cst_7 {dimension_numbers = #tpu.dot_dimension_numbers<[1], [0], [0], [1], [0, 0, 1, 1], [], []>} : vector<256x128xbf16>, vector<128x256xbf16>, vector<256x256xf32> -> vector<256x256xf32>
    %c0_8 = arith.constant 0 : index
    %c0_9 = arith.constant 0 : index
    %16 = vector.load %arg6[%c0_8, %c0_9] : memref<1x256xf32, #tpu.memory_space<vmem>>, vector<1x256xf32>
    %17 = vector.broadcast %16 : vector<1x256xf32> to vector<256x256xf32>
    %18 = arith.addf %15, %17 : vector<256x256xf32>
    %19 = arith.mulf %18, %18 : vector<256x256xf32>
    %20 = arith.mulf %18, %19 : vector<256x256xf32>
    %cst_10 = arith.constant 4.471500e-02 : f32
    %21 = vector.broadcast %cst_10 : f32 to vector<256x256xf32>
    %22 = arith.mulf %21, %20 : vector<256x256xf32>
    %23 = arith.addf %18, %22 : vector<256x256xf32>
    %cst_11 = arith.constant 0.797884583 : f32
    %24 = vector.broadcast %cst_11 : f32 to vector<256x256xf32>
    %25 = arith.mulf %24, %23 : vector<256x256xf32>
    %26 = math.tanh %25 : vector<256x256xf32>
    %cst_12 = arith.constant 1.000000e+00 : f32
    %27 = vector.broadcast %cst_12 : f32 to vector<256x256xf32>
    %28 = arith.addf %27, %26 : vector<256x256xf32>
    %cst_13 = arith.constant 5.000000e-01 : f32
    %29 = vector.broadcast %cst_13 : f32 to vector<256x256xf32>
    %30 = arith.mulf %29, %28 : vector<256x256xf32>
    %31 = arith.mulf %18, %30 : vector<256x256xf32>
    %32 = arith.truncf %31 : vector<256x256xf32> to vector<256x256xbf16>
    %c0_14 = arith.constant 0 : index
    %c0_15 = arith.constant 0 : index
    %33 = vector.load %arg7[%c0_14, %c0_15] : memref<256x128xbf16, #tpu.memory_space<vmem>>, vector<256x128xbf16>
    %cst_16 = arith.constant dense<0.000000e+00> : vector<256x128xf32>
    %34 = tpu.matmul %32, %33, %cst_16 {dimension_numbers = #tpu.dot_dimension_numbers<[1], [0], [0], [1], [0, 0, 1, 1], [], []>} : vector<256x256xbf16>, vector<256x128xbf16>, vector<256x128xf32> -> vector<256x128xf32>
    %c0_17 = arith.constant 0 : index
    %c0_18 = arith.constant 0 : index
    %35 = vector.load %arg8[%c0_17, %c0_18] : memref<1x128xf32, #tpu.memory_space<vmem>>, vector<1x128xf32>
    %36 = vector.broadcast %35 : vector<1x128xf32> to vector<256x128xf32>
    %37 = arith.addf %34, %36 : vector<256x128xf32>
    %c0_19 = arith.constant 0 : index
    %c0_20 = arith.constant 0 : index
    %38 = vector.load %arg9[%c0_19, %c0_20] : memref<256x128xf32, #tpu.memory_space<vmem>>, vector<256x128xf32>
    tpu.vector_store %arg9[%c0_19, %c0_20], %37 {strides = array<i32>} : memref<256x128xf32, #tpu.memory_space<vmem>>, vector<256x128xf32>,
    return
  }
  func.func @transform_0(%arg0: i32, %arg1: memref<2xi32, #tpu.memory_space<smem>>) -> (i32, i32) {
    %c0_i32 = arith.constant 0 : i32
    %c0_i32_0 = arith.constant 0 : i32
    return %arg0, %c0_i32 : i32, i32
  }
  func.func @transform_1(%arg0: i32, %arg1: memref<2xi32, #tpu.memory_space<smem>>) -> (i32, i32) {
    %c0_i32 = arith.constant 0 : i32
    %c0_i32_0 = arith.constant 0 : i32
    %c0_i32_1 = arith.constant 0 : i32
    return %c0_i32, %c0_i32_0 : i32, i32
  }
  func.func @transform_2(%arg0: i32, %arg1: memref<2xi32, #tpu.memory_space<smem>>) -> (i32, i32) {
    %0 = arith.index_cast %arg0 : i32 to index
    %1 = memref.load %arg1[%0] : memref<2xi32, #tpu.memory_space<smem>>
    %c0_i32 = arith.constant 0 : i32
    %c0_i32_0 = arith.constant 0 : i32
    return %1, %c0_i32 : i32, i32
  }
  func.func @transform_3(%arg0: i32, %arg1: memref<2xi32, #tpu.memory_space<smem>>) -> (i32, i32) {
    %c0_i32 = arith.constant 0 : i32
    %c0_i32_0 = arith.constant 0 : i32
    %c0_i32_1 = arith.constant 0 : i32
    return %c0_i32, %c0_i32_0 : i32, i32
  }
  func.func @transform_4(%arg0: i32, %arg1: memref<2xi32, #tpu.memory_space<smem>>) -> (i32, i32) {
    %c0_i32 = arith.constant 0 : i32
    %c0_i32_0 = arith.constant 0 : i32
    %c0_i32_1 = arith.constant 0 : i32
    return %c0_i32, %c0_i32_0 : i32, i32
  }
  func.func @transform_5(%arg0: i32, %arg1: memref<2xi32, #tpu.memory_space<smem>>) -> (i32, i32) {
    %c0_i32 = arith.constant 0 : i32
    %c0_i32_0 = arith.constant 0 : i32
    %c0_i32_1 = arith.constant 0 : i32
    return %c0_i32, %c0_i32_0 : i32, i32
  }
  func.func @transform_6(%arg0: i32, %arg1: memref<2xi32, #tpu.memory_space<smem>>) -> (i32, i32) {
    %c0_i32 = arith.constant 0 : i32
    %c0_i32_0 = arith.constant 0 : i32
    %c0_i32_1 = arith.constant 0 : i32
    return %c0_i32, %c0_i32_0 : i32, i32
  }
  func.func @transform_7(%arg0: i32, %arg1: memref<2xi32, #tpu.memory_space<smem>>) -> (i32, i32) {
    %c0_i32 = arith.constant 0 : i32
    %c0_i32_0 = arith.constant 0 : i32
    return %arg0, %c0_i32 : i32, i32
  }
}

module attributes {stable_mosaic.version = 11 : i64} {
  func.func @_fused_predictor_kernel(%arg0: i32, %arg1: memref<2xi32, #tpu.memory_space<smem>>, %arg2: memref<256x1xi32, #tpu.memory_space<vmem>>, %arg3: memref<256x128xbf16, #tpu.memory_space<vmem>>, %arg4: memref<8x128xbf16, #tpu.memory_space<vmem>>, %arg5: memref<128x256xbf16, #tpu.memory_space<vmem>>, %arg6: memref<1x256xf32, #tpu.memory_space<vmem>>, %arg7: memref<256x128xbf16, #tpu.memory_space<vmem>>, %arg8: memref<1x128xf32, #tpu.memory_space<vmem>>, %arg9: memref<256x128xf32, #tpu.memory_space<vmem>>) attributes {dimension_semantics = [#tpu.dimension_semantics<parallel>], iteration_bounds = array<i64: 2>, scalar_prefetch = 1 : i64, scratch_operands = 0 : i64, tpu.core_type = #tpu.core_type<tc>, window_params = [{transform_indices = @transform_0, window_bounds = array<i64: 256, 1>}, {pipeline_mode = #tpu.pipeline_mode<synchronous>, transform_indices = @transform_1, window_bounds = array<i64: 256, 128>}, {transform_indices = @transform_2, window_bounds = array<i64: 8, 128>}, {pipeline_mode = #tpu.pipeline_mode<synchronous>, transform_indices = @transform_3, window_bounds = array<i64: 128, 256>}, {pipeline_mode = #tpu.pipeline_mode<synchronous>, transform_indices = @transform_4, window_bounds = array<i64: 1, 256>}, {pipeline_mode = #tpu.pipeline_mode<synchronous>, transform_indices = @transform_5, window_bounds = array<i64: 256, 128>}, {pipeline_mode = #tpu.pipeline_mode<synchronous>, transform_indices = @transform_6, window_bounds = array<i64: 1, 128>}, {transform_indices = @transform_7, window_bounds = array<i64: 256, 128>}]} {
    %0 = tpu.iota {dimensions = array<i32: 1>} : vector<256x256xi32>
    %c0 = arith.constant 0 : index
    %c0_0 = arith.constant 0 : index
    %1 = vector.load %arg2[%c0, %c0_0] : memref<256x1xi32, #tpu.memory_space<vmem>>, vector<256x1xi32>
    %2 = vector.broadcast %1 : vector<256x1xi32> to vector<256x256xi32>
    %3 = arith.cmpi eq, %0, %2 : vector<256x256xi32>
    %4 = arith.extui %3 : vector<256x256xi1> to vector<256x256xi32>
    %5 = arith.sitofp %4 : vector<256x256xi32> to vector<256x256xf32>
    %6 = arith.truncf %5 : vector<256x256xf32> to vector<256x256xbf16>
    %c0_1 = arith.constant 0 : index
    %c0_2 = arith.constant 0 : index
    %7 = vector.load %arg3[%c0_1, %c0_2] : memref<256x128xbf16, #tpu.memory_space<vmem>>, vector<256x128xbf16>
    %cst = arith.constant dense<0.000000e+00> : vector<256x128xf32>
    %8 = tpu.matmul %6, %7, %cst {dimension_numbers = #tpu.dot_dimension_numbers<[1], [0], [0], [1], [0, 0, 1, 1], [], []>} : vector<256x256xbf16>, vector<256x128xbf16>, vector<256x128xf32> -> vector<256x128xf32>
    %c0_3 = arith.constant 0 : index
    %c0_4 = arith.constant 0 : index
    %9 = vector.load %arg4[%c0_3, %c0_4] : memref<8x128xbf16, #tpu.memory_space<vmem>>, vector<1x128xbf16>
    %10 = arith.extf %9 : vector<1x128xbf16> to vector<1x128xf32>
    %11 = vector.broadcast %10 : vector<1x128xf32> to vector<256x128xf32>
    %12 = arith.addf %8, %11 : vector<256x128xf32>
    %13 = arith.truncf %12 : vector<256x128xf32> to vector<256x128xbf16>
    %c0_5 = arith.constant 0 : index
    %c0_6 = arith.constant 0 : index
    %14 = vector.load %arg5[%c0_5, %c0_6] : memref<128x256xbf16, #tpu.memory_space<vmem>>, vector<128x256xbf16>
    %cst_7 = arith.constant dense<0.000000e+00> : vector<256x256xf32>
    %15 = tpu.matmul %13, %14, %cst_7 {dimension_numbers = #tpu.dot_dimension_numbers<[1], [0], [0], [1], [0, 0, 1, 1], [], []>} : vector<256x128xbf16>, vector<128x256xbf16>, vector<256x256xf32> -> vector<256x256xf32>
    %c0_8 = arith.constant 0 : index
    %c0_9 = arith.constant 0 : index
    %16 = vector.load %arg6[%c0_8, %c0_9] : memref<1x256xf32, #tpu.memory_space<vmem>>, vector<1x256xf32>
    %17 = vector.broadcast %16 : vector<1x256xf32> to vector<256x256xf32>
    %18 = arith.addf %15, %17 : vector<256x256xf32>
    %19 = arith.mulf %18, %18 : vector<256x256xf32>
    %20 = arith.mulf %18, %19 : vector<256x256xf32>
    %cst_10 = arith.constant 4.471500e-02 : f32
    %21 = vector.broadcast %cst_10 : f32 to vector<256x256xf32>
    %22 = arith.mulf %21, %20 : vector<256x256xf32>
    %23 = arith.addf %18, %22 : vector<256x256xf32>
    %cst_11 = arith.constant 0.797884583 : f32
    %24 = vector.broadcast %cst_11 : f32 to vector<256x256xf32>
    %25 = arith.mulf %24, %23 : vector<256x256xf32>
    %26 = math.tanh %25 : vector<256x256xf32>
    %cst_12 = arith.constant 1.000000e+00 : f32
    %27 = vector.broadcast %cst_12 : f32 to vector<256x256xf32>
    %28 = arith.addf %27, %26 : vector<256x256xf32>
    %cst_13 = arith.constant 5.000000e-01 : f32
    %29 = vector.broadcast %cst_13 : f32 to vector<256x256xf32>
    %30 = arith.mulf %29, %28 : vector<256x256xf32>
    %31 = arith.mulf %18, %30 : vector<256x256xf32>
    %32 = arith.truncf %31 : vector<256x256xf32> to vector<256x256xbf16>
    %c0_14 = arith.constant 0 : index
    %c0_15 = arith.constant 0 : index
    %33 = vector.load %arg7[%c0_14, %c0_15] : memref<256x128xbf16, #tpu.memory_space<vmem>>, vector<256x128xbf16>
    %cst_16 = arith.constant dense<0.000000e+00> : vector<256x128xf32>
    %34 = tpu.matmul %32, %33, %cst_16 {dimension_numbers = #tpu.dot_dimension_numbers<[1], [0], [0], [1], [0, 0, 1, 1], [], []>} : vector<256x256xbf16>, vector<256x128xbf16>, vector<256x128xf32> -> vector<256x128xf32>
    %c0_17 = arith.constant 0 : index
    %c0_18 = arith.constant 0 : index
    %35 = vector.load %arg8[%c0_17, %c0_18] : memref<1x128xf32, #tpu.memory_space<vmem>>, vector<1x128xf32>
    %36 = vector.broadcast %35 : vector<1x128xf32> to vector<256x128xf32>
    %37 = arith.addf %34, %36 : vector<256x128xf32>
    %c0_19 = arith.constant 0 : index
    %c0_20 = arith.constant 0 : index
    %38 = vector.load %arg9[%c0_19, %c0_20] : memref<256x128xf32, #tpu.memory_space<vmem>>, vector<256x128xf32>
    tpu.vector_store %arg9[%c0_19, %c0_20], %37 {strides = array<i32>} : memref<256x128xf32, #tpu.memory_space<vmem>>, vector<256x128xf32>,
    return
  }
  func.func @transform_0(%arg0: i32, %arg1: memref<2xi32, #tpu.memory_space<smem>>) -> (i32, i32) {
    %c0_i32 = arith.constant 0 : i32
    %c0_i32_0 = arith.constant 0 : i32
    return %arg0, %c0_i32 : i32, i32
  }
  func.func @transform_1(%arg0: i32, %arg1: memref<2xi32, #tpu.memory_space<smem>>) -> (i32, i32) {
    %c0_i32 = arith.constant 0 : i32
    %c0_i32_0 = arith.constant 0 : i32
    %c0_i32_1 = arith.constant 0 : i32
    return %c0_i32, %c0_i32_0 : i32, i32
  }
  func.func @transform_2(%arg0: i32, %arg1: memref<2xi32, #tpu.memory_space<smem>>) -> (i32, i32) {
    %0 = arith.index_cast %arg0 : i32 to index
    %1 = memref.load %arg1[%0] : memref<2xi32, #tpu.memory_space<smem>>
    %c0_i32 = arith.constant 0 : i32
    %c0_i32_0 = arith.constant 0 : i32
    return %1, %c0_i32 : i32, i32
  }
  func.func @transform_3(%arg0: i32, %arg1: memref<2xi32, #tpu.memory_space<smem>>) -> (i32, i32) {
    %c0_i32 = arith.constant 0 : i32
    %c0_i32_0 = arith.constant 0 : i32
    %c0_i32_1 = arith.constant 0 : i32
    return %c0_i32, %c0_i32_0 : i32, i32
  }
  func.func @transform_4(%arg0: i32, %arg1: memref<2xi32, #tpu.memory_space<smem>>) -> (i32, i32) {
    %c0_i32 = arith.constant 0 : i32
    %c0_i32_0 = arith.constant 0 : i32
    %c0_i32_1 = arith.constant 0 : i32
    return %c0_i32, %c0_i32_0 : i32, i32
  }
  func.func @transform_5(%arg0: i32, %arg1: memref<2xi32, #tpu.memory_space<smem>>) -> (i32, i32) {
    %c0_i32 = arith.constant 0 : i32
    %c0_i32_0 = arith.constant 0 : i32
    %c0_i32_1 = arith.constant 0 : i32
    return %c0_i32, %c0_i32_0 : i32, i32
  }
  func.func @transform_6(%arg0: i32, %arg1: memref<2xi32, #tpu.memory_space<smem>>) -> (i32, i32) {
    %c0_i32 = arith.constant 0 : i32
    %c0_i32_0 = arith.constant 0 : i32
    %c0_i32_1 = arith.constant 0 : i32
    return %c0_i32, %c0_i32_0 : i32, i32
  }
  func.func @transform_7(%arg0: i32, %arg1: memref<2xi32, #tpu.memory_space<smem>>) -> (i32, i32) {
    %c0_i32 = arith.constant 0 : i32
    %c0_i32_0 = arith.constant 0 : i32
    return %arg0, %c0_i32 : i32, i32
  }
}

</mosaic_0001>

<llo_original>
// kernel: _predict_multi.1
$region0: #{_predict_multi.1}
  #allocation0 [shape = 'u32[]', space=smem, size = 0x4, offset = 0x4, fixed_abs, tag = 'smem constant byte address 0x4 - core index']
  #allocation1 [shape = 'u32[144,128]{1,0:T(1,128)}', space=vmem, size = 0x12000, scoped, tag = 'internal scratch']
  #allocation2 [shape = 's32[1]{0}', space=sflag, size = 0x4, scoped, tag = 'scoped memory for _predict_multi.1']
  #allocation3 [shape = 'u8[512]{0}', space=smem, size = 0x200, scoped, tag = 'prefetched SMEM operand 0']
  %s0 = inlined_call_operand.vmem [shape: s32[2], index: 0, kind: input, shape index: {}]
  %s1 = inlined_call_operand.vmem [shape: s32[512,1], index: 1, kind: input, shape index: {}]
  %s2 = inlined_call_operand.vmem [shape: bf16[256,128], index: 2, kind: input, shape index: {}]
  %s3 = inlined_call_operand.vmem [shape: bf16[16,128], index: 3, kind: input, shape index: {}]
  %s4 = inlined_call_operand.vmem [shape: bf16[128,256], index: 4, kind: input, shape index: {}]
  %s5 = inlined_call_operand.vmem [shape: f32[1,256], index: 5, kind: input, shape index: {}]
  %s6 = inlined_call_operand.vmem [shape: bf16[256,128], index: 6, kind: input, shape index: {}]
  %s7 = inlined_call_operand.vmem [shape: f32[1,128], index: 7, kind: input, shape index: {}]
  %s8 = inlined_call_operand.vmem [shape: f32[512,128], index: 8, kind: output, shape index: {}]
  %s9 = sld [smem:[#allocation0]]
  $region61: #{_predict_multi.1} parent=0
    _
  %s11 = ssub.s32 1, %s9
  %s12 = scalar_select 0, %s11, %s9
  %s13 = sshll.u32 %s0, 4
  %s14 = int_to_ptr.vmem [resolvable:$true] %s13
  %16 = dma.vmem_to_smem %s14, 16, [#allocation3], [#allocation2]
  %17 = dma.done [#allocation2], 16
  %18 = sfence
  loop: start=0, step=1, limit=4
  $region2: #{_predict_multi.1} parent=0 // loop_pre_header
    _
  $region3: #{_predict_multi.1} parent=0 // loop_header
    %s20 = sphi 0, %s24
    %p21 = scmp.ge.s32.totalorder %s20, 4
    %s30 = sphi 0, %s32
    %s33 = sphi 0, %s30
    %s34 = sphi 0, %s33
    %s50 = sphi 0, %s34
    %s54 = sphi 0, %s54
    %s56 = sphi 0, %s54
    %s57 = sphi 0, %s56
    %s71 = sphi 0, %s57
    %s79 = sphi 0, %s81
    %s82 = sphi 0, %s79
    %s83 = sphi 0, %s82
    %s99 = sphi 0, %s83
    %s103 = sphi 0, %s103
    %s105 = sphi 0, %s103
    %s106 = sphi 0, %s105
    %s120 = sphi 0, %s106
    %s124 = sphi 0, %s124
    %s126 = sphi 0, %s124
    %s127 = sphi 0, %s126
    %s141 = sphi 0, %s127
    %s145 = sphi 0, %s145
    %s147 = sphi 0, %s145
    %s148 = sphi 0, %s147
    %s162 = sphi 0, %s148
    %s166 = sphi 0, %s166
    %s168 = sphi 0, %s166
    %s169 = sphi 0, %s168
    %s183 = sphi 0, %s169
    %s189 = sphi 0, %s191
    %s192 = sphi 0, %s189
    %s193 = sphi 0, %s192
    %s209 = sphi 0, %s193
  $region4: #{_predict_multi.1} parent=0 // loop_header_branch
    %23 = sbr.rel (%p21) target = $region8
  $region5: #{_predict_multi.1} parent=0 // loop_body
    %s25 = ssub.s32 %s20, 1
    %s26 = ssub.s32 %s20, 2
    %s27 = sadd.s32 %s20, 1
    %s28 = ssub.s32 %s20, %s27
    %p29 = scmp.eq.s32.totalorder %s28, 0
    %s31 = sadd.s32 %s30, 1
    %s32 = scalar_select %p29, %s30, %s31
    %p35 = pneg %p29
    %p36 = scmp.eq.s32.totalorder %s20, 1
    %p37 = por %p35, %p36
    %p38 = scmp.ne.s32.totalorder %s30, %s33
    %p39 = scmp.eq.s32.totalorder %s20, 0
    %p40 = por %p38, %p39
    %p41 = scmp.ne.s32.totalorder %s30, %s33
    %p42 = scmp.eq.s32.totalorder %s25, 1
    %p43 = por %p41, %p42
    %p44 = scmp.ne.s32.totalorder %s33, %s34
    %p45 = scmp.eq.s32.totalorder %s25, 0
    %p46 = por %p44, %p45
    %p47 = scmp.ne.s32.totalorder %s33, %s34
    %p48 = scmp.eq.s32.totalorder %s26, 1
    %p49 = por %p47, %p48
    %p51 = scmp.ne.s32.totalorder %s34, %s50
    %p52 = scmp.eq.s32.totalorder %s26, 0
    %p53 = por %p51, %p52
    %s55 = sadd.s32 %s54, 1
    %p58 = scmp.eq.s32.totalorder %s20, 1
    %p59 = scmp.ne.s32.totalorder %s54, %s56
    %p60 = scmp.eq.s32.totalorder %s20, 0
    %p61 = por %p59, %p60
    %p62 = scmp.ne.s32.totalorder %s54, %s56
    %p63 = scmp.eq.s32.totalorder %s25, 1
    %p64 = por %p62, %p63
    %p65 = scmp.ne.s32.totalorder %s56, %s57
    %p66 = scmp.eq.s32.totalorder %s25, 0
    %p67 = por %p65, %p66
    %p68 = scmp.ne.s32.totalorder %s56, %s57
    %p69 = scmp.eq.s32.totalorder %s26, 1
    %p70 = por %p68, %p69
    %p72 = scmp.ne.s32.totalorder %s57, %s71
    %p73 = scmp.eq.s32.totalorder %s26, 0
    %p74 = por %p72, %p73
    %s75 = sld [smem:[#allocation3 + %s20]]
    %s76 = sld [smem:[#allocation3 + %s27]]
    %s77 = ssub.s32 %s75, %s76
    %p78 = scmp.eq.s32.totalorder %s77, 0
    %s80 = sadd.s32 %s79, 1
    %s81 = scalar_select %p78, %s79, %s80
    %p84 = pneg %p78
    %p85 = scmp.eq.s32.totalorder %s20, 1
    %p86 = por %p84, %p85
    %p87 = scmp.ne.s32.totalorder %s79, %s82
    %p88 = scmp.eq.s32.totalorder %s20, 0
    %p89 = por %p87, %p88
    %p90 = scmp.ne.s32.totalorder %s79, %s82
    %p91 = scmp.eq.s32.totalorder %s25, 1
    %p92 = por %p90, %p91
    %p93 = scmp.ne.s32.totalorder %s82, %s83
    %p94 = scmp.eq.s32.totalorder %s25, 0
    %p95 = por %p93, %p94
    %p96 = scmp.ne.s32.totalorder %s82, %s83
    %p97 = scmp.eq.s32.totalorder %s26, 1
    %p98 = por %p96, %p97
    %p100 = scmp.ne.s32.totalorder %s83, %s99
    %p101 = scmp.eq.s32.totalorder %s26, 0
    %p102 = por %p100, %p101
    %s104 = sadd.s32 %s103, 1
    %p107 = scmp.eq.s32.totalorder %s20, 1
    %p108 = scmp.ne.s32.totalorder %s103, %s105
    %p109 = scmp.eq.s32.totalorder %s20, 0
    %p110 = por %p108, %p109
    %p111 = scmp.ne.s32.totalorder %s103, %s105
    %p112 = scmp.eq.s32.totalorder %s25, 1
    %p113 = por %p111, %p112
    %p114 = scmp.ne.s32.totalorder %s105, %s106
    %p115 = scmp.eq.s32.totalorder %s25, 0
    %p116 = por %p114, %p115
    %p117 = scmp.ne.s32.totalorder %s105, %s106
    %p118 = scmp.eq.s32.totalorder %s26, 1
    %p119 = por %p117, %p118
    %p121 = scmp.ne.s32.totalorder %s106, %s120
    %p122 = scmp.eq.s32.totalorder %s26, 0
    %p123 = por %p121, %p122
    %s125 = sadd.s32 %s124, 1
    %p128 = scmp.eq.s32.totalorder %s20, 1
    %p129 = scmp.ne.s32.totalorder %s124, %s126
    %p130 = scmp.eq.s32.totalorder %s20, 0
    %p131 = por %p129, %p130
    %p132 = scmp.ne.s32.totalorder %s124, %s126
    %p133 = scmp.eq.s32.totalorder %s25, 1
    %p134 = por %p132, %p133
    %p135 = scmp.ne.s32.totalorder %s126, %s127
    %p136 = scmp.eq.s32.totalorder %s25, 0
    %p137 = por %p135, %p136
    %p138 = scmp.ne.s32.totalorder %s126, %s127
    %p139 = scmp.eq.s32.totalorder %s26, 1
    %p140 = por %p138, %p139
    %p142 = scmp.ne.s32.totalorder %s127, %s141
    %p143 = scmp.eq.s32.totalorder %s26, 0
    %p144 = por %p142, %p143
    %s146 = sadd.s32 %s145, 1
    %p149 = scmp.eq.s32.totalorder %s20, 1
    %p150 = scmp.ne.s32.totalorder %s145, %s147
    %p151 = scmp.eq.s32.totalorder %s20, 0
    %p152 = por %p150, %p151
    %p153 = scmp.ne.s32.totalorder %s145, %s147
    %p154 = scmp.eq.s32.totalorder %s25, 1
    %p155 = por %p153, %p154
    %p156 = scmp.ne.s32.totalorder %s147, %s148
    %p157 = scmp.eq.s32.totalorder %s25, 0
    %p158 = por %p156, %p157
    %p159 = scmp.ne.s32.totalorder %s147, %s148
    %p160 = scmp.eq.s32.totalorder %s26, 1
    %p161 = por %p159, %p160
    %p163 = scmp.ne.s32.totalorder %s148, %s162
    %p164 = scmp.eq.s32.totalorder %s26, 0
    %p165 = por %p163, %p164
    %s167 = sadd.s32 %s166, 1
    %p170 = scmp.eq.s32.totalorder %s20, 1
    %p171 = scmp.ne.s32.totalorder %s166, %s168
    %p172 = scmp.eq.s32.totalorder %s20, 0
    %p173 = por %p171, %p172
    %p174 = scmp.ne.s32.totalorder %s166, %s168
    %p175 = scmp.eq.s32.totalorder %s25, 1
    %p176 = por %p174, %p175
    %p177 = scmp.ne.s32.totalorder %s168, %s169
    %p178 = scmp.eq.s32.totalorder %s25, 0
    %p179 = por %p177, %p178
    %p180 = scmp.ne.s32.totalorder %s168, %s169
    %p181 = scmp.eq.s32.totalorder %s26, 1
    %p182 = por %p180, %p181
    %p184 = scmp.ne.s32.totalorder %s169, %s183
    %p185 = scmp.eq.s32.totalorder %s26, 0
    %p186 = por %p184, %p185
    %s187 = ssub.s32 %s20, %s27
    %p188 = scmp.eq.s32.totalorder %s187, 0
    %s190 = sadd.s32 %s189, 1
    %s191 = scalar_select %p188, %s189, %s190
    %p194 = pneg %p188
    %p195 = scmp.eq.s32.totalorder %s20, 1
    %p196 = por %p194, %p195
    %p197 = scmp.ne.s32.totalorder %s189, %s192
    %p198 = scmp.eq.s32.totalorder %s20, 0
    %p199 = por %p197, %p198
    %p200 = scmp.ne.s32.totalorder %s189, %s192
    %p201 = scmp.eq.s32.totalorder %s25, 1
    %p202 = por %p200, %p201
    %p203 = scmp.ne.s32.totalorder %s192, %s193
    %p204 = scmp.eq.s32.totalorder %s25, 0
    %p205 = por %p203, %p204
    %p206 = scmp.ne.s32.totalorder %s192, %s193
    %p207 = scmp.eq.s32.totalorder %s26, 1
    %p208 = por %p206, %p207
    %p210 = scmp.ne.s32.totalorder %s193, %s209
    %p211 = scmp.eq.s32.totalorder %s26, 0
    %p212 = por %p210, %p211
    %p213 = scmp.le.s32.totalorder 1, %s20
    %p214 = scmp.lt.s32.totalorder %s20, 3
    %p215 = pnand %p213, %p214
    %p216 = pneg %p215
    // Predicated region
    $region9: #{_predict_multi.1} parent=5 // pred_check
      _
    $region10: #{_predict_multi.1} parent=5 // pred_check_branch
      %218 = sbr.rel (%p215) target = $region12
    $region11: #{_predict_multi.1} parent=5 // pred_region
      %s219 = ssub.s32 %s20, 1
      // Predicated region
      $region13: #{_predict_multi.1} parent=11 // pred_check
        %p220 = pneg %p67
      $region14: #{_predict_multi.1} parent=11 // pred_check_branch
        %222 = sbr.rel (%p220) target = $region16
      $region15: #{_predict_multi.1} parent=11 // pred_region
        _
      $region16: #{_predict_multi.1} parent=11 // pred_fallthru
        _
      // Predicated region
      $region17: #{_predict_multi.1} parent=11 // pred_check
        %p223 = pneg %p116
      $region18: #{_predict_multi.1} parent=11 // pred_check_branch
        %225 = sbr.rel (%p223) target = $region20
      $region19: #{_predict_multi.1} parent=11 // pred_region
        _
      $region20: #{_predict_multi.1} parent=11 // pred_fallthru
        _
      // Predicated region
      $region21: #{_predict_multi.1} parent=11 // pred_check
        %p226 = pneg %p137
      $region22: #{_predict_multi.1} parent=11 // pred_check_branch
        %228 = sbr.rel (%p226) target = $region24
      $region23: #{_predict_multi.1} parent=11 // pred_region
        _
      $region24: #{_predict_multi.1} parent=11 // pred_fallthru
        _
      // Predicated region
      $region25: #{_predict_multi.1} parent=11 // pred_check
        %p229 = pneg %p158
      $region26: #{_predict_multi.1} parent=11 // pred_check_branch
        %231 = sbr.rel (%p229) target = $region28
      $region27: #{_predict_multi.1} parent=11 // pred_region
        _
      $region28: #{_predict_multi.1} parent=11 // pred_fallthru
        _
      // Predicated region
      $region29: #{_predict_multi.1} parent=11 // pred_check
        %p232 = pneg %p179
      $region30: #{_predict_multi.1} parent=11 // pred_check_branch
        %234 = sbr.rel (%p232) target = $region32
      $region31: #{_predict_multi.1} parent=11 // pred_region
        _
      $region32: #{_predict_multi.1} parent=11 // pred_fallthru
        _
    $region12: #{_predict_multi.1} parent=5 // pred_fallthru
      _
    %p235 = scmp.lt.s32.totalorder %s20, 2
    // Predicated region
    $region33: #{_predict_multi.1} parent=5 // pred_check
      %p236 = pneg %p235
    $region34: #{_predict_multi.1} parent=5 // pred_check_branch
      %238 = sbr.rel (%p236) target = $region36
    $region35: #{_predict_multi.1} parent=5 // pred_region
      // Predicated region
      $region37: #{_predict_multi.1} parent=35 // pred_check
        %p239 = pneg %p40
      $region38: #{_predict_multi.1} parent=35 // pred_check_branch
        %241 = sbr.rel (%p239) target = $region40
      $region39: #{_predict_multi.1} parent=35 // pred_region
        %s242 = smul.u32 32, %s20
        %p243 = scmp.lt.s32.totalorder %s242, 63
        %s244 = scalar_select %p243, %s242, 63
        %s245 = smul.addr %s244, 8
        %s246 = scalar_lea.vmem %s1, %s245
        %s247 = smul.u32 32, %s20
      $region40: #{_predict_multi.1} parent=35 // pred_fallthru
        _
      // Predicated region
      $region41: #{_predict_multi.1} parent=35 // pred_check
        %p248 = pneg %p89
      $region42: #{_predict_multi.1} parent=35 // pred_check_branch
        %250 = sbr.rel (%p248) target = $region44
      $region43: #{_predict_multi.1} parent=35 // pred_region
        %s251 = sld [smem:[#allocation3 + %s20]]
        %p252 = scmp.lt.s32.totalorder %s251, 1
        %s253 = scalar_select %p252, %s251, 1
        %s254 = smul.addr %s253, 4
        %s255 = scalar_lea.vmem %s3, %s254
        %s256 = sld [smem:[#allocation3 + %s20]]
      $region44: #{_predict_multi.1} parent=35 // pred_fallthru
        _
    $region36: #{_predict_multi.1} parent=5 // pred_fallthru
      _
    %p257 = scmp.le.s32.totalorder 1, %s20
    %p258 = scmp.lt.s32.totalorder %s20, 3
    %p259 = pnand %p257, %p258
    %p260 = pneg %p259
    // Predicated region
    $region45: #{_predict_multi.1} parent=5 // pred_check
      _
    $region46: #{_predict_multi.1} parent=5 // pred_check_branch
      %262 = sbr.rel (%p259) target = $region48
    $region47: #{_predict_multi.1} parent=5 // pred_region
      %s263 = ssub.s32 %s20, 1
      %s264 = smul.u32 32, %s25
      %p265 = scmp.lt.s32.totalorder %s264, 63
      %s266 = scalar_select %p265, %s264, 63
      %s267 = smul.addr %s266, 8
      %s268 = scalar_lea.vmem %s1, %s267
      %p269 = pneg %p46
      %p270 = pneg %p43
      %p271 = pneg %p67
      %p272 = pneg %p64
      %s273 = sld [smem:[#allocation3 + %s25]]
      %p274 = scmp.lt.s32.totalorder %s273, 1
      %s275 = scalar_select %p274, %s273, 1
      %s276 = smul.addr %s275, 4
      %s277 = scalar_lea.vmem %s3, %s276
      %p278 = pneg %p95
      %p279 = pneg %p92
      %p280 = pneg %p116
      %p281 = pneg %p113
      %p282 = pneg %p137
      %p283 = pneg %p134
      %p284 = pneg %p158
      %p285 = pneg %p155
      %p286 = pneg %p179
      %p287 = pneg %p176
      %p288 = pneg %p205
      %p289 = pneg %p202
      %s290 = smul.u32 32, %s25
      %p291 = scmp.lt.s32.totalorder %s290, 63
      %s292 = scalar_select %p291, %s290, 63
      %s293 = smul.addr %s292, 8
      %s294 = scalar_lea.vmem %s8, %s293
      %s295 = smul.u32 32, %s25
      %p296 = scmp.lt.s32.totalorder %s295, 63
      %s297 = scalar_select %p296, %s295, 63
      %s298 = smul.addr %s297, 8
      %s299 = scalar_lea.vmem %s1, %s298
      %s300 = smul.u32 32, %s25
      %s301 = sld [smem:[#allocation3 + %s25]]
      %p302 = scmp.lt.s32.totalorder %s301, 1
      %s303 = scalar_select %p302, %s301, 1
      %s304 = smul.addr %s303, 4
      %s305 = scalar_lea.vmem %s3, %s304
      %s306 = sld [smem:[#allocation3 + %s25]]
      %s307 = smul.u32 32, %s25
      %p308 = scmp.lt.s32.totalorder %s307, 63
      %s309 = scalar_select %p308, %s307, 63
      %s310 = smul.addr %s309, 8
      %s311 = scalar_lea.vmem %s8, %s310
      %s312 = smul.u32 32, %s25
      %v314 = vlaneseq
      %v315 = vand.u32 %v314, 127
      %v316 = vadd.s32 %v315, 128
      %v317 = vld [vmem:[%s299] sm:$0xff]
      %v318 = vld [vmem:[%s299 + $0x8] sm:$0xff]
      %v319 = vld [vmem:[%s299 + $0x10] sm:$0xff]
      %v320 = vld [vmem:[%s299 + $0x18] sm:$0xff]
      %v321 = vld [vmem:[%s299 + $0x20] sm:$0xff]
      %v322 = vld [vmem:[%s299 + $0x28] sm:$0xff]
      %v323 = vld [vmem:[%s299 + $0x30] sm:$0xff]
      %v324 = vld [vmem:[%s299 + $0x38] sm:$0xff]
      %v325 = vld [vmem:[%s299 + $0x40] sm:$0xff]
      %v326 = vld [vmem:[%s299 + $0x48] sm:$0xff]
      %v327 = vld [vmem:[%s299 + $0x50] sm:$0xff]
      %v328 = vld [vmem:[%s299 + $0x58] sm:$0xff]
      %v329 = vld [vmem:[%s299 + $0x60] sm:$0xff]
      %v330 = vld [vmem:[%s299 + $0x68] sm:$0xff]
      %v331 = vld [vmem:[%s299 + $0x70] sm:$0xff]
      %v332 = vld [vmem:[%s299 + $0x78] sm:$0xff]
      %v333 = vld [vmem:[%s299 + $0x80] sm:$0xff]
      %v334 = vld [vmem:[%s299 + $0x88] sm:$0xff]
      %v335 = vld [vmem:[%s299 + $0x90] sm:$0xff]
      %v336 = vld [vmem:[%s299 + $0x98] sm:$0xff]
      %v337 = vld [vmem:[%s299 + $0xa0] sm:$0xff]
      %v338 = vld [vmem:[%s299 + $0xa8] sm:$0xff]
      %v339 = vld [vmem:[%s299 + $0xb0] sm:$0xff]
      %v340 = vld [vmem:[%s299 + $0xb8] sm:$0xff]
      %v341 = vld [vmem:[%s299 + $0xc0] sm:$0xff]
      %v342 = vld [vmem:[%s299 + $0xc8] sm:$0xff]
      %v343 = vld [vmem:[%s299 + $0xd0] sm:$0xff]
      %v344 = vld [vmem:[%s299 + $0xd8] sm:$0xff]
      %v345 = vld [vmem:[%s299 + $0xe0] sm:$0xff]
      %v346 = vld [vmem:[%s299 + $0xe8] sm:$0xff]
      %v347 = vld [vmem:[%s299 + $0xf0] sm:$0xff]
      %v348 = vld [vmem:[%s299 + $0xf8] sm:$0xff]
      %349 = vset.pattern.permute.xlu0 0
      %350 = vperm.xlu0 %349, %v317
      %v351 = vpop.permute.xlu0 %350
      %352 = vset.pattern.permute.xlu0 0
      %353 = vperm.xlu0 %352, %v318
      %v354 = vpop.permute.xlu0 %353
      %355 = vset.pattern.permute.xlu0 0
      %356 = vperm.xlu0 %355, %v319
      %v357 = vpop.permute.xlu0 %356
      %358 = vset.pattern.permute.xlu0 0
      %359 = vperm.xlu0 %358, %v320
      %v360 = vpop.permute.xlu0 %359
      %361 = vset.pattern.permute.xlu0 0
      %362 = vperm.xlu0 %361, %v321
      %v363 = vpop.permute.xlu0 %362
      %364 = vset.pattern.permute.xlu0 0
      %365 = vperm.xlu0 %364, %v322
      %v366 = vpop.permute.xlu0 %365
      %367 = vset.pattern.permute.xlu0 0
      %368 = vperm.xlu0 %367, %v323
      %v369 = vpop.permute.xlu0 %368
      %370 = vset.pattern.permute.xlu0 0
      %371 = vperm.xlu0 %370, %v324
      %v372 = vpop.permute.xlu0 %371
      %373 = vset.pattern.permute.xlu0 0
      %374 = vperm.xlu0 %373, %v325
      %v375 = vpop.permute.xlu0 %374
      %376 = vset.pattern.permute.xlu0 0
      %377 = vperm.xlu0 %376, %v326
      %v378 = vpop.permute.xlu0 %377
      %379 = vset.pattern.permute.xlu0 0
      %380 = vperm.xlu0 %379, %v327
      %v381 = vpop.permute.xlu0 %380
      %382 = vset.pattern.permute.xlu0 0
      %383 = vperm.xlu0 %382, %v328
      %v384 = vpop.permute.xlu0 %383
      %385 = vset.pattern.permute.xlu0 0
      %386 = vperm.xlu0 %385, %v329
      %v387 = vpop.permute.xlu0 %386
      %388 = vset.pattern.permute.xlu0 0
      %389 = vperm.xlu0 %388, %v330
      %v390 = vpop.permute.xlu0 %389
      %391 = vset.pattern.permute.xlu0 0
      %392 = vperm.xlu0 %391, %v331
      %v393 = vpop.permute.xlu0 %392
      %394 = vset.pattern.permute.xlu0 0
      %395 = vperm.xlu0 %394, %v332
      %v396 = vpop.permute.xlu0 %395
      %397 = vset.pattern.permute.xlu0 0
      %398 = vperm.xlu0 %397, %v333
      %v399 = vpop.permute.xlu0 %398
      %400 = vset.pattern.permute.xlu0 0
      %401 = vperm.xlu0 %400, %v334
      %v402 = vpop.permute.xlu0 %401
      %403 = vset.pattern.permute.xlu0 0
      %404 = vperm.xlu0 %403, %v335
      %v405 = vpop.permute.xlu0 %404
      %406 = vset.pattern.permute.xlu0 0
      %407 = vperm.xlu0 %406, %v336
      %v408 = vpop.permute.xlu0 %407
      %409 = vset.pattern.permute.xlu0 0
      %410 = vperm.xlu0 %409, %v337
      %v411 = vpop.permute.xlu0 %410
      %412 = vset.pattern.permute.xlu0 0
      %413 = vperm.xlu0 %412, %v338
      %v414 = vpop.permute.xlu0 %413
      %415 = vset.pattern.permute.xlu0 0
      %416 = vperm.xlu0 %415, %v339
      %v417 = vpop.permute.xlu0 %416
      %418 = vset.pattern.permute.xlu0 0
      %419 = vperm.xlu0 %418, %v340
      %v420 = vpop.permute.xlu0 %419
      %421 = vset.pattern.permute.xlu0 0
      %422 = vperm.xlu0 %421, %v341
      %v423 = vpop.permute.xlu0 %422
      %424 = vset.pattern.permute.xlu0 0
      %425 = vperm.xlu0 %424, %v342
      %v426 = vpop.permute.xlu0 %425
      %427 = vset.pattern.permute.xlu0 0
      %428 = vperm.xlu0 %427, %v343
      %v429 = vpop.permute.xlu0 %428
      %430 = vset.pattern.permute.xlu0 0
      %431 = vperm.xlu0 %430, %v344
      %v432 = vpop.permute.xlu0 %431
      %433 = vset.pattern.permute.xlu0 0
      %434 = vperm.xlu0 %433, %v345
      %v435 = vpop.permute.xlu0 %434
      %436 = vset.pattern.permute.xlu0 0
      %437 = vperm.xlu0 %436, %v346
      %v438 = vpop.permute.xlu0 %437
      %439 = vset.pattern.permute.xlu0 0
      %440 = vperm.xlu0 %439, %v347
      %v441 = vpop.permute.xlu0 %440
      %442 = vset.pattern.permute.xlu0 0
      %443 = vperm.xlu0 %442, %v348
      %v444 = vpop.permute.xlu0 %443
      %vm445 = vcmp.eq.s32.totalorder %v315, %v351
      %vm446 = vcmp.eq.s32.totalorder %v316, %v351
      %vm447 = vcmp.eq.s32.totalorder %v315, %v354
      %vm448 = vcmp.eq.s32.totalorder %v316, %v354
      %vm449 = vcmp.eq.s32.totalorder %v315, %v357
      %vm450 = vcmp.eq.s32.totalorder %v316, %v357
      %vm451 = vcmp.eq.s32.totalorder %v315, %v360
      %vm452 = vcmp.eq.s32.totalorder %v316, %v360
      %vm453 = vcmp.eq.s32.totalorder %v315, %v363
      %vm454 = vcmp.eq.s32.totalorder %v316, %v363
      %vm455 = vcmp.eq.s32.totalorder %v315, %v366
      %vm456 = vcmp.eq.s32.totalorder %v316, %v366
      %vm457 = vcmp.eq.s32.totalorder %v315, %v369
      %vm458 = vcmp.eq.s32.totalorder %v316, %v369
      %vm459 = vcmp.eq.s32.totalorder %v315, %v372
      %vm460 = vcmp.eq.s32.totalorder %v316, %v372
      %vm461 = vcmp.eq.s32.totalorder %v315, %v375
      %vm462 = vcmp.eq.s32.totalorder %v316, %v375
      %vm463 = vcmp.eq.s32.totalorder %v315, %v378
      %vm464 = vcmp.eq.s32.totalorder %v316, %v378
      %vm465 = vcmp.eq.s32.totalorder %v315, %v381
      %vm466 = vcmp.eq.s32.totalorder %v316, %v381
      %vm467 = vcmp.eq.s32.totalorder %v315, %v384
      %vm468 = vcmp.eq.s32.totalorder %v316, %v384
      %vm469 = vcmp.eq.s32.totalorder %v315, %v387
      %vm470 = vcmp.eq.s32.totalorder %v316, %v387
      %vm471 = vcmp.eq.s32.totalorder %v315, %v390
      %vm472 = vcmp.eq.s32.totalorder %v316, %v390
      %vm473 = vcmp.eq.s32.totalorder %v315, %v393
      %vm474 = vcmp.eq.s32.totalorder %v316, %v393
      %vm475 = vcmp.eq.s32.totalorder %v315, %v396
      %vm476 = vcmp.eq.s32.totalorder %v316, %v396
      %vm477 = vcmp.eq.s32.totalorder %v315, %v399
      %vm478 = vcmp.eq.s32.totalorder %v316, %v399
      %vm479 = vcmp.eq.s32.totalorder %v315, %v402
      %vm480 = vcmp.eq.s32.totalorder %v316, %v402
      %vm481 = vcmp.eq.s32.totalorder %v315, %v405
      %vm482 = vcmp.eq.s32.totalorder %v316, %v405
      %vm483 = vcmp.eq.s32.totalorder %v315, %v408
      %vm484 = vcmp.eq.s32.totalorder %v316, %v408
      %vm485 = vcmp.eq.s32.totalorder %v315, %v411
      %vm486 = vcmp.eq.s32.totalorder %v316, %v411
      %vm487 = vcmp.eq.s32.totalorder %v315, %v414
      %vm488 = vcmp.eq.s32.totalorder %v316, %v414
      %vm489 = vcmp.eq.s32.totalorder %v315, %v417
      %vm490 = vcmp.eq.s32.totalorder %v316, %v417
      %vm491 = vcmp.eq.s32.totalorder %v315, %v420
      %vm492 = vcmp.eq.s32.totalorder %v316, %v420
      %vm493 = vcmp.eq.s32.totalorder %v315, %v423
      %vm494 = vcmp.eq.s32.totalorder %v316, %v423
      %vm495 = vcmp.eq.s32.totalorder %v315, %v426
      %vm496 = vcmp.eq.s32.totalorder %v316, %v426
      %vm497 = vcmp.eq.s32.totalorder %v315, %v429
      %vm498 = vcmp.eq.s32.totalorder %v316, %v429
      %vm499 = vcmp.eq.s32.totalorder %v315, %v432
      %vm500 = vcmp.eq.s32.totalorder %v316, %v432
      %vm501 = vcmp.eq.s32.totalorder %v315, %v435
      %vm502 = vcmp.eq.s32.totalorder %v316, %v435
      %vm503 = vcmp.eq.s32.totalorder %v315, %v438
      %vm504 = vcmp.eq.s32.totalorder %v316, %v438
      %vm505 = vcmp.eq.s32.totalorder %v315, %v441
      %vm506 = vcmp.eq.s32.totalorder %v316, %v441
      %vm507 = vcmp.eq.s32.totalorder %v315, %v444
      %vm508 = vcmp.eq.s32.totalorder %v316, %v444
      %v509 = vsel %vm445, 1, 0
      %v510 = vsel %vm446, 1, 0
      %v511 = vsel %vm447, 1, 0
      %v512 = vsel %vm448, 1, 0
      %v513 = vsel %vm449, 1, 0
      %v514 = vsel %vm450, 1, 0
      %v515 = vsel %vm451, 1, 0
      %v516 = vsel %vm452, 1, 0
      %v517 = vsel %vm453, 1, 0
      %v518 = vsel %vm454, 1, 0
      %v519 = vsel %vm455, 1, 0
      %v520 = vsel %vm456, 1, 0
      %v521 = vsel %vm457, 1, 0
      %v522 = vsel %vm458, 1, 0
      %v523 = vsel %vm459, 1, 0
      %v524 = vsel %vm460, 1, 0
      %v525 = vsel %vm461, 1, 0
      %v526 = vsel %vm462, 1, 0
      %v527 = vsel %vm463, 1, 0
      %v528 = vsel %vm464, 1, 0
      %v529 = vsel %vm465, 1, 0
      %v530 = vsel %vm466, 1, 0
      %v531 = vsel %vm467, 1, 0
      %v532 = vsel %vm468, 1, 0
      %v533 = vsel %vm469, 1, 0
      %v534 = vsel %vm470, 1, 0
      %v535 = vsel %vm471, 1, 0
      %v536 = vsel %vm472, 1, 0
      %v537 = vsel %vm473, 1, 0
      %v538 = vsel %vm474, 1, 0
      %v539 = vsel %vm475, 1, 0
      %v540 = vsel %vm476, 1, 0
      %v541 = vsel %vm477, 1, 0
      %v542 = vsel %vm478, 1, 0
      %v543 = vsel %vm479, 1, 0
      %v544 = vsel %vm480, 1, 0
      %v545 = vsel %vm481, 1, 0
      %v546 = vsel %vm482, 1, 0
      %v547 = vsel %vm483, 1, 0
      %v548 = vsel %vm484, 1, 0
      %v549 = vsel %vm485, 1, 0
      %v550 = vsel %vm486, 1, 0
      %v551 = vsel %vm487, 1, 0
      %v552 = vsel %vm488, 1, 0
      %v553 = vsel %vm489, 1, 0
      %v554 = vsel %vm490, 1, 0
      %v555 = vsel %vm491, 1, 0
      %v556 = vsel %vm492, 1, 0
      %v557 = vsel %vm493, 1, 0
      %v558 = vsel %vm494, 1, 0
      %v559 = vsel %vm495, 1, 0
      %v560 = vsel %vm496, 1, 0
      %v561 = vsel %vm497, 1, 0
      %v562 = vsel %vm498, 1, 0
      %v563 = vsel %vm499, 1, 0
      %v564 = vsel %vm500, 1, 0
      %v565 = vsel %vm501, 1, 0
      %v566 = vsel %vm502, 1, 0
      %v567 = vsel %vm503, 1, 0
      %v568 = vsel %vm504, 1, 0
      %v569 = vsel %vm505, 1, 0
      %v570 = vsel %vm506, 1, 0
      %v571 = vsel %vm507, 1, 0
      %v572 = vsel %vm508, 1, 0
      %v573 = vcvt.s32.f32 %v509
      %v574 = vcvt.s32.f32 %v510
      %v575 = vcvt.s32.f32 %v511
      %v576 = vcvt.s32.f32 %v512
      %v577 = vcvt.s32.f32 %v513
      %v578 = vcvt.s32.f32 %v514
      %v579 = vcvt.s32.f32 %v515
      %v580 = vcvt.s32.f32 %v516
      %v581 = vcvt.s32.f32 %v517
      %v582 = vcvt.s32.f32 %v518
      %v583 = vcvt.s32.f32 %v519
      %v584 = vcvt.s32.f32 %v520
      %v585 = vcvt.s32.f32 %v521
      %v586 = vcvt.s32.f32 %v522
      %v587 = vcvt.s32.f32 %v523
      %v588 = vcvt.s32.f32 %v524
      %v589 = vcvt.s32.f32 %v525
      %v590 = vcvt.s32.f32 %v526
      %v591 = vcvt.s32.f32 %v527
      %v592 = vcvt.s32.f32 %v528
      %v593 = vcvt.s32.f32 %v529
      %v594 = vcvt.s32.f32 %v530
      %v595 = vcvt.s32.f32 %v531
      %v596 = vcvt.s32.f32 %v532
      %v597 = vcvt.s32.f32 %v533
      %v598 = vcvt.s32.f32 %v534
      %v599 = vcvt.s32.f32 %v535
      %v600 = vcvt.s32.f32 %v536
      %v601 = vcvt.s32.f32 %v537
      %v602 = vcvt.s32.f32 %v538
      %v603 = vcvt.s32.f32 %v539
      %v604 = vcvt.s32.f32 %v540
      %v605 = vcvt.s32.f32 %v541
      %v606 = vcvt.s32.f32 %v542
      %v607 = vcvt.s32.f32 %v543
      %v608 = vcvt.s32.f32 %v544
      %v609 = vcvt.s32.f32 %v545
      %v610 = vcvt.s32.f32 %v546
      %v611 = vcvt.s32.f32 %v547
      %v612 = vcvt.s32.f32 %v548
      %v613 = vcvt.s32.f32 %v549
      %v614 = vcvt.s32.f32 %v550
      %v615 = vcvt.s32.f32 %v551
      %v616 = vcvt.s32.f32 %v552
      %v617 = vcvt.s32.f32 %v553
      %v618 = vcvt.s32.f32 %v554
      %v619 = vcvt.s32.f32 %v555
      %v620 = vcvt.s32.f32 %v556
      %v621 = vcvt.s32.f32 %v557
      %v622 = vcvt.s32.f32 %v558
      %v623 = vcvt.s32.f32 %v559
      %v624 = vcvt.s32.f32 %v560
      %v625 = vcvt.s32.f32 %v561
      %v626 = vcvt.s32.f32 %v562
      %v627 = vcvt.s32.f32 %v563
      %v628 = vcvt.s32.f32 %v564
      %v629 = vcvt.s32.f32 %v565
      %v630 = vcvt.s32.f32 %v566
      %v631 = vcvt.s32.f32 %v567
      %v632 = vcvt.s32.f32 %v568
      %v633 = vcvt.s32.f32 %v569
      %v634 = vcvt.s32.f32 %v570
      %v635 = vcvt.s32.f32 %v571
      %v636 = vcvt.s32.f32 %v572
      %v637 = vpack.c.bf16 %v575, %v573
      %v638 = vpack.c.bf16 %v576, %v574
      %v639 = vpack.c.bf16 %v579, %v577
      %v640 = vpack.c.bf16 %v580, %v578
      %v641 = vpack.c.bf16 %v583, %v581
      %v642 = vpack.c.bf16 %v584, %v582
      %v643 = vpack.c.bf16 %v587, %v585
      %v644 = vpack.c.bf16 %v588, %v586
      %v645 = vpack.c.bf16 %v591, %v589
      %v646 = vpack.c.bf16 %v592, %v590
      %v647 = vpack.c.bf16 %v595, %v593
      %v648 = vpack.c.bf16 %v596, %v594
      %v649 = vpack.c.bf16 %v599, %v597
      %v650 = vpack.c.bf16 %v600, %v598
      %v651 = vpack.c.bf16 %v603, %v601
      %v652 = vpack.c.bf16 %v604, %v602
      %v653 = vpack.c.bf16 %v607, %v605
      %v654 = vpack.c.bf16 %v608, %v606
      %v655 = vpack.c.bf16 %v611, %v609
      %v656 = vpack.c.bf16 %v612, %v610
      %v657 = vpack.c.bf16 %v615, %v613
      %v658 = vpack.c.bf16 %v616, %v614
      %v659 = vpack.c.bf16 %v619, %v617
      %v660 = vpack.c.bf16 %v620, %v618
      %v661 = vpack.c.bf16 %v623, %v621
      %v662 = vpack.c.bf16 %v624, %v622
      %v663 = vpack.c.bf16 %v627, %v625
      %v664 = vpack.c.bf16 %v628, %v626
      %v665 = vpack.c.bf16 %v631, %v629
      %v666 = vpack.c.bf16 %v632, %v630
      %v667 = vpack.c.bf16 %v635, %v633
      %v668 = vpack.c.bf16 %v636, %v634
      %v669 = vld [vmem:[%s2] sm:$0xf]
      %v670 = vld [vmem:[%s2 + $0x4] sm:$0xf]
      %v671 = vld [vmem:[%s2 + $0x8] sm:$0xf]
      %v672 = vld [vmem:[%s2 + $0xc] sm:$0xf]
      %v673 = vld [vmem:[%s2 + $0x10] sm:$0xf]
      %v674 = vld [vmem:[%s2 + $0x14] sm:$0xf]
      %v675 = vld [vmem:[%s2 + $0x18] sm:$0xf]
      %v676 = vld [vmem:[%s2 + $0x1c] sm:$0xf]
      %v677 = vld [vmem:[%s2 + $0x20] sm:$0xf]
      %v678 = vld [vmem:[%s2 + $0x24] sm:$0xf]
      %v679 = vld [vmem:[%s2 + $0x28] sm:$0xf]
      %v680 = vld [vmem:[%s2 + $0x2c] sm:$0xf]
      %v681 = vld [vmem:[%s2 + $0x30] sm:$0xf]
      %v682 = vld [vmem:[%s2 + $0x34] sm:$0xf]
      %v683 = vld [vmem:[%s2 + $0x38] sm:$0xf]
      %v684 = vld [vmem:[%s2 + $0x3c] sm:$0xf]
      %v685 = vld [vmem:[%s2 + $0x40] sm:$0xf]
      %v686 = vld [vmem:[%s2 + $0x44] sm:$0xf]
      %v687 = vld [vmem:[%s2 + $0x48] sm:$0xf]
      %v688 = vld [vmem:[%s2 + $0x4c] sm:$0xf]
      %v689 = vld [vmem:[%s2 + $0x50] sm:$0xf]
      %v690 = vld [vmem:[%s2 + $0x54] sm:$0xf]
      %v691 = vld [vmem:[%s2 + $0x58] sm:$0xf]
      %v692 = vld [vmem:[%s2 + $0x5c] sm:$0xf]
      %v693 = vld [vmem:[%s2 + $0x60] sm:$0xf]
      %v694 = vld [vmem:[%s2 + $0x64] sm:$0xf]
      %v695 = vld [vmem:[%s2 + $0x68] sm:$0xf]
      %v696 = vld [vmem:[%s2 + $0x6c] sm:$0xf]
      %v697 = vld [vmem:[%s2 + $0x70] sm:$0xf]
      %v698 = vld [vmem:[%s2 + $0x74] sm:$0xf]
      %v699 = vld [vmem:[%s2 + $0x78] sm:$0xf]
      %v700 = vld [vmem:[%s2 + $0x7c] sm:$0xf]
      %v701 = vld [vmem:[%s305] sm:$0x1]
      %v702 = vunpack.c.l.bf16 %v701
      %v703 = vlaneseq
      %v704 = vshrl.u32 %v703, 7
      %v705 = vsub.s32 0, %v704
      %v706 = vrot.slane %v702, %v705
      %v739 = vunpack.c.l.b16 %v669
      %v740 = vunpack.c.l.b16 %v670
      %v741 = vunpack.c.l.b16 %v671
      %v742 = vunpack.c.l.b16 %v672
      %v743 = vunpack.c.l.b16 %v673
      %v744 = vunpack.c.l.b16 %v674
      %v745 = vunpack.c.l.b16 %v675
      %v746 = vunpack.c.l.b16 %v676
      %v747 = vunpack.c.l.b16 %v677
      %v748 = vunpack.c.l.b16 %v678
      %v749 = vunpack.c.l.b16 %v679
      %v750 = vunpack.c.l.b16 %v680
      %v751 = vunpack.c.l.b16 %v681
      %v752 = vunpack.c.l.b16 %v682
      %v753 = vunpack.c.l.b16 %v683
      %v754 = vunpack.c.l.b16 %v684
      %v755 = vunpack.c.l.b16 %v685
      %v756 = vunpack.c.l.b16 %v686
      %v757 = vunpack.c.l.b16 %v687
      %v758 = vunpack.c.l.b16 %v688
      %v759 = vunpack.c.l.b16 %v689
      %v760 = vunpack.c.l.b16 %v690
      %v761 = vunpack.c.l.b16 %v691
      %v762 = vunpack.c.l.b16 %v692
      %v763 = vunpack.c.l.b16 %v693
      %v764 = vunpack.c.l.b16 %v694
      %v765 = vunpack.c.l.b16 %v695
      %v766 = vunpack.c.l.b16 %v696
      %v767 = vunpack.c.l.b16 %v697
      %v768 = vunpack.c.l.b16 %v698
      %v769 = vunpack.c.l.b16 %v699
      %v770 = vunpack.c.l.b16 %v700
      %v771 = vpack.c.b16 %v740, %v739
      %v772 = vpack.c.b16 %v742, %v741
      %v773 = vpack.c.b16 %v744, %v743
      %v774 = vpack.c.b16 %v746, %v745
      %v775 = vpack.c.b16 %v748, %v747
      %v776 = vpack.c.b16 %v750, %v749
      %v777 = vpack.c.b16 %v752, %v751
      %v778 = vpack.c.b16 %v754, %v753
      %v779 = vpack.c.b16 %v756, %v755
      %v780 = vpack.c.b16 %v758, %v757
      %v781 = vpack.c.b16 %v760, %v759
      %v782 = vpack.c.b16 %v762, %v761
      %v783 = vpack.c.b16 %v764, %v763
      %v784 = vpack.c.b16 %v766, %v765
      %v785 = vpack.c.b16 %v768, %v767
      %v786 = vpack.c.b16 %v770, %v769
      %803 = vmatprep.subr.bf16.mxu0 0
      %804 = vmatpush1.bf16.msra.mxu0 %v771
      %805 = vmatprep.subr.bf16.mxu0 0
      %806 = vmatpush1.bf16.msra.mxu0 %v772
      %807 = vmatprep.subr.bf16.mxu0 0
      %808 = vmatpush1.bf16.msra.mxu0 %v773
      %809 = vmatprep.subr.bf16.mxu0 0
      %810 = vmatpush1.bf16.msra.mxu0 %v774
      %811 = vmatprep.subr.bf16.mxu0 0
      %812 = vmatpush1.bf16.msra.mxu0 %v775
      %813 = vmatprep.subr.bf16.mxu0 0
      %814 = vmatpush1.bf16.msra.mxu0 %v776
      %815 = vmatprep.subr.bf16.mxu0 0
      %816 = vmatpush1.bf16.msra.mxu0 %v777
      %817 = vmatprep.subr.bf16.mxu0 0
      %818 = vmatpush1.bf16.msra.mxu0 %v778
      %819 = vmatprep.subr.bf16.mxu0 0
      %820 = vmatpush1.bf16.msra.mxu0 %v779
      %821 = vmatprep.subr.bf16.mxu0 0
      %822 = vmatpush1.bf16.msra.mxu0 %v780
      %823 = vmatprep.subr.bf16.mxu0 0
      %824 = vmatpush1.bf16.msra.mxu0 %v781
      %825 = vmatprep.subr.bf16.mxu0 0
      %826 = vmatpush1.bf16.msra.mxu0 %v782
      %827 = vmatprep.subr.bf16.mxu0 0
      %828 = vmatpush1.bf16.msra.mxu0 %v783
      %829 = vmatprep.subr.bf16.mxu0 0
      %830 = vmatpush1.bf16.msra.mxu0 %v784
      %831 = vmatprep.subr.bf16.mxu0 0
      %832 = vmatpush1.bf16.msra.mxu0 %v785
      %833 = vmatprep.subr.bf16.mxu0 0
      %834 = vmatpush1.bf16.msra.mxu0 %v786
      %835 = vmatprep.mubr.bf16.mxu0 %v638
      %836 = vmatmul.mubr.bf16.gmra.mrb[0].mxu0 %v637
      %v837 = vpop.f32.mrb[0].mxu0
      %v838 = vadd.f32 %v706, %v837
      %v839 = vpop.f32.mrb[0].mxu0
      %v840 = vpop.f32.mrb[0].mxu0
      %v841 = vadd.f32 %v706, %v840
      %v842 = vpop.f32.mrb[0].mxu0
      %843 = vmatprep.mubr.bf16.mxu0 %v640
      %844 = vmatmul.mubr.bf16.gmra.mrb[0].mxu0 %v639
      %v845 = vpop.f32.mrb[0].mxu0
      %v846 = vadd.f32 %v706, %v845
      %v847 = vpop.f32.mrb[0].mxu0
      %v848 = vpop.f32.mrb[0].mxu0
      %v849 = vadd.f32 %v706, %v848
      %v850 = vpop.f32.mrb[0].mxu0
      %851 = vmatprep.mubr.bf16.mxu0 %v642
      %852 = vmatmul.mubr.bf16.gmra.mrb[0].mxu0 %v641
      %v853 = vpop.f32.mrb[0].mxu0
      %v854 = vadd.f32 %v706, %v853
      %v855 = vpop.f32.mrb[0].mxu0
      %v856 = vpop.f32.mrb[0].mxu0
      %v857 = vadd.f32 %v706, %v856
      %v858 = vpop.f32.mrb[0].mxu0
      %859 = vmatprep.mubr.bf16.mxu0 %v644
      %860 = vmatmul.mubr.bf16.gmra.mrb[0].mxu0 %v643
      %v861 = vpop.f32.mrb[0].mxu0
      %v862 = vadd.f32 %v706, %v861
      %v863 = vpop.f32.mrb[0].mxu0
      %v864 = vpop.f32.mrb[0].mxu0
      %v865 = vadd.f32 %v706, %v864
      %v866 = vpop.f32.mrb[0].mxu0
      %867 = vmatprep.mubr.bf16.mxu0 %v646
      %868 = vmatmul.mubr.bf16.gmra.mrb[0].mxu0 %v645
      %v869 = vpop.f32.mrb[0].mxu0
      %v870 = vadd.f32 %v706, %v869
      %v871 = vpop.f32.mrb[0].mxu0
      %v872 = vpop.f32.mrb[0].mxu0
      %v873 = vadd.f32 %v706, %v872
      %v874 = vpop.f32.mrb[0].mxu0
      %875 = vmatprep.mubr.bf16.mxu0 %v648
      %876 = vmatmul.mubr.bf16.gmra.mrb[0].mxu0 %v647
      %v877 = vpop.f32.mrb[0].mxu0
      %v878 = vadd.f32 %v706, %v877
      %v879 = vpop.f32.mrb[0].mxu0
      %v880 = vpop.f32.mrb[0].mxu0
      %v881 = vadd.f32 %v706, %v880
      %v882 = vpop.f32.mrb[0].mxu0
      %883 = vmatprep.mubr.bf16.mxu0 %v650
      %884 = vmatmul.mubr.bf16.gmra.mrb[0].mxu0 %v649
      %v885 = vpop.f32.mrb[0].mxu0
      %v886 = vadd.f32 %v706, %v885
      %v887 = vpop.f32.mrb[0].mxu0
      %v888 = vpop.f32.mrb[0].mxu0
      %v889 = vadd.f32 %v706, %v888
      %v890 = vpop.f32.mrb[0].mxu0
      %891 = vmatprep.mubr.bf16.mxu0 %v652
      %892 = vmatmul.mubr.bf16.gmra.mrb[0].mxu0 %v651
      %v893 = vpop.f32.mrb[0].mxu0
      %v894 = vadd.f32 %v706, %v893
      %v895 = vpop.f32.mrb[0].mxu0
      %v896 = vpop.f32.mrb[0].mxu0
      %v897 = vadd.f32 %v706, %v896
      %v898 = vpop.f32.mrb[0].mxu0
      %899 = vmatprep.mubr.bf16.mxu0 %v654
      %900 = vmatmul.mubr.bf16.gmra.mrb[0].mxu0 %v653
      %v901 = vpop.f32.mrb[0].mxu0
      %v902 = vadd.f32 %v706, %v901
      %v903 = vpop.f32.mrb[0].mxu0
      %v904 = vpop.f32.mrb[0].mxu0
      %v905 = vadd.f32 %v706, %v904
      %v906 = vpop.f32.mrb[0].mxu0
      %907 = vmatprep.mubr.bf16.mxu0 %v656
      %908 = vmatmul.mubr.bf16.gmra.mrb[0].mxu0 %v655
      %v909 = vpop.f32.mrb[0].mxu0
      %v910 = vadd.f32 %v706, %v909
      %v911 = vpop.f32.mrb[0].mxu0
      %v912 = vpop.f32.mrb[0].mxu0
      %v913 = vadd.f32 %v706, %v912
      %v914 = vpop.f32.mrb[0].mxu0
      %915 = vmatprep.mubr.bf16.mxu0 %v658
      %916 = vmatmul.mubr.bf16.gmra.mrb[0].mxu0 %v657
      %v917 = vpop.f32.mrb[0].mxu0
      %v918 = vadd.f32 %v706, %v917
      %v919 = vpop.f32.mrb[0].mxu0
      %v920 = vpop.f32.mrb[0].mxu0
      %v921 = vadd.f32 %v706, %v920
      %v922 = vpop.f32.mrb[0].mxu0
      %923 = vmatprep.mubr.bf16.mxu0 %v660
      %924 = vmatmul.mubr.bf16.gmra.mrb[0].mxu0 %v659
      %v925 = vpop.f32.mrb[0].mxu0
      %v926 = vadd.f32 %v706, %v925
      %v927 = vpop.f32.mrb[0].mxu0
      %v928 = vpop.f32.mrb[0].mxu0
      %v929 = vadd.f32 %v706, %v928
      %v930 = vpop.f32.mrb[0].mxu0
      %931 = vmatprep.mubr.bf16.mxu0 %v662
      %932 = vmatmul.mubr.bf16.gmra.mrb[0].mxu0 %v661
      %v933 = vpop.f32.mrb[0].mxu0
      %v934 = vadd.f32 %v706, %v933
      %v935 = vpop.f32.mrb[0].mxu0
      %v936 = vpop.f32.mrb[0].mxu0
      %v937 = vadd.f32 %v706, %v936
      %v938 = vpop.f32.mrb[0].mxu0
      %939 = vmatprep.mubr.bf16.mxu0 %v664
      %940 = vmatmul.mubr.bf16.gmra.mrb[0].mxu0 %v663
      %v941 = vpop.f32.mrb[0].mxu0
      %v942 = vadd.f32 %v706, %v941
      %v943 = vpop.f32.mrb[0].mxu0
      %v944 = vpop.f32.mrb[0].mxu0
      %v945 = vadd.f32 %v706, %v944
      %v946 = vpop.f32.mrb[0].mxu0
      %947 = vmatprep.mubr.bf16.mxu0 %v666
      %948 = vmatmul.mubr.bf16.gmra.mrb[0].mxu0 %v665
      %v949 = vpop.f32.mrb[0].mxu0
      %v950 = vadd.f32 %v706, %v949
      %v951 = vpop.f32.mrb[0].mxu0
      %v952 = vpop.f32.mrb[0].mxu0
      %v953 = vadd.f32 %v706, %v952
      %v954 = vpop.f32.mrb[0].mxu0
      %955 = vmatprep.mubr.bf16.mxu0 %v668
      %956 = vmatmul.mubr.bf16.gmra.mrb[0].mxu0 %v667
      %v957 = vpop.f32.mrb[0].mxu0
      %v958 = vadd.f32 %v706, %v957
      %v959 = vpop.f32.mrb[0].mxu0
      %v960 = vpop.f32.mrb[0].mxu0
      %v961 = vadd.f32 %v706, %v960
      %v962 = vpop.f32.mrb[0].mxu0
      %963 = vdwg.mxu0
      %v964 = vpack.c.bf16 %v841, %v838
      %v965 = vpack.c.bf16 %v849, %v846
      %v966 = vpack.c.bf16 %v857, %v854
      %v967 = vpack.c.bf16 %v865, %v862
      %v968 = vpack.c.bf16 %v873, %v870
      %v969 = vpack.c.bf16 %v881, %v878
      %v970 = vpack.c.bf16 %v889, %v886
      %v971 = vpack.c.bf16 %v897, %v894
      %v972 = vpack.c.bf16 %v905, %v902
      %v973 = vpack.c.bf16 %v913, %v910
      %v974 = vpack.c.bf16 %v921, %v918
      %v975 = vpack.c.bf16 %v929, %v926
      %v976 = vpack.c.bf16 %v937, %v934
      %v977 = vpack.c.bf16 %v945, %v942
      %v978 = vpack.c.bf16 %v953, %v950
      %v979 = vpack.c.bf16 %v961, %v958
      %v980 = vld [vmem:[%s4] sm:$0xff]
      %v981 = vld [vmem:[%s4 + $0x8] sm:$0xff]
      %v982 = vld [vmem:[%s4 + $0x10] sm:$0xff]
      %v983 = vld [vmem:[%s4 + $0x18] sm:$0xff]
      %v984 = vld [vmem:[%s4 + $0x20] sm:$0xff]
      %v985 = vld [vmem:[%s4 + $0x28] sm:$0xff]
      %v986 = vld [vmem:[%s4 + $0x30] sm:$0xff]
      %v987 = vld [vmem:[%s4 + $0x38] sm:$0xff]
      %v988 = vld [vmem:[%s4 + $0x40] sm:$0xff]
      %v989 = vld [vmem:[%s4 + $0x48] sm:$0xff]
      %v990 = vld [vmem:[%s4 + $0x50] sm:$0xff]
      %v991 = vld [vmem:[%s4 + $0x58] sm:$0xff]
      %v992 = vld [vmem:[%s4 + $0x60] sm:$0xff]
      %v993 = vld [vmem:[%s4 + $0x68] sm:$0xff]
      %v994 = vld [vmem:[%s4 + $0x70] sm:$0xff]
      %v995 = vld [vmem:[%s4 + $0x78] sm:$0xff]
      %v996 = vld [vmem:[%s5] sm:$0x3]
      %v998 = vlaneseq
      %v999 = vshrl.u32 %v998, 7
      %v1000 = vsub.s32 0, %v999
      %v1001 = vrot.slane %v996, %v1000
      %v1002 = vlaneseq
      %v1003 = vshrl.u32 %v1002, 7
      %v1004 = vsub.s32 1, %v1003
      %v1005 = vrot.slane %v996, %v1004
      %v1024 = vunpack.c.l.b16 %v980
      %v1025 = vunpack.c.h.b16 %v980
      %v1026 = vunpack.c.l.b16 %v981
      %v1027 = vunpack.c.h.b16 %v981
      %v1028 = vunpack.c.l.b16 %v982
      %v1029 = vunpack.c.h.b16 %v982
      %v1030 = vunpack.c.l.b16 %v983
      %v1031 = vunpack.c.h.b16 %v983
      %v1032 = vunpack.c.l.b16 %v984
      %v1033 = vunpack.c.h.b16 %v984
      %v1034 = vunpack.c.l.b16 %v985
      %v1035 = vunpack.c.h.b16 %v985
      %v1036 = vunpack.c.l.b16 %v986
      %v1037 = vunpack.c.h.b16 %v986
      %v1038 = vunpack.c.l.b16 %v987
      %v1039 = vunpack.c.h.b16 %v987
      %v1040 = vunpack.c.l.b16 %v988
      %v1041 = vunpack.c.h.b16 %v988
      %v1042 = vunpack.c.l.b16 %v989
      %v1043 = vunpack.c.h.b16 %v989
      %v1044 = vunpack.c.l.b16 %v990
      %v1045 = vunpack.c.h.b16 %v990
      %v1046 = vunpack.c.l.b16 %v991
      %v1047 = vunpack.c.h.b16 %v991
      %v1048 = vunpack.c.l.b16 %v992
      %v1049 = vunpack.c.h.b16 %v992
      %v1050 = vunpack.c.l.b16 %v993
      %v1051 = vunpack.c.h.b16 %v993
      %v1052 = vunpack.c.l.b16 %v994
      %v1053 = vunpack.c.h.b16 %v994
      %v1054 = vunpack.c.l.b16 %v995
      %v1055 = vunpack.c.h.b16 %v995
      %v1056 = vpack.c.b16 %v1026, %v1024
      %v1057 = vpack.c.b16 %v1027, %v1025
      %v1058 = vpack.c.b16 %v1030, %v1028
      %v1059 = vpack.c.b16 %v1031, %v1029
      %v1060 = vpack.c.b16 %v1034, %v1032
      %v1061 = vpack.c.b16 %v1035, %v1033
      %v1062 = vpack.c.b16 %v1038, %v1036
      %v1063 = vpack.c.b16 %v1039, %v1037
      %v1064 = vpack.c.b16 %v1042, %v1040
      %v1065 = vpack.c.b16 %v1043, %v1041
      %v1066 = vpack.c.b16 %v1046, %v1044
      %v1067 = vpack.c.b16 %v1047, %v1045
      %v1068 = vpack.c.b16 %v1050, %v1048
      %v1069 = vpack.c.b16 %v1051, %v1049
      %v1070 = vpack.c.b16 %v1054, %v1052
      %v1071 = vpack.c.b16 %v1055, %v1053
      %1088 = vmatprep.subr.bf16.mxu0 %v1057
      %1089 = vmatpush1.bf16.msra.mxu0 %v1056
      %1090 = vmatprep.subr.bf16.mxu0 %v1059
      %1091 = vmatpush1.bf16.msra.mxu0 %v1058
      %1092 = vmatprep.subr.bf16.mxu0 %v1061
      %1093 = vmatpush1.bf16.msra.mxu0 %v1060
      %1094 = vmatprep.subr.bf16.mxu0 %v1063
      %1095 = vmatpush1.bf16.msra.mxu0 %v1062
      %1096 = vmatprep.subr.bf16.mxu0 %v1065
      %1097 = vmatpush1.bf16.msra.mxu0 %v1064
      %1098 = vmatprep.subr.bf16.mxu0 %v1067
      %1099 = vmatpush1.bf16.msra.mxu0 %v1066
      %1100 = vmatprep.subr.bf16.mxu0 %v1069
      %1101 = vmatpush1.bf16.msra.mxu0 %v1068
      %1102 = vmatprep.subr.bf16.mxu0 %v1071
      %1103 = vmatpush1.bf16.msra.mxu0 %v1070
      %1104 = vmatprep.subr.bf16.mxu0 0
      %1105 = vmatpush1.bf16.msra.mxu0 0
      %1106 = vmatprep.subr.bf16.mxu0 0
      %1107 = vmatpush1.bf16.msra.mxu0 0
      %1108 = vmatprep.subr.bf16.mxu0 0
      %1109 = vmatpush1.bf16.msra.mxu0 0
      %1110 = vmatprep.subr.bf16.mxu0 0
      %1111 = vmatpush1.bf16.msra.mxu0 0
      %1112 = vmatprep.subr.bf16.mxu0 0
      %1113 = vmatpush1.bf16.msra.mxu0 0
      %1114 = vmatprep.subr.bf16.mxu0 0
      %1115 = vmatpush1.bf16.msra.mxu0 0
      %1116 = vmatprep.subr.bf16.mxu0 0
      %1117 = vmatpush1.bf16.msra.mxu0 0
      %1118 = vmatprep.subr.bf16.mxu0 0
      %1119 = vmatpush1.bf16.msra.mxu0 0
      %1120 = vmatprep.mubr.bf16.mxu0 0
      %1121 = vmatmul.mubr.bf16.gmra.mrb[0].mxu0 %v964
      %v1122 = vpop.f32.mrb[0].mxu0
      %v1123 = vadd.f32 %v1001, %v1122
      %v1124 = vpop.f32.mrb[0].mxu0
      %v1125 = vadd.f32 %v1005, %v1124
      %v1126 = vpop.f32.mrb[0].mxu0
      %v1127 = vadd.f32 %v1001, %v1126
      %v1128 = vpop.f32.mrb[0].mxu0
      %v1129 = vadd.f32 %v1005, %v1128
      %1130 = vmatprep.mubr.bf16.mxu0 0
      %1131 = vmatmul.mubr.bf16.gmra.mrb[0].mxu0 %v965
      %v1132 = vpop.f32.mrb[0].mxu0
      %v1133 = vadd.f32 %v1001, %v1132
      %v1134 = vpop.f32.mrb[0].mxu0
      %v1135 = vadd.f32 %v1005, %v1134
      %v1136 = vpop.f32.mrb[0].mxu0
      %v1137 = vadd.f32 %v1001, %v1136
      %v1138 = vpop.f32.mrb[0].mxu0
      %v1139 = vadd.f32 %v1005, %v1138
      %1140 = vmatprep.mubr.bf16.mxu0 0
      %1141 = vmatmul.mubr.bf16.gmra.mrb[0].mxu0 %v966
      %v1142 = vpop.f32.mrb[0].mxu0
      %v1143 = vadd.f32 %v1001, %v1142
      %v1144 = vpop.f32.mrb[0].mxu0
      %v1145 = vadd.f32 %v1005, %v1144
      %v1146 = vpop.f32.mrb[0].mxu0
      %v1147 = vadd.f32 %v1001, %v1146
      %v1148 = vpop.f32.mrb[0].mxu0
      %v1149 = vadd.f32 %v1005, %v1148
      %1150 = vmatprep.mubr.bf16.mxu0 0
      %1151 = vmatmul.mubr.bf16.gmra.mrb[0].mxu0 %v967
      %v1152 = vpop.f32.mrb[0].mxu0
      %v1153 = vadd.f32 %v1001, %v1152
      %v1154 = vpop.f32.mrb[0].mxu0
      %v1155 = vadd.f32 %v1005, %v1154
      %v1156 = vpop.f32.mrb[0].mxu0
      %v1157 = vadd.f32 %v1001, %v1156
      %v1158 = vpop.f32.mrb[0].mxu0
      %v1159 = vadd.f32 %v1005, %v1158
      %1160 = vmatprep.mubr.bf16.mxu0 0
      %1161 = vmatmul.mubr.bf16.gmra.mrb[0].mxu0 %v968
      %v1162 = vpop.f32.mrb[0].mxu0
      %v1163 = vadd.f32 %v1001, %v1162
      %v1164 = vpop.f32.mrb[0].mxu0
      %v1165 = vadd.f32 %v1005, %v1164
      %v1166 = vpop.f32.mrb[0].mxu0
      %v1167 = vadd.f32 %v1001, %v1166
      %v1168 = vpop.f32.mrb[0].mxu0
      %v1169 = vadd.f32 %v1005, %v1168
      %1170 = vmatprep.mubr.bf16.mxu0 0
      %1171 = vmatmul.mubr.bf16.gmra.mrb[0].mxu0 %v969
      %v1172 = vpop.f32.mrb[0].mxu0
      %v1173 = vadd.f32 %v1001, %v1172
      %v1174 = vpop.f32.mrb[0].mxu0
      %v1175 = vadd.f32 %v1005, %v1174
      %v1176 = vpop.f32.mrb[0].mxu0
      %v1177 = vadd.f32 %v1001, %v1176
      %v1178 = vpop.f32.mrb[0].mxu0
      %v1179 = vadd.f32 %v1005, %v1178
      %1180 = vmatprep.mubr.bf16.mxu0 0
      %1181 = vmatmul.mubr.bf16.gmra.mrb[0].mxu0 %v970
      %v1182 = vpop.f32.mrb[0].mxu0
      %v1183 = vadd.f32 %v1001, %v1182
      %v1184 = vpop.f32.mrb[0].mxu0
      %v1185 = vadd.f32 %v1005, %v1184
      %v1186 = vpop.f32.mrb[0].mxu0
      %v1187 = vadd.f32 %v1001, %v1186
      %v1188 = vpop.f32.mrb[0].mxu0
      %v1189 = vadd.f32 %v1005, %v1188
      %1190 = vmatprep.mubr.bf16.mxu0 0
      %1191 = vmatmul.mubr.bf16.gmra.mrb[0].mxu0 %v971
      %v1192 = vpop.f32.mrb[0].mxu0
      %v1193 = vadd.f32 %v1001, %v1192
      %v1194 = vpop.f32.mrb[0].mxu0
      %v1195 = vadd.f32 %v1005, %v1194
      %v1196 = vpop.f32.mrb[0].mxu0
      %v1197 = vadd.f32 %v1001, %v1196
      %v1198 = vpop.f32.mrb[0].mxu0
      %v1199 = vadd.f32 %v1005, %v1198
      %1200 = vmatprep.mubr.bf16.mxu0 0
      %1201 = vmatmul.mubr.bf16.gmra.mrb[0].mxu0 %v972
      %v1202 = vpop.f32.mrb[0].mxu0
      %v1203 = vadd.f32 %v1001, %v1202
      %v1204 = vpop.f32.mrb[0].mxu0
      %v1205 = vadd.f32 %v1005, %v1204
      %v1206 = vpop.f32.mrb[0].mxu0
      %v1207 = vadd.f32 %v1001, %v1206
      %v1208 = vpop.f32.mrb[0].mxu0
      %v1209 = vadd.f32 %v1005, %v1208
      %1210 = vmatprep.mubr.bf16.mxu0 0
      %1211 = vmatmul.mubr.bf16.gmra.mrb[0].mxu0 %v973
      %v1212 = vpop.f32.mrb[0].mxu0
      %v1213 = vadd.f32 %v1001, %v1212
      %v1214 = vpop.f32.mrb[0].mxu0
      %v1215 = vadd.f32 %v1005, %v1214
      %v1216 = vpop.f32.mrb[0].mxu0
      %v1217 = vadd.f32 %v1001, %v1216
      %v1218 = vpop.f32.mrb[0].mxu0
      %v1219 = vadd.f32 %v1005, %v1218
      %1220 = vmatprep.mubr.bf16.mxu0 0
      %1221 = vmatmul.mubr.bf16.gmra.mrb[0].mxu0 %v974
      %v1222 = vpop.f32.mrb[0].mxu0
      %v1223 = vadd.f32 %v1001, %v1222
      %v1224 = vpop.f32.mrb[0].mxu0
      %v1225 = vadd.f32 %v1005, %v1224
      %v1226 = vpop.f32.mrb[0].mxu0
      %v1227 = vadd.f32 %v1001, %v1226
      %v1228 = vpop.f32.mrb[0].mxu0
      %v1229 = vadd.f32 %v1005, %v1228
      %1230 = vmatprep.mubr.bf16.mxu0 0
      %1231 = vmatmul.mubr.bf16.gmra.mrb[0].mxu0 %v975
      %v1232 = vpop.f32.mrb[0].mxu0
      %v1233 = vadd.f32 %v1001, %v1232
      %v1234 = vpop.f32.mrb[0].mxu0
      %v1235 = vadd.f32 %v1005, %v1234
      %v1236 = vpop.f32.mrb[0].mxu0
      %v1237 = vadd.f32 %v1001, %v1236
      %v1238 = vpop.f32.mrb[0].mxu0
      %v1239 = vadd.f32 %v1005, %v1238
      %1240 = vmatprep.mubr.bf16.mxu0 0
      %1241 = vmatmul.mubr.bf16.gmra.mrb[0].mxu0 %v976
      %v1242 = vpop.f32.mrb[0].mxu0
      %v1243 = vadd.f32 %v1001, %v1242
      %v1244 = vpop.f32.mrb[0].mxu0
      %v1245 = vadd.f32 %v1005, %v1244
      %v1246 = vpop.f32.mrb[0].mxu0
      %v1247 = vadd.f32 %v1001, %v1246
      %v1248 = vpop.f32.mrb[0].mxu0
      %v1249 = vadd.f32 %v1005, %v1248
      %1250 = vmatprep.mubr.bf16.mxu0 0
      %1251 = vmatmul.mubr.bf16.gmra.mrb[0].mxu0 %v977
      %v1252 = vpop.f32.mrb[0].mxu0
      %v1253 = vadd.f32 %v1001, %v1252
      %v1254 = vpop.f32.mrb[0].mxu0
      %v1255 = vadd.f32 %v1005, %v1254
      %v1256 = vpop.f32.mrb[0].mxu0
      %v1257 = vadd.f32 %v1001, %v1256
      %v1258 = vpop.f32.mrb[0].mxu0
      %v1259 = vadd.f32 %v1005, %v1258
      %1260 = vmatprep.mubr.bf16.mxu0 0
      %1261 = vmatmul.mubr.bf16.gmra.mrb[0].mxu0 %v978
      %v1262 = vpop.f32.mrb[0].mxu0
      %v1263 = vadd.f32 %v1001, %v1262
      %v1264 = vpop.f32.mrb[0].mxu0
      %v1265 = vadd.f32 %v1005, %v1264
      %v1266 = vpop.f32.mrb[0].mxu0
      %v1267 = vadd.f32 %v1001, %v1266
      %v1268 = vpop.f32.mrb[0].mxu0
      %v1269 = vadd.f32 %v1005, %v1268
      %1270 = vmatprep.mubr.bf16.mxu0 0
      %1271 = vmatmul.mubr.bf16.gmra.mrb[0].mxu0 %v979
      %v1272 = vpop.f32.mrb[0].mxu0
      %v1273 = vadd.f32 %v1001, %v1272
      %v1274 = vpop.f32.mrb[0].mxu0
      %v1275 = vadd.f32 %v1005, %v1274
      %v1276 = vpop.f32.mrb[0].mxu0
      %v1277 = vadd.f32 %v1001, %v1276
      %v1278 = vpop.f32.mrb[0].mxu0
      %v1279 = vadd.f32 %v1005, %v1278
      %1280 = vdwg.mxu0
      %v1281 = vmul.f32 %v1123, %v1123
      %v1282 = vmul.f32 %v1125, %v1125
      %v1283 = vmul.f32 %v1127, %v1127
      %v1284 = vmul.f32 %v1129, %v1129
      %v1285 = vmul.f32 %v1133, %v1133
      %v1286 = vmul.f32 %v1135, %v1135
      %v1287 = vmul.f32 %v1137, %v1137
      %v1288 = vmul.f32 %v1139, %v1139
      %v1289 = vmul.f32 %v1143, %v1143
      %v1290 = vmul.f32 %v1145, %v1145
      %v1291 = vmul.f32 %v1147, %v1147
      %v1292 = vmul.f32 %v1149, %v1149
      %v1293 = vmul.f32 %v1153, %v1153
      %v1294 = vmul.f32 %v1155, %v1155
      %v1295 = vmul.f32 %v1157, %v1157
      %v1296 = vmul.f32 %v1159, %v1159
      %v1297 = vmul.f32 %v1163, %v1163
      %v1298 = vmul.f32 %v1165, %v1165
      %v1299 = vmul.f32 %v1167, %v1167
      %v1300 = vmul.f32 %v1169, %v1169
      %v1301 = vmul.f32 %v1173, %v1173
      %v1302 = vmul.f32 %v1175, %v1175
      %v1303 = vmul.f32 %v1177, %v1177
      %v1304 = vmul.f32 %v1179, %v1179
      %v1305 = vmul.f32 %v1183, %v1183
      %v1306 = vmul.f32 %v1185, %v1185
      %v1307 = vmul.f32 %v1187, %v1187
      %v1308 = vmul.f32 %v1189, %v1189
      %v1309 = vmul.f32 %v1193, %v1193
      %v1310 = vmul.f32 %v1195, %v1195
      %v1311 = vmul.f32 %v1197, %v1197
      %v1312 = vmul.f32 %v1199, %v1199
      %v1313 = vmul.f32 %v1203, %v1203
      %v1314 = vmul.f32 %v1205, %v1205
      %v1315 = vmul.f32 %v1207, %v1207
      %v1316 = vmul.f32 %v1209, %v1209
      %v1317 = vmul.f32 %v1213, %v1213
      %v1318 = vmul.f32 %v1215, %v1215
      %v1319 = vmul.f32 %v1217, %v1217
      %v1320 = vmul.f32 %v1219, %v1219
      %v1321 = vmul.f32 %v1223, %v1223
      %v1322 = vmul.f32 %v1225, %v1225
      %v1323 = vmul.f32 %v1227, %v1227
      %v1324 = vmul.f32 %v1229, %v1229
      %v1325 = vmul.f32 %v1233, %v1233
      %v1326 = vmul.f32 %v1235, %v1235
      %v1327 = vmul.f32 %v1237, %v1237
      %v1328 = vmul.f32 %v1239, %v1239
      %v1329 = vmul.f32 %v1243, %v1243
      %v1330 = vmul.f32 %v1245, %v1245
      %v1331 = vmul.f32 %v1247, %v1247
      %v1332 = vmul.f32 %v1249, %v1249
      %v1333 = vmul.f32 %v1253, %v1253
      %v1334 = vmul.f32 %v1255, %v1255
      %v1335 = vmul.f32 %v1257, %v1257
      %v1336 = vmul.f32 %v1259, %v1259
      %v1337 = vmul.f32 %v1263, %v1263
      %v1338 = vmul.f32 %v1265, %v1265
      %v1339 = vmul.f32 %v1267, %v1267
      %v1340 = vmul.f32 %v1269, %v1269
      %v1341 = vmul.f32 %v1273, %v1273
      %v1342 = vmul.f32 %v1275, %v1275
      %v1343 = vmul.f32 %v1277, %v1277
      %v1344 = vmul.f32 %v1279, %v1279
      %v1345 = vmul.f32 %v1123, %v1281
      %v1346 = vmul.f32 %v1125, %v1282
      %v1347 = vmul.f32 %v1127, %v1283
      %v1348 = vmul.f32 %v1129, %v1284
      %v1349 = vmul.f32 %v1133, %v1285
      %v1350 = vmul.f32 %v1135, %v1286
      %v1351 = vmul.f32 %v1137, %v1287
      %v1352 = vmul.f32 %v1139, %v1288
      %v1353 = vmul.f32 %v1143, %v1289
      %v1354 = vmul.f32 %v1145, %v1290
      %v1355 = vmul.f32 %v1147, %v1291
      %v1356 = vmul.f32 %v1149, %v1292
      %v1357 = vmul.f32 %v1153, %v1293
      %v1358 = vmul.f32 %v1155, %v1294
      %v1359 = vmul.f32 %v1157, %v1295
      %v1360 = vmul.f32 %v1159, %v1296
      %v1361 = vmul.f32 %v1163, %v1297
      %v1362 = vmul.f32 %v1165, %v1298
      %v1363 = vmul.f32 %v1167, %v1299
      %v1364 = vmul.f32 %v1169, %v1300
      %v1365 = vmul.f32 %v1173, %v1301
      %v1366 = vmul.f32 %v1175, %v1302
      %v1367 = vmul.f32 %v1177, %v1303
      %v1368 = vmul.f32 %v1179, %v1304
      %v1369 = vmul.f32 %v1183, %v1305
      %v1370 = vmul.f32 %v1185, %v1306
      %v1371 = vmul.f32 %v1187, %v1307
      %v1372 = vmul.f32 %v1189, %v1308
      %v1373 = vmul.f32 %v1193, %v1309
      %v1374 = vmul.f32 %v1195, %v1310
      %v1375 = vmul.f32 %v1197, %v1311
      %v1376 = vmul.f32 %v1199, %v1312
      %v1377 = vmul.f32 %v1203, %v1313
      %v1378 = vmul.f32 %v1205, %v1314
      %v1379 = vmul.f32 %v1207, %v1315
      %v1380 = vmul.f32 %v1209, %v1316
      %v1381 = vmul.f32 %v1213, %v1317
      %v1382 = vmul.f32 %v1215, %v1318
      %v1383 = vmul.f32 %v1217, %v1319
      %v1384 = vmul.f32 %v1219, %v1320
      %v1385 = vmul.f32 %v1223, %v1321
      %v1386 = vmul.f32 %v1225, %v1322
      %v1387 = vmul.f32 %v1227, %v1323
      %v1388 = vmul.f32 %v1229, %v1324
      %v1389 = vmul.f32 %v1233, %v1325
      %v1390 = vmul.f32 %v1235, %v1326
      %v1391 = vmul.f32 %v1237, %v1327
      %v1392 = vmul.f32 %v1239, %v1328
      %v1393 = vmul.f32 %v1243, %v1329
      %v1394 = vmul.f32 %v1245, %v1330
      %v1395 = vmul.f32 %v1247, %v1331
      %v1396 = vmul.f32 %v1249, %v1332
      %v1397 = vmul.f32 %v1253, %v1333
      %v1398 = vmul.f32 %v1255, %v1334
      %v1399 = vmul.f32 %v1257, %v1335
      %v1400 = vmul.f32 %v1259, %v1336
      %v1401 = vmul.f32 %v1263, %v1337
      %v1402 = vmul.f32 %v1265, %v1338
      %v1403 = vmul.f32 %v1267, %v1339
      %v1404 = vmul.f32 %v1269, %v1340
      %v1405 = vmul.f32 %v1273, %v1341
      %v1406 = vmul.f32 %v1275, %v1342
      %v1407 = vmul.f32 %v1277, %v1343
      %v1408 = vmul.f32 %v1279, %v1344
      %v1409 = vmul.f32 %v1345, 0.044715
      %v1410 = vmul.f32 %v1346, 0.044715
      %v1411 = vmul.f32 %v1347, 0.044715
      %v1412 = vmul.f32 %v1348, 0.044715
      %v1413 = vmul.f32 %v1349, 0.044715
      %v1414 = vmul.f32 %v1350, 0.044715
      %v1415 = vmul.f32 %v1351, 0.044715
      %v1416 = vmul.f32 %v1352, 0.044715
      %v1417 = vmul.f32 %v1353, 0.044715
      %v1418 = vmul.f32 %v1354, 0.044715
      %v1419 = vmul.f32 %v1355, 0.044715
      %v1420 = vmul.f32 %v1356, 0.044715
      %v1421 = vmul.f32 %v1357, 0.044715
      %v1422 = vmul.f32 %v1358, 0.044715
      %v1423 = vmul.f32 %v1359, 0.044715
      %v1424 = vmul.f32 %v1360, 0.044715
      %v1425 = vmul.f32 %v1361, 0.044715
      %v1426 = vmul.f32 %v1362, 0.044715
      %v1427 = vmul.f32 %v1363, 0.044715
      %v1428 = vmul.f32 %v1364, 0.044715
      %v1429 = vmul.f32 %v1365, 0.044715
      %v1430 = vmul.f32 %v1366, 0.044715
      %v1431 = vmul.f32 %v1367, 0.044715
      %v1432 = vmul.f32 %v1368, 0.044715
      %v1433 = vmul.f32 %v1369, 0.044715
      %v1434 = vmul.f32 %v1370, 0.044715
      %v1435 = vmul.f32 %v1371, 0.044715
      %v1436 = vmul.f32 %v1372, 0.044715
      %v1437 = vmul.f32 %v1373, 0.044715
      %v1438 = vmul.f32 %v1374, 0.044715
      %v1439 = vmul.f32 %v1375, 0.044715
      %v1440 = vmul.f32 %v1376, 0.044715
      %v1441 = vmul.f32 %v1377, 0.044715
      %v1442 = vmul.f32 %v1378, 0.044715
      %v1443 = vmul.f32 %v1379, 0.044715
      %v1444 = vmul.f32 %v1380, 0.044715
      %v1445 = vmul.f32 %v1381, 0.044715
      %v1446 = vmul.f32 %v1382, 0.044715
      %v1447 = vmul.f32 %v1383, 0.044715
      %v1448 = vmul.f32 %v1384, 0.044715
      %v1449 = vmul.f32 %v1385, 0.044715
      %v1450 = vmul.f32 %v1386, 0.044715
      %v1451 = vmul.f32 %v1387, 0.044715
      %v1452 = vmul.f32 %v1388, 0.044715
      %v1453 = vmul.f32 %v1389, 0.044715
      %v1454 = vmul.f32 %v1390, 0.044715
      %v1455 = vmul.f32 %v1391, 0.044715
      %v1456 = vmul.f32 %v1392, 0.044715
      %v1457 = vmul.f32 %v1393, 0.044715
      %v1458 = vmul.f32 %v1394, 0.044715
      %v1459 = vmul.f32 %v1395, 0.044715
      %v1460 = vmul.f32 %v1396, 0.044715
      %v1461 = vmul.f32 %v1397, 0.044715
      %v1462 = vmul.f32 %v1398, 0.044715
      %v1463 = vmul.f32 %v1399, 0.044715
      %v1464 = vmul.f32 %v1400, 0.044715
      %v1465 = vmul.f32 %v1401, 0.044715
      %v1466 = vmul.f32 %v1402, 0.044715
      %v1467 = vmul.f32 %v1403, 0.044715
      %v1468 = vmul.f32 %v1404, 0.044715
      %v1469 = vmul.f32 %v1405, 0.044715
      %v1470 = vmul.f32 %v1406, 0.044715
      %v1471 = vmul.f32 %v1407, 0.044715
      %v1472 = vmul.f32 %v1408, 0.044715
      %v1473 = vadd.f32 %v1123, %v1409
      %v1474 = vadd.f32 %v1125, %v1410
      %v1475 = vadd.f32 %v1127, %v1411
      %v1476 = vadd.f32 %v1129, %v1412
      %v1477 = vadd.f32 %v1133, %v1413
      %v1478 = vadd.f32 %v1135, %v1414
      %v1479 = vadd.f32 %v1137, %v1415
      %v1480 = vadd.f32 %v1139, %v1416
      %v1481 = vadd.f32 %v1143, %v1417
      %v1482 = vadd.f32 %v1145, %v1418
      %v1483 = vadd.f32 %v1147, %v1419
      %v1484 = vadd.f32 %v1149, %v1420
      %v1485 = vadd.f32 %v1153, %v1421
      %v1486 = vadd.f32 %v1155, %v1422
      %v1487 = vadd.f32 %v1157, %v1423
      %v1488 = vadd.f32 %v1159, %v1424
      %v1489 = vadd.f32 %v1163, %v1425
      %v1490 = vadd.f32 %v1165, %v1426
      %v1491 = vadd.f32 %v1167, %v1427
      %v1492 = vadd.f32 %v1169, %v1428
      %v1493 = vadd.f32 %v1173, %v1429
      %v1494 = vadd.f32 %v1175, %v1430
      %v1495 = vadd.f32 %v1177, %v1431
      %v1496 = vadd.f32 %v1179, %v1432
      %v1497 = vadd.f32 %v1183, %v1433
      %v1498 = vadd.f32 %v1185, %v1434
      %v1499 = vadd.f32 %v1187, %v1435
      %v1500 = vadd.f32 %v1189, %v1436
      %v1501 = vadd.f32 %v1193, %v1437
      %v1502 = vadd.f32 %v1195, %v1438
      %v1503 = vadd.f32 %v1197, %v1439
      %v1504 = vadd.f32 %v1199, %v1440
      %v1505 = vadd.f32 %v1203, %v1441
      %v1506 = vadd.f32 %v1205, %v1442
      %v1507 = vadd.f32 %v1207, %v1443
      %v1508 = vadd.f32 %v1209, %v1444
      %v1509 = vadd.f32 %v1213, %v1445
      %v1510 = vadd.f32 %v1215, %v1446
      %v1511 = vadd.f32 %v1217, %v1447
      %v1512 = vadd.f32 %v1219, %v1448
      %v1513 = vadd.f32 %v1223, %v1449
      %v1514 = vadd.f32 %v1225, %v1450
      %v1515 = vadd.f32 %v1227, %v1451
      %v1516 = vadd.f32 %v1229, %v1452
      %v1517 = vadd.f32 %v1233, %v1453
      %v1518 = vadd.f32 %v1235, %v1454
      %v1519 = vadd.f32 %v1237, %v1455
      %v1520 = vadd.f32 %v1239, %v1456
      %v1521 = vadd.f32 %v1243, %v1457
      %v1522 = vadd.f32 %v1245, %v1458
      %v1523 = vadd.f32 %v1247, %v1459
      %v1524 = vadd.f32 %v1249, %v1460
      %v1525 = vadd.f32 %v1253, %v1461
      %v1526 = vadd.f32 %v1255, %v1462
      %v1527 = vadd.f32 %v1257, %v1463
      %v1528 = vadd.f32 %v1259, %v1464
      %v1529 = vadd.f32 %v1263, %v1465
      %v1530 = vadd.f32 %v1265, %v1466
      %v1531 = vadd.f32 %v1267, %v1467
      %v1532 = vadd.f32 %v1269, %v1468
      %v1533 = vadd.f32 %v1273, %v1469
      %v1534 = vadd.f32 %v1275, %v1470
      %v1535 = vadd.f32 %v1277, %v1471
      %v1536 = vadd.f32 %v1279, %v1472
      %v1537 = vmul.f32 %v1473, 0.7978846
      %v1538 = vmul.f32 %v1474, 0.7978846
      %v1539 = vmul.f32 %v1475, 0.7978846
      %v1540 = vmul.f32 %v1476, 0.7978846
      %v1541 = vmul.f32 %v1477, 0.7978846
      %v1542 = vmul.f32 %v1478, 0.7978846
      %v1543 = vmul.f32 %v1479, 0.7978846
      %v1544 = vmul.f32 %v1480, 0.7978846
      %v1545 = vmul.f32 %v1481, 0.7978846
      %v1546 = vmul.f32 %v1482, 0.7978846
      %v1547 = vmul.f32 %v1483, 0.7978846
      %v1548 = vmul.f32 %v1484, 0.7978846
      %v1549 = vmul.f32 %v1485, 0.7978846
      %v1550 = vmul.f32 %v1486, 0.7978846
      %v1551 = vmul.f32 %v1487, 0.7978846
      %v1552 = vmul.f32 %v1488, 0.7978846
      %v1553 = vmul.f32 %v1489, 0.7978846
      %v1554 = vmul.f32 %v1490, 0.7978846
      %v1555 = vmul.f32 %v1491, 0.7978846
      %v1556 = vmul.f32 %v1492, 0.7978846
      %v1557 = vmul.f32 %v1493, 0.7978846
      %v1558 = vmul.f32 %v1494, 0.7978846
      %v1559 = vmul.f32 %v1495, 0.7978846
      %v1560 = vmul.f32 %v1496, 0.7978846
      %v1561 = vmul.f32 %v1497, 0.7978846
      %v1562 = vmul.f32 %v1498, 0.7978846
      %v1563 = vmul.f32 %v1499, 0.7978846
      %v1564 = vmul.f32 %v1500, 0.7978846
      %v1565 = vmul.f32 %v1501, 0.7978846
      %v1566 = vmul.f32 %v1502, 0.7978846
      %v1567 = vmul.f32 %v1503, 0.7978846
      %v1568 = vmul.f32 %v1504, 0.7978846
      %v1569 = vmul.f32 %v1505, 0.7978846
      %v1570 = vmul.f32 %v1506, 0.7978846
      %v1571 = vmul.f32 %v1507, 0.7978846
      %v1572 = vmul.f32 %v1508, 0.7978846
      %v1573 = vmul.f32 %v1509, 0.7978846
      %v1574 = vmul.f32 %v1510, 0.7978846
      %v1575 = vmul.f32 %v1511, 0.7978846
      %v1576 = vmul.f32 %v1512, 0.7978846
      %v1577 = vmul.f32 %v1513, 0.7978846
      %v1578 = vmul.f32 %v1514, 0.7978846
      %v1579 = vmul.f32 %v1515, 0.7978846
      %v1580 = vmul.f32 %v1516, 0.7978846
      %v1581 = vmul.f32 %v1517, 0.7978846
      %v1582 = vmul.f32 %v1518, 0.7978846
      %v1583 = vmul.f32 %v1519, 0.7978846
      %v1584 = vmul.f32 %v1520, 0.7978846
      %v1585 = vmul.f32 %v1521, 0.7978846
      %v1586 = vmul.f32 %v1522, 0.7978846
      %v1587 = vmul.f32 %v1523, 0.7978846
      %v1588 = vmul.f32 %v1524, 0.7978846
      %v1589 = vmul.f32 %v1525, 0.7978846
      %v1590 = vmul.f32 %v1526, 0.7978846
      %v1591 = vmul.f32 %v1527, 0.7978846
      %v1592 = vmul.f32 %v1528, 0.7978846
      %v1593 = vmul.f32 %v1529, 0.7978846
      %v1594 = vmul.f32 %v1530, 0.7978846
      %v1595 = vmul.f32 %v1531, 0.7978846
      %v1596 = vmul.f32 %v1532, 0.7978846
      %v1597 = vmul.f32 %v1533, 0.7978846
      %v1598 = vmul.f32 %v1534, 0.7978846
      %v1599 = vmul.f32 %v1535, 0.7978846
      %v1600 = vmul.f32 %v1536, 0.7978846
      %v1601 = vtanh.pop %v1537
      %v1602 = vtanh.pop %v1538
      %v1603 = vtanh.pop %v1539
      %v1604 = vtanh.pop %v1540
      %v1605 = vtanh.pop %v1541
      %v1606 = vtanh.pop %v1542
      %v1607 = vtanh.pop %v1543
      %v1608 = vtanh.pop %v1544
      %v1609 = vtanh.pop %v1545
      %v1610 = vtanh.pop %v1546
      %v1611 = vtanh.pop %v1547
      %v1612 = vtanh.pop %v1548
      %v1613 = vtanh.pop %v1549
      %v1614 = vtanh.pop %v1550
      %v1615 = vtanh.pop %v1551
      %v1616 = vtanh.pop %v1552
      %v1617 = vtanh.pop %v1553
      %v1618 = vtanh.pop %v1554
      %v1619 = vtanh.pop %v1555
      %v1620 = vtanh.pop %v1556
      %v1621 = vtanh.pop %v1557
      %v1622 = vtanh.pop %v1558
      %v1623 = vtanh.pop %v1559
      %v1624 = vtanh.pop %v1560
      %v1625 = vtanh.pop %v1561
      %v1626 = vtanh.pop %v1562
      %v1627 = vtanh.pop %v1563
      %v1628 = vtanh.pop %v1564
      %v1629 = vtanh.pop %v1565
      %v1630 = vtanh.pop %v1566
      %v1631 = vtanh.pop %v1567
      %v1632 = vtanh.pop %v1568
      %v1633 = vtanh.pop %v1569
      %v1634 = vtanh.pop %v1570
      %v1635 = vtanh.pop %v1571
      %v1636 = vtanh.pop %v1572
      %v1637 = vtanh.pop %v1573
      %v1638 = vtanh.pop %v1574
      %v1639 = vtanh.pop %v1575
      %v1640 = vtanh.pop %v1576
      %v1641 = vtanh.pop %v1577
      %v1642 = vtanh.pop %v1578
      %v1643 = vtanh.pop %v1579
      %v1644 = vtanh.pop %v1580
      %v1645 = vtanh.pop %v1581
      %v1646 = vtanh.pop %v1582
      %v1647 = vtanh.pop %v1583
      %v1648 = vtanh.pop %v1584
      %v1649 = vtanh.pop %v1585
      %v1650 = vtanh.pop %v1586
      %v1651 = vtanh.pop %v1587
      %v1652 = vtanh.pop %v1588
      %v1653 = vtanh.pop %v1589
      %v1654 = vtanh.pop %v1590
      %v1655 = vtanh.pop %v1591
      %v1656 = vtanh.pop %v1592
      %v1657 = vtanh.pop %v1593
      %v1658 = vtanh.pop %v1594
      %v1659 = vtanh.pop %v1595
      %v1660 = vtanh.pop %v1596
      %v1661 = vtanh.pop %v1597
      %v1662 = vtanh.pop %v1598
      %v1663 = vtanh.pop %v1599
      %v1664 = vtanh.pop %v1600
      %v1665 = vadd.f32 %v1601, 1.0
      %v1666 = vadd.f32 %v1602, 1.0
      %v1667 = vadd.f32 %v1603, 1.0
      %v1668 = vadd.f32 %v1604, 1.0
      %v1669 = vadd.f32 %v1605, 1.0
      %v1670 = vadd.f32 %v1606, 1.0
      %v1671 = vadd.f32 %v1607, 1.0
      %v1672 = vadd.f32 %v1608, 1.0
      %v1673 = vadd.f32 %v1609, 1.0
      %v1674 = vadd.f32 %v1610, 1.0
      %v1675 = vadd.f32 %v1611, 1.0
      %v1676 = vadd.f32 %v1612, 1.0
      %v1677 = vadd.f32 %v1613, 1.0
      %v1678 = vadd.f32 %v1614, 1.0
      %v1679 = vadd.f32 %v1615, 1.0
      %v1680 = vadd.f32 %v1616, 1.0
      %v1681 = vadd.f32 %v1617, 1.0
      %v1682 = vadd.f32 %v1618, 1.0
      %v1683 = vadd.f32 %v1619, 1.0
      %v1684 = vadd.f32 %v1620, 1.0
      %v1685 = vadd.f32 %v1621, 1.0
      %v1686 = vadd.f32 %v1622, 1.0
      %v1687 = vadd.f32 %v1623, 1.0
      %v1688 = vadd.f32 %v1624, 1.0
      %v1689 = vadd.f32 %v1625, 1.0
      %v1690 = vadd.f32 %v1626, 1.0
      %v1691 = vadd.f32 %v1627, 1.0
      %v1692 = vadd.f32 %v1628, 1.0
      %v1693 = vadd.f32 %v1629, 1.0
      %v1694 = vadd.f32 %v1630, 1.0
      %v1695 = vadd.f32 %v1631, 1.0
      %v1696 = vadd.f32 %v1632, 1.0
      %v1697 = vadd.f32 %v1633, 1.0
      %v1698 = vadd.f32 %v1634, 1.0
      %v1699 = vadd.f32 %v1635, 1.0
      %v1700 = vadd.f32 %v1636, 1.0
      %v1701 = vadd.f32 %v1637, 1.0
      %v1702 = vadd.f32 %v1638, 1.0
      %v1703 = vadd.f32 %v1639, 1.0
      %v1704 = vadd.f32 %v1640, 1.0
      %v1705 = vadd.f32 %v1641, 1.0
      %v1706 = vadd.f32 %v1642, 1.0
      %v1707 = vadd.f32 %v1643, 1.0
      %v1708 = vadd.f32 %v1644, 1.0
      %v1709 = vadd.f32 %v1645, 1.0
      %v1710 = vadd.f32 %v1646, 1.0
      %v1711 = vadd.f32 %v1647, 1.0
      %v1712 = vadd.f32 %v1648, 1.0
      %v1713 = vadd.f32 %v1649, 1.0
      %v1714 = vadd.f32 %v1650, 1.0
      %v1715 = vadd.f32 %v1651, 1.0
      %v1716 = vadd.f32 %v1652, 1.0
      %v1717 = vadd.f32 %v1653, 1.0
      %v1718 = vadd.f32 %v1654, 1.0
      %v1719 = vadd.f32 %v1655, 1.0
      %v1720 = vadd.f32 %v1656, 1.0
      %v1721 = vadd.f32 %v1657, 1.0
      %v1722 = vadd.f32 %v1658, 1.0
      %v1723 = vadd.f32 %v1659, 1.0
      %v1724 = vadd.f32 %v1660, 1.0
      %v1725 = vadd.f32 %v1661, 1.0
      %v1726 = vadd.f32 %v1662, 1.0
      %v1727 = vadd.f32 %v1663, 1.0
      %v1728 = vadd.f32 %v1664, 1.0
      %v1729 = vmul.f32 %v1665, 0.5
      %v1730 = vmul.f32 %v1666, 0.5
      %v1731 = vmul.f32 %v1667, 0.5
      %v1732 = vmul.f32 %v1668, 0.5
      %v1733 = vmul.f32 %v1669, 0.5
      %v1734 = vmul.f32 %v1670, 0.5
      %v1735 = vmul.f32 %v1671, 0.5
      %v1736 = vmul.f32 %v1672, 0.5
      %v1737 = vmul.f32 %v1673, 0.5
      %v1738 = vmul.f32 %v1674, 0.5
      %v1739 = vmul.f32 %v1675, 0.5
      %v1740 = vmul.f32 %v1676, 0.5
      %v1741 = vmul.f32 %v1677, 0.5
      %v1742 = vmul.f32 %v1678, 0.5
      %v1743 = vmul.f32 %v1679, 0.5
      %v1744 = vmul.f32 %v1680, 0.5
      %v1745 = vmul.f32 %v1681, 0.5
      %v1746 = vmul.f32 %v1682, 0.5
      %v1747 = vmul.f32 %v1683, 0.5
      %v1748 = vmul.f32 %v1684, 0.5
      %v1749 = vmul.f32 %v1685, 0.5
      %v1750 = vmul.f32 %v1686, 0.5
      %v1751 = vmul.f32 %v1687, 0.5
      %v1752 = vmul.f32 %v1688, 0.5
      %v1753 = vmul.f32 %v1689, 0.5
      %v1754 = vmul.f32 %v1690, 0.5
      %v1755 = vmul.f32 %v1691, 0.5
      %v1756 = vmul.f32 %v1692, 0.5
      %v1757 = vmul.f32 %v1693, 0.5
      %v1758 = vmul.f32 %v1694, 0.5
      %v1759 = vmul.f32 %v1695, 0.5
      %v1760 = vmul.f32 %v1696, 0.5
      %v1761 = vmul.f32 %v1697, 0.5
      %v1762 = vmul.f32 %v1698, 0.5
      %v1763 = vmul.f32 %v1699, 0.5
      %v1764 = vmul.f32 %v1700, 0.5
      %v1765 = vmul.f32 %v1701, 0.5
      %v1766 = vmul.f32 %v1702, 0.5
      %v1767 = vmul.f32 %v1703, 0.5
      %v1768 = vmul.f32 %v1704, 0.5
      %v1769 = vmul.f32 %v1705, 0.5
      %v1770 = vmul.f32 %v1706, 0.5
      %v1771 = vmul.f32 %v1707, 0.5
      %v1772 = vmul.f32 %v1708, 0.5
      %v1773 = vmul.f32 %v1709, 0.5
      %v1774 = vmul.f32 %v1710, 0.5
      %v1775 = vmul.f32 %v1711, 0.5
      %v1776 = vmul.f32 %v1712, 0.5
      %v1777 = vmul.f32 %v1713, 0.5
      %v1778 = vmul.f32 %v1714, 0.5
      %v1779 = vmul.f32 %v1715, 0.5
      %v1780 = vmul.f32 %v1716, 0.5
      %v1781 = vmul.f32 %v1717, 0.5
      %v1782 = vmul.f32 %v1718, 0.5
      %v1783 = vmul.f32 %v1719, 0.5
      %v1784 = vmul.f32 %v1720, 0.5
      %v1785 = vmul.f32 %v1721, 0.5
      %v1786 = vmul.f32 %v1722, 0.5
      %v1787 = vmul.f32 %v1723, 0.5
      %v1788 = vmul.f32 %v1724, 0.5
      %v1789 = vmul.f32 %v1725, 0.5
      %v1790 = vmul.f32 %v1726, 0.5
      %v1791 = vmul.f32 %v1727, 0.5
      %v1792 = vmul.f32 %v1728, 0.5
      %v1793 = vmul.f32 %v1123, %v1729
      %v1794 = vmul.f32 %v1125, %v1730
      %v1795 = vmul.f32 %v1127, %v1731
      %v1796 = vmul.f32 %v1129, %v1732
      %v1797 = vmul.f32 %v1133, %v1733
      %v1798 = vmul.f32 %v1135, %v1734
      %v1799 = vmul.f32 %v1137, %v1735
      %v1800 = vmul.f32 %v1139, %v1736
      %v1801 = vmul.f32 %v1143, %v1737
      %v1802 = vmul.f32 %v1145, %v1738
      %v1803 = vmul.f32 %v1147, %v1739
      %v1804 = vmul.f32 %v1149, %v1740
      %v1805 = vmul.f32 %v1153, %v1741
      %v1806 = vmul.f32 %v1155, %v1742
      %v1807 = vmul.f32 %v1157, %v1743
      %v1808 = vmul.f32 %v1159, %v1744
      %v1809 = vmul.f32 %v1163, %v1745
      %v1810 = vmul.f32 %v1165, %v1746
      %v1811 = vmul.f32 %v1167, %v1747
      %v1812 = vmul.f32 %v1169, %v1748
      %v1813 = vmul.f32 %v1173, %v1749
      %v1814 = vmul.f32 %v1175, %v1750
      %v1815 = vmul.f32 %v1177, %v1751
      %v1816 = vmul.f32 %v1179, %v1752
      %v1817 = vmul.f32 %v1183, %v1753
      %v1818 = vmul.f32 %v1185, %v1754
      %v1819 = vmul.f32 %v1187, %v1755
      %v1820 = vmul.f32 %v1189, %v1756
      %v1821 = vmul.f32 %v1193, %v1757
      %v1822 = vmul.f32 %v1195, %v1758
      %v1823 = vmul.f32 %v1197, %v1759
      %v1824 = vmul.f32 %v1199, %v1760
      %v1825 = vmul.f32 %v1203, %v1761
      %v1826 = vmul.f32 %v1205, %v1762
      %v1827 = vmul.f32 %v1207, %v1763
      %v1828 = vmul.f32 %v1209, %v1764
      %v1829 = vmul.f32 %v1213, %v1765
      %v1830 = vmul.f32 %v1215, %v1766
      %v1831 = vmul.f32 %v1217, %v1767
      %v1832 = vmul.f32 %v1219, %v1768
      %v1833 = vmul.f32 %v1223, %v1769
      %v1834 = vmul.f32 %v1225, %v1770
      %v1835 = vmul.f32 %v1227, %v1771
      %v1836 = vmul.f32 %v1229, %v1772
      %v1837 = vmul.f32 %v1233, %v1773
      %v1838 = vmul.f32 %v1235, %v1774
      %v1839 = vmul.f32 %v1237, %v1775
      %v1840 = vmul.f32 %v1239, %v1776
      %v1841 = vmul.f32 %v1243, %v1777
      %v1842 = vmul.f32 %v1245, %v1778
      %v1843 = vmul.f32 %v1247, %v1779
      %v1844 = vmul.f32 %v1249, %v1780
      %v1845 = vmul.f32 %v1253, %v1781
      %v1846 = vmul.f32 %v1255, %v1782
      %v1847 = vmul.f32 %v1257, %v1783
      %v1848 = vmul.f32 %v1259, %v1784
      %v1849 = vmul.f32 %v1263, %v1785
      %v1850 = vmul.f32 %v1265, %v1786
      %v1851 = vmul.f32 %v1267, %v1787
      %v1852 = vmul.f32 %v1269, %v1788
      %v1853 = vmul.f32 %v1273, %v1789
      %v1854 = vmul.f32 %v1275, %v1790
      %v1855 = vmul.f32 %v1277, %v1791
      %v1856 = vmul.f32 %v1279, %v1792
      %v1857 = vpack.c.bf16 %v1795, %v1793
      %v1858 = vpack.c.bf16 %v1796, %v1794
      %v1859 = vpack.c.bf16 %v1799, %v1797
      %v1860 = vpack.c.bf16 %v1800, %v1798
      %v1861 = vpack.c.bf16 %v1803, %v1801
      %v1862 = vpack.c.bf16 %v1804, %v1802
      %v1863 = vpack.c.bf16 %v1807, %v1805
      %v1864 = vpack.c.bf16 %v1808, %v1806
      %v1865 = vpack.c.bf16 %v1811, %v1809
      %v1866 = vpack.c.bf16 %v1812, %v1810
      %v1867 = vpack.c.bf16 %v1815, %v1813
      %v1868 = vpack.c.bf16 %v1816, %v1814
      %v1869 = vpack.c.bf16 %v1819, %v1817
      %v1870 = vpack.c.bf16 %v1820, %v1818
      %v1871 = vpack.c.bf16 %v1823, %v1821
      %v1872 = vpack.c.bf16 %v1824, %v1822
      %v1873 = vpack.c.bf16 %v1827, %v1825
      %v1874 = vpack.c.bf16 %v1828, %v1826
      %v1875 = vpack.c.bf16 %v1831, %v1829
      %v1876 = vpack.c.bf16 %v1832, %v1830
      %v1877 = vpack.c.bf16 %v1835, %v1833
      %v1878 = vpack.c.bf16 %v1836, %v1834
      %v1879 = vpack.c.bf16 %v1839, %v1837
      %v1880 = vpack.c.bf16 %v1840, %v1838
      %v1881 = vpack.c.bf16 %v1843, %v1841
      %v1882 = vpack.c.bf16 %v1844, %v1842
      %v1883 = vpack.c.bf16 %v1847, %v1845
      %v1884 = vpack.c.bf16 %v1848, %v1846
      %v1885 = vpack.c.bf16 %v1851, %v1849
      %v1886 = vpack.c.bf16 %v1852, %v1850
      %v1887 = vpack.c.bf16 %v1855, %v1853
      %v1888 = vpack.c.bf16 %v1856, %v1854
      %v1889 = vld [vmem:[%s6] sm:$0xf]
      %v1890 = vld [vmem:[%s6 + $0x4] sm:$0xf]
      %v1891 = vld [vmem:[%s6 + $0x8] sm:$0xf]
      %v1892 = vld [vmem:[%s6 + $0xc] sm:$0xf]
      %v1893 = vld [vmem:[%s6 + $0x10] sm:$0xf]
      %v1894 = vld [vmem:[%s6 + $0x14] sm:$0xf]
      %v1895 = vld [vmem:[%s6 + $0x18] sm:$0xf]
      %v1896 = vld [vmem:[%s6 + $0x1c] sm:$0xf]
      %v1897 = vld [vmem:[%s6 + $0x20] sm:$0xf]
      %v1898 = vld [vmem:[%s6 + $0x24] sm:$0xf]
      %v1899 = vld [vmem:[%s6 + $0x28] sm:$0xf]
      %v1900 = vld [vmem:[%s6 + $0x2c] sm:$0xf]
      %v1901 = vld [vmem:[%s6 + $0x30] sm:$0xf]
      %v1902 = vld [vmem:[%s6 + $0x34] sm:$0xf]
      %v1903 = vld [vmem:[%s6 + $0x38] sm:$0xf]
      %v1904 = vld [vmem:[%s6 + $0x3c] sm:$0xf]
      %v1905 = vld [vmem:[%s6 + $0x40] sm:$0xf]
      %v1906 = vld [vmem:[%s6 + $0x44] sm:$0xf]
      %v1907 = vld [vmem:[%s6 + $0x48] sm:$0xf]
      %v1908 = vld [vmem:[%s6 + $0x4c] sm:$0xf]
      %v1909 = vld [vmem:[%s6 + $0x50] sm:$0xf]
      %v1910 = vld [vmem:[%s6 + $0x54] sm:$0xf]
      %v1911 = vld [vmem:[%s6 + $0x58] sm:$0xf]
      %v1912 = vld [vmem:[%s6 + $0x5c] sm:$0xf]
      %v1913 = vld [vmem:[%s6 + $0x60] sm:$0xf]
      %v1914 = vld [vmem:[%s6 + $0x64] sm:$0xf]
      %v1915 = vld [vmem:[%s6 + $0x68] sm:$0xf]
      %v1916 = vld [vmem:[%s6 + $0x6c] sm:$0xf]
      %v1917 = vld [vmem:[%s6 + $0x70] sm:$0xf]
      %v1918 = vld [vmem:[%s6 + $0x74] sm:$0xf]
      %v1919 = vld [vmem:[%s6 + $0x78] sm:$0xf]
      %v1920 = vld [vmem:[%s6 + $0x7c] sm:$0xf]
      %v1921 = vld [vmem:[%s7] sm:$0x1]
      %v1923 = vlaneseq
      %v1924 = vshrl.u32 %v1923, 7
      %v1925 = vsub.s32 0, %v1924
      %v1926 = vrot.slane %v1921, %v1925
      %v1960 = vunpack.c.l.b16 %v1889
      %v1961 = vunpack.c.l.b16 %v1890
      %v1962 = vunpack.c.l.b16 %v1891
      %v1963 = vunpack.c.l.b16 %v1892
      %v1964 = vunpack.c.l.b16 %v1893
      %v1965 = vunpack.c.l.b16 %v1894
      %v1966 = vunpack.c.l.b16 %v1895
      %v1967 = vunpack.c.l.b16 %v1896
      %v1968 = vunpack.c.l.b16 %v1897
      %v1969 = vunpack.c.l.b16 %v1898
      %v1970 = vunpack.c.l.b16 %v1899
      %v1971 = vunpack.c.l.b16 %v1900
      %v1972 = vunpack.c.l.b16 %v1901
      %v1973 = vunpack.c.l.b16 %v1902
      %v1974 = vunpack.c.l.b16 %v1903
      %v1975 = vunpack.c.l.b16 %v1904
      %v1976 = vunpack.c.l.b16 %v1905
      %v1977 = vunpack.c.l.b16 %v1906
      %v1978 = vunpack.c.l.b16 %v1907
      %v1979 = vunpack.c.l.b16 %v1908
      %v1980 = vunpack.c.l.b16 %v1909
      %v1981 = vunpack.c.l.b16 %v1910
      %v1982 = vunpack.c.l.b16 %v1911
      %v1983 = vunpack.c.l.b16 %v1912
      %v1984 = vunpack.c.l.b16 %v1913
      %v1985 = vunpack.c.l.b16 %v1914
      %v1986 = vunpack.c.l.b16 %v1915
      %v1987 = vunpack.c.l.b16 %v1916
      %v1988 = vunpack.c.l.b16 %v1917
      %v1989 = vunpack.c.l.b16 %v1918
      %v1990 = vunpack.c.l.b16 %v1919
      %v1991 = vunpack.c.l.b16 %v1920
      %v1992 = vpack.c.b16 %v1961, %v1960
      %v1993 = vpack.c.b16 %v1963, %v1962
      %v1994 = vpack.c.b16 %v1965, %v1964
      %v1995 = vpack.c.b16 %v1967, %v1966
      %v1996 = vpack.c.b16 %v1969, %v1968
      %v1997 = vpack.c.b16 %v1971, %v1970
      %v1998 = vpack.c.b16 %v1973, %v1972
      %v1999 = vpack.c.b16 %v1975, %v1974
      %v2000 = vpack.c.b16 %v1977, %v1976
      %v2001 = vpack.c.b16 %v1979, %v1978
      %v2002 = vpack.c.b16 %v1981, %v1980
      %v2003 = vpack.c.b16 %v1983, %v1982
      %v2004 = vpack.c.b16 %v1985, %v1984
      %v2005 = vpack.c.b16 %v1987, %v1986
      %v2006 = vpack.c.b16 %v1989, %v1988
      %v2007 = vpack.c.b16 %v1991, %v1990
      %2024 = vmatprep.subr.bf16.mxu0 0
      %2025 = vmatpush1.bf16.msra.mxu0 %v1992
      %2026 = vmatprep.subr.bf16.mxu0 0
      %2027 = vmatpush1.bf16.msra.mxu0 %v1993
      %2028 = vmatprep.subr.bf16.mxu0 0
      %2029 = vmatpush1.bf16.msra.mxu0 %v1994
      %2030 = vmatprep.subr.bf16.mxu0 0
      %2031 = vmatpush1.bf16.msra.mxu0 %v1995
      %2032 = vmatprep.subr.bf16.mxu0 0
      %2033 = vmatpush1.bf16.msra.mxu0 %v1996
      %2034 = vmatprep.subr.bf16.mxu0 0
      %2035 = vmatpush1.bf16.msra.mxu0 %v1997
      %2036 = vmatprep.subr.bf16.mxu0 0
      %2037 = vmatpush1.bf16.msra.mxu0 %v1998
      %2038 = vmatprep.subr.bf16.mxu0 0
      %2039 = vmatpush1.bf16.msra.mxu0 %v1999
      %2040 = vmatprep.subr.bf16.mxu0 0
      %2041 = vmatpush1.bf16.msra.mxu0 %v2000
      %2042 = vmatprep.subr.bf16.mxu0 0
      %2043 = vmatpush1.bf16.msra.mxu0 %v2001
      %2044 = vmatprep.subr.bf16.mxu0 0
      %2045 = vmatpush1.bf16.msra.mxu0 %v2002
      %2046 = vmatprep.subr.bf16.mxu0 0
      %2047 = vmatpush1.bf16.msra.mxu0 %v2003
      %2048 = vmatprep.subr.bf16.mxu0 0
      %2049 = vmatpush1.bf16.msra.mxu0 %v2004
      %2050 = vmatprep.subr.bf16.mxu0 0
      %2051 = vmatpush1.bf16.msra.mxu0 %v2005
      %2052 = vmatprep.subr.bf16.mxu0 0
      %2053 = vmatpush1.bf16.msra.mxu0 %v2006
      %2054 = vmatprep.subr.bf16.mxu0 0
      %2055 = vmatpush1.bf16.msra.mxu0 %v2007
      %2056 = vmatprep.mubr.bf16.mxu0 %v1858
      %2057 = vmatmul.mubr.bf16.gmra.mrb[0].mxu0 %v1857
      %v2058 = vpop.f32.mrb[0].mxu0
      %v2059 = vadd.f32 %v1926, %v2058
      %v2060 = vpop.f32.mrb[0].mxu0
      %v2061 = vpop.f32.mrb[0].mxu0
      %v2062 = vadd.f32 %v1926, %v2061
      %v2063 = vpop.f32.mrb[0].mxu0
      %2064 = vmatprep.mubr.bf16.mxu0 %v1860
      %2065 = vmatmul.mubr.bf16.gmra.mrb[0].mxu0 %v1859
      %v2066 = vpop.f32.mrb[0].mxu0
      %v2067 = vadd.f32 %v1926, %v2066
      %v2068 = vpop.f32.mrb[0].mxu0
      %v2069 = vpop.f32.mrb[0].mxu0
      %v2070 = vadd.f32 %v1926, %v2069
      %v2071 = vpop.f32.mrb[0].mxu0
      %2072 = vmatprep.mubr.bf16.mxu0 %v1862
      %2073 = vmatmul.mubr.bf16.gmra.mrb[0].mxu0 %v1861
      %v2074 = vpop.f32.mrb[0].mxu0
      %v2075 = vadd.f32 %v1926, %v2074
      %v2076 = vpop.f32.mrb[0].mxu0
      %v2077 = vpop.f32.mrb[0].mxu0
      %v2078 = vadd.f32 %v1926, %v2077
      %v2079 = vpop.f32.mrb[0].mxu0
      %2080 = vmatprep.mubr.bf16.mxu0 %v1864
      %2081 = vmatmul.mubr.bf16.gmra.mrb[0].mxu0 %v1863
      %v2082 = vpop.f32.mrb[0].mxu0
      %v2083 = vadd.f32 %v1926, %v2082
      %v2084 = vpop.f32.mrb[0].mxu0
      %v2085 = vpop.f32.mrb[0].mxu0
      %v2086 = vadd.f32 %v1926, %v2085
      %v2087 = vpop.f32.mrb[0].mxu0
      %2088 = vmatprep.mubr.bf16.mxu0 %v1866
      %2089 = vmatmul.mubr.bf16.gmra.mrb[0].mxu0 %v1865
      %v2090 = vpop.f32.mrb[0].mxu0
      %v2091 = vadd.f32 %v1926, %v2090
      %v2092 = vpop.f32.mrb[0].mxu0
      %v2093 = vpop.f32.mrb[0].mxu0
      %v2094 = vadd.f32 %v1926, %v2093
      %v2095 = vpop.f32.mrb[0].mxu0
      %2096 = vmatprep.mubr.bf16.mxu0 %v1868
      %2097 = vmatmul.mubr.bf16.gmra.mrb[0].mxu0 %v1867
      %v2098 = vpop.f32.mrb[0].mxu0
      %v2099 = vadd.f32 %v1926, %v2098
      %v2100 = vpop.f32.mrb[0].mxu0
      %v2101 = vpop.f32.mrb[0].mxu0
      %v2102 = vadd.f32 %v1926, %v2101
      %v2103 = vpop.f32.mrb[0].mxu0
      %2104 = vmatprep.mubr.bf16.mxu0 %v1870
      %2105 = vmatmul.mubr.bf16.gmra.mrb[0].mxu0 %v1869
      %v2106 = vpop.f32.mrb[0].mxu0
      %v2107 = vadd.f32 %v1926, %v2106
      %v2108 = vpop.f32.mrb[0].mxu0
      %v2109 = vpop.f32.mrb[0].mxu0
      %v2110 = vadd.f32 %v1926, %v2109
      %v2111 = vpop.f32.mrb[0].mxu0
      %2112 = vmatprep.mubr.bf16.mxu0 %v1872
      %2113 = vmatmul.mubr.bf16.gmra.mrb[0].mxu0 %v1871
      %v2114 = vpop.f32.mrb[0].mxu0
      %v2115 = vadd.f32 %v1926, %v2114
      %v2116 = vpop.f32.mrb[0].mxu0
      %v2117 = vpop.f32.mrb[0].mxu0
      %v2118 = vadd.f32 %v1926, %v2117
      %v2119 = vpop.f32.mrb[0].mxu0
      %2120 = vmatprep.mubr.bf16.mxu0 %v1874
      %2121 = vmatmul.mubr.bf16.gmra.mrb[0].mxu0 %v1873
      %v2122 = vpop.f32.mrb[0].mxu0
      %v2123 = vadd.f32 %v1926, %v2122
      %v2124 = vpop.f32.mrb[0].mxu0
      %v2125 = vpop.f32.mrb[0].mxu0
      %v2126 = vadd.f32 %v1926, %v2125
      %v2127 = vpop.f32.mrb[0].mxu0
      %2128 = vmatprep.mubr.bf16.mxu0 %v1876
      %2129 = vmatmul.mubr.bf16.gmra.mrb[0].mxu0 %v1875
      %v2130 = vpop.f32.mrb[0].mxu0
      %v2131 = vadd.f32 %v1926, %v2130
      %v2132 = vpop.f32.mrb[0].mxu0
      %v2133 = vpop.f32.mrb[0].mxu0
      %v2134 = vadd.f32 %v1926, %v2133
      %v2135 = vpop.f32.mrb[0].mxu0
      %2136 = vmatprep.mubr.bf16.mxu0 %v1878
      %2137 = vmatmul.mubr.bf16.gmra.mrb[0].mxu0 %v1877
      %v2138 = vpop.f32.mrb[0].mxu0
      %v2139 = vadd.f32 %v1926, %v2138
      %v2140 = vpop.f32.mrb[0].mxu0
      %v2141 = vpop.f32.mrb[0].mxu0
      %v2142 = vadd.f32 %v1926, %v2141
      %v2143 = vpop.f32.mrb[0].mxu0
      %2144 = vmatprep.mubr.bf16.mxu0 %v1880
      %2145 = vmatmul.mubr.bf16.gmra.mrb[0].mxu0 %v1879
      %v2146 = vpop.f32.mrb[0].mxu0
      %v2147 = vadd.f32 %v1926, %v2146
      %v2148 = vpop.f32.mrb[0].mxu0
      %v2149 = vpop.f32.mrb[0].mxu0
      %v2150 = vadd.f32 %v1926, %v2149
      %v2151 = vpop.f32.mrb[0].mxu0
      %2152 = vmatprep.mubr.bf16.mxu0 %v1882
      %2153 = vmatmul.mubr.bf16.gmra.mrb[0].mxu0 %v1881
      %v2154 = vpop.f32.mrb[0].mxu0
      %v2155 = vadd.f32 %v1926, %v2154
      %v2156 = vpop.f32.mrb[0].mxu0
      %v2157 = vpop.f32.mrb[0].mxu0
      %v2158 = vadd.f32 %v1926, %v2157
      %v2159 = vpop.f32.mrb[0].mxu0
      %2160 = vmatprep.mubr.bf16.mxu0 %v1884
      %2161 = vmatmul.mubr.bf16.gmra.mrb[0].mxu0 %v1883
      %v2162 = vpop.f32.mrb[0].mxu0
      %v2163 = vadd.f32 %v1926, %v2162
      %v2164 = vpop.f32.mrb[0].mxu0
      %v2165 = vpop.f32.mrb[0].mxu0
      %v2166 = vadd.f32 %v1926, %v2165
      %v2167 = vpop.f32.mrb[0].mxu0
      %2168 = vmatprep.mubr.bf16.mxu0 %v1886
      %2169 = vmatmul.mubr.bf16.gmra.mrb[0].mxu0 %v1885
      %v2170 = vpop.f32.mrb[0].mxu0
      %v2171 = vadd.f32 %v1926, %v2170
      %v2172 = vpop.f32.mrb[0].mxu0
      %v2173 = vpop.f32.mrb[0].mxu0
      %v2174 = vadd.f32 %v1926, %v2173
      %v2175 = vpop.f32.mrb[0].mxu0
      %2176 = vmatprep.mubr.bf16.mxu0 %v1888
      %2177 = vmatmul.mubr.bf16.gmra.mrb[0].mxu0 %v1887
      %v2178 = vpop.f32.mrb[0].mxu0
      %v2179 = vadd.f32 %v1926, %v2178
      %v2180 = vpop.f32.mrb[0].mxu0
      %v2181 = vpop.f32.mrb[0].mxu0
      %v2182 = vadd.f32 %v1926, %v2181
      %v2183 = vpop.f32.mrb[0].mxu0
      %2184 = vdwg.mxu0
      %2185 = vst [vmem:[%s311] sm:$0xff] %v2059
      %2186 = vst [vmem:[%s311 + $0x8] sm:$0xff] %v2062
      %2187 = vst [vmem:[%s311 + $0x10] sm:$0xff] %v2067
      %2188 = vst [vmem:[%s311 + $0x18] sm:$0xff] %v2070
      %2189 = vst [vmem:[%s311 + $0x20] sm:$0xff] %v2075
      %2190 = vst [vmem:[%s311 + $0x28] sm:$0xff] %v2078
      %2191 = vst [vmem:[%s311 + $0x30] sm:$0xff] %v2083
      %2192 = vst [vmem:[%s311 + $0x38] sm:$0xff] %v2086
      %2193 = vst [vmem:[%s311 + $0x40] sm:$0xff] %v2091
      %2194 = vst [vmem:[%s311 + $0x48] sm:$0xff] %v2094
      %2195 = vst [vmem:[%s311 + $0x50] sm:$0xff] %v2099
      %2196 = vst [vmem:[%s311 + $0x58] sm:$0xff] %v2102
      %2197 = vst [vmem:[%s311 + $0x60] sm:$0xff] %v2107
      %2198 = vst [vmem:[%s311 + $0x68] sm:$0xff] %v2110
      %2199 = vst [vmem:[%s311 + $0x70] sm:$0xff] %v2115
      %2200 = vst [vmem:[%s311 + $0x78] sm:$0xff] %v2118
      %2201 = vst [vmem:[%s311 + $0x80] sm:$0xff] %v2123
      %2202 = vst [vmem:[%s311 + $0x88] sm:$0xff] %v2126
      %2203 = vst [vmem:[%s311 + $0x90] sm:$0xff] %v2131
      %2204 = vst [vmem:[%s311 + $0x98] sm:$0xff] %v2134
      %2205 = vst [vmem:[%s311 + $0xa0] sm:$0xff] %v2139
      %2206 = vst [vmem:[%s311 + $0xa8] sm:$0xff] %v2142
      %2207 = vst [vmem:[%s311 + $0xb0] sm:$0xff] %v2147
      %2208 = vst [vmem:[%s311 + $0xb8] sm:$0xff] %v2150
      %2209 = vst [vmem:[%s311 + $0xc0] sm:$0xff] %v2155
      %2210 = vst [vmem:[%s311 + $0xc8] sm:$0xff] %v2158
      %2211 = vst [vmem:[%s311 + $0xd0] sm:$0xff] %v2163
      %2212 = vst [vmem:[%s311 + $0xd8] sm:$0xff] %v2166
      %2213 = vst [vmem:[%s311 + $0xe0] sm:$0xff] %v2171
      %2214 = vst [vmem:[%s311 + $0xe8] sm:$0xff] %v2174
      %2215 = vst [vmem:[%s311 + $0xf0] sm:$0xff] %v2179
      %2216 = vst [vmem:[%s311 + $0xf8] sm:$0xff] %v2182
      %s2217 = smul.u32 32, %s25
      %p2218 = scmp.lt.s32.totalorder %s2217, 63
      %s2219 = scalar_select %p2218, %s2217, 63
      %s2220 = smul.addr %s2219, 8
      %s2221 = scalar_lea.vmem %s8, %s2220
      // Predicated region
      $region49: #{_predict_multi.1} parent=47 // pred_check
        %p2222 = pneg %p202
      $region50: #{_predict_multi.1} parent=47 // pred_check_branch
        %2224 = sbr.rel (%p2222) target = $region52
      $region51: #{_predict_multi.1} parent=47 // pred_region
        %s2225 = smul.u32 32, %s25
      $region52: #{_predict_multi.1} parent=47 // pred_fallthru
        _
    $region48: #{_predict_multi.1} parent=5 // pred_fallthru
      _
    %p2226 = scmp.le.s32.totalorder 2, %s20
    // Predicated region
    $region53: #{_predict_multi.1} parent=5 // pred_check
      %p2227 = pneg %p2226
    $region54: #{_predict_multi.1} parent=5 // pred_check_branch
      %2229 = sbr.rel (%p2227) target = $region56
    $region55: #{_predict_multi.1} parent=5 // pred_region
      %s2230 = ssub.s32 %s20, 2
      // Predicated region
      $region57: #{_predict_multi.1} parent=55 // pred_check
        %p2231 = pneg %p208
      $region58: #{_predict_multi.1} parent=55 // pred_check_branch
        %2233 = sbr.rel (%p2231) target = $region60
      $region59: #{_predict_multi.1} parent=55 // pred_region
        %s2234 = smul.u32 32, %s26
        %p2235 = scmp.lt.s32.totalorder %s2234, 63
        %s2236 = scalar_select %p2235, %s2234, 63
        %s2237 = smul.addr %s2236, 8
        %s2238 = scalar_lea.vmem %s8, %s2237
      $region60: #{_predict_multi.1} parent=55 // pred_fallthru
        _
    $region56: #{_predict_multi.1} parent=5 // pred_fallthru
      _
  $region6: #{_predict_multi.1} parent=0 // loop_footer
    %s24 = sadd.s32 1, %s20
  $region7: #{_predict_multi.1} parent=0 // loop_footer_branch
    %19 = sbr.rel target = $region3
  $region8: #{_predict_multi.1} parent=0 // loop_exit
    _

// kernel: _predict_multi.1
$region0: #{_predict_multi.1}
  #allocation0 [shape = 'u32[]', space=smem, size = 0x4, offset = 0x4, fixed_abs, tag = 'smem constant byte address 0x4 - core index']
  #allocation1 [shape = 'u32[144,128]{1,0:T(1,128)}', space=vmem, size = 0x12000, scoped, tag = 'internal scratch']
  #allocation2 [shape = 's32[1]{0}', space=sflag, size = 0x4, scoped, tag = 'scoped memory for _predict_multi.1']
  #allocation3 [shape = 'u8[512]{0}', space=smem, size = 0x200, scoped, tag = 'prefetched SMEM operand 0']
  %s0 = inlined_call_operand.vmem [shape: s32[2], index: 0, kind: input, shape index: {}]
  %s1 = inlined_call_operand.vmem [shape: s32[512,1], index: 1, kind: input, shape index: {}]
  %s2 = inlined_call_operand.vmem [shape: bf16[256,128], index: 2, kind: input, shape index: {}]
  %s3 = inlined_call_operand.vmem [shape: bf16[16,128], index: 3, kind: input, shape index: {}]
  %s4 = inlined_call_operand.vmem [shape: bf16[128,256], index: 4, kind: input, shape index: {}]
  %s5 = inlined_call_operand.vmem [shape: f32[1,256], index: 5, kind: input, shape index: {}]
  %s6 = inlined_call_operand.vmem [shape: bf16[256,128], index: 6, kind: input, shape index: {}]
  %s7 = inlined_call_operand.vmem [shape: f32[1,128], index: 7, kind: input, shape index: {}]
  %s8 = inlined_call_operand.vmem [shape: f32[512,128], index: 8, kind: output, shape index: {}]
  %s9 = sld [smem:[#allocation0]]
  $region61: #{_predict_multi.1} parent=0
    _
  %s11 = ssub.s32 1, %s9
  %s12 = scalar_select 0, %s11, %s9
  %s13 = sshll.u32 %s0, 4
  %s14 = int_to_ptr.vmem [resolvable:$true] %s13
  %16 = dma.vmem_to_smem %s14, 16, [#allocation3], [#allocation2]
  %17 = dma.done [#allocation2], 16
  %18 = sfence
  loop: start=0, step=1, limit=4
  $region2: #{_predict_multi.1} parent=0 // loop_pre_header
    _
  $region3: #{_predict_multi.1} parent=0 // loop_header
    %s20 = sphi 0, %s24
    %p21 = scmp.ge.s32.totalorder %s20, 4
    %s30 = sphi 0, %s32
    %s33 = sphi 0, %s30
    %s34 = sphi 0, %s33
    %s50 = sphi 0, %s34
    %s54 = sphi 0, %s54
    %s56 = sphi 0, %s54
    %s57 = sphi 0, %s56
    %s71 = sphi 0, %s57
    %s79 = sphi 0, %s81
    %s82 = sphi 0, %s79
    %s83 = sphi 0, %s82
    %s99 = sphi 0, %s83
    %s103 = sphi 0, %s103
    %s105 = sphi 0, %s103
    %s106 = sphi 0, %s105
    %s120 = sphi 0, %s106
    %s124 = sphi 0, %s124
    %s126 = sphi 0, %s124
    %s127 = sphi 0, %s126
    %s141 = sphi 0, %s127
    %s145 = sphi 0, %s145
    %s147 = sphi 0, %s145
    %s148 = sphi 0, %s147
    %s162 = sphi 0, %s148
    %s166 = sphi 0, %s166
    %s168 = sphi 0, %s166
    %s169 = sphi 0, %s168
    %s183 = sphi 0, %s169
    %s189 = sphi 0, %s191
    %s192 = sphi 0, %s189
    %s193 = sphi 0, %s192
    %s209 = sphi 0, %s193
  $region4: #{_predict_multi.1} parent=0 // loop_header_branch
    %23 = sbr.rel (%p21) target = $region8
  $region5: #{_predict_multi.1} parent=0 // loop_body
    %s25 = ssub.s32 %s20, 1
    %s26 = ssub.s32 %s20, 2
    %s27 = sadd.s32 %s20, 1
    %s28 = ssub.s32 %s20, %s27
    %p29 = scmp.eq.s32.totalorder %s28, 0
    %s31 = sadd.s32 %s30, 1
    %s32 = scalar_select %p29, %s30, %s31
    %p35 = pneg %p29
    %p36 = scmp.eq.s32.totalorder %s20, 1
    %p37 = por %p35, %p36
    %p38 = scmp.ne.s32.totalorder %s30, %s33
    %p39 = scmp.eq.s32.totalorder %s20, 0
    %p40 = por %p38, %p39
    %p41 = scmp.ne.s32.totalorder %s30, %s33
    %p42 = scmp.eq.s32.totalorder %s25, 1
    %p43 = por %p41, %p42
    %p44 = scmp.ne.s32.totalorder %s33, %s34
    %p45 = scmp.eq.s32.totalorder %s25, 0
    %p46 = por %p44, %p45
    %p47 = scmp.ne.s32.totalorder %s33, %s34
    %p48 = scmp.eq.s32.totalorder %s26, 1
    %p49 = por %p47, %p48
    %p51 = scmp.ne.s32.totalorder %s34, %s50
    %p52 = scmp.eq.s32.totalorder %s26, 0
    %p53 = por %p51, %p52
    %s55 = sadd.s32 %s54, 1
    %p58 = scmp.eq.s32.totalorder %s20, 1
    %p59 = scmp.ne.s32.totalorder %s54, %s56
    %p60 = scmp.eq.s32.totalorder %s20, 0
    %p61 = por %p59, %p60
    %p62 = scmp.ne.s32.totalorder %s54, %s56
    %p63 = scmp.eq.s32.totalorder %s25, 1
    %p64 = por %p62, %p63
    %p65 = scmp.ne.s32.totalorder %s56, %s57
    %p66 = scmp.eq.s32.totalorder %s25, 0
    %p67 = por %p65, %p66
    %p68 = scmp.ne.s32.totalorder %s56, %s57
    %p69 = scmp.eq.s32.totalorder %s26, 1
    %p70 = por %p68, %p69
    %p72 = scmp.ne.s32.totalorder %s57, %s71
    %p73 = scmp.eq.s32.totalorder %s26, 0
    %p74 = por %p72, %p73
    %s75 = sld [smem:[#allocation3 + %s20]]
    %s76 = sld [smem:[#allocation3 + %s27]]
    %s77 = ssub.s32 %s75, %s76
    %p78 = scmp.eq.s32.totalorder %s77, 0
    %s80 = sadd.s32 %s79, 1
    %s81 = scalar_select %p78, %s79, %s80
    %p84 = pneg %p78
    %p85 = scmp.eq.s32.totalorder %s20, 1
    %p86 = por %p84, %p85
    %p87 = scmp.ne.s32.totalorder %s79, %s82
    %p88 = scmp.eq.s32.totalorder %s20, 0
    %p89 = por %p87, %p88
    %p90 = scmp.ne.s32.totalorder %s79, %s82
    %p91 = scmp.eq.s32.totalorder %s25, 1
    %p92 = por %p90, %p91
    %p93 = scmp.ne.s32.totalorder %s82, %s83
    %p94 = scmp.eq.s32.totalorder %s25, 0
    %p95 = por %p93, %p94
    %p96 = scmp.ne.s32.totalorder %s82, %s83
    %p97 = scmp.eq.s32.totalorder %s26, 1
    %p98 = por %p96, %p97
    %p100 = scmp.ne.s32.totalorder %s83, %s99
    %p101 = scmp.eq.s32.totalorder %s26, 0
    %p102 = por %p100, %p101
    %s104 = sadd.s32 %s103, 1
    %p107 = scmp.eq.s32.totalorder %s20, 1
    %p108 = scmp.ne.s32.totalorder %s103, %s105
    %p109 = scmp.eq.s32.totalorder %s20, 0
    %p110 = por %p108, %p109
    %p111 = scmp.ne.s32.totalorder %s103, %s105
    %p112 = scmp.eq.s32.totalorder %s25, 1
    %p113 = por %p111, %p112
    %p114 = scmp.ne.s32.totalorder %s105, %s106
    %p115 = scmp.eq.s32.totalorder %s25, 0
    %p116 = por %p114, %p115
    %p117 = scmp.ne.s32.totalorder %s105, %s106
    %p118 = scmp.eq.s32.totalorder %s26, 1
    %p119 = por %p117, %p118
    %p121 = scmp.ne.s32.totalorder %s106, %s120
    %p122 = scmp.eq.s32.totalorder %s26, 0
    %p123 = por %p121, %p122
    %s125 = sadd.s32 %s124, 1
    %p128 = scmp.eq.s32.totalorder %s20, 1
    %p129 = scmp.ne.s32.totalorder %s124, %s126
    %p130 = scmp.eq.s32.totalorder %s20, 0
    %p131 = por %p129, %p130
    %p132 = scmp.ne.s32.totalorder %s124, %s126
    %p133 = scmp.eq.s32.totalorder %s25, 1
    %p134 = por %p132, %p133
    %p135 = scmp.ne.s32.totalorder %s126, %s127
    %p136 = scmp.eq.s32.totalorder %s25, 0
    %p137 = por %p135, %p136
    %p138 = scmp.ne.s32.totalorder %s126, %s127
    %p139 = scmp.eq.s32.totalorder %s26, 1
    %p140 = por %p138, %p139
    %p142 = scmp.ne.s32.totalorder %s127, %s141
    %p143 = scmp.eq.s32.totalorder %s26, 0
    %p144 = por %p142, %p143
    %s146 = sadd.s32 %s145, 1
    %p149 = scmp.eq.s32.totalorder %s20, 1
    %p150 = scmp.ne.s32.totalorder %s145, %s147
    %p151 = scmp.eq.s32.totalorder %s20, 0
    %p152 = por %p150, %p151
    %p153 = scmp.ne.s32.totalorder %s145, %s147
    %p154 = scmp.eq.s32.totalorder %s25, 1
    %p155 = por %p153, %p154
    %p156 = scmp.ne.s32.totalorder %s147, %s148
    %p157 = scmp.eq.s32.totalorder %s25, 0
    %p158 = por %p156, %p157
    %p159 = scmp.ne.s32.totalorder %s147, %s148
    %p160 = scmp.eq.s32.totalorder %s26, 1
    %p161 = por %p159, %p160
    %p163 = scmp.ne.s32.totalorder %s148, %s162
    %p164 = scmp.eq.s32.totalorder %s26, 0
    %p165 = por %p163, %p164
    %s167 = sadd.s32 %s166, 1
    %p170 = scmp.eq.s32.totalorder %s20, 1
    %p171 = scmp.ne.s32.totalorder %s166, %s168
    %p172 = scmp.eq.s32.totalorder %s20, 0
    %p173 = por %p171, %p172
    %p174 = scmp.ne.s32.totalorder %s166, %s168
    %p175 = scmp.eq.s32.totalorder %s25, 1
    %p176 = por %p174, %p175
    %p177 = scmp.ne.s32.totalorder %s168, %s169
    %p178 = scmp.eq.s32.totalorder %s25, 0
    %p179 = por %p177, %p178
    %p180 = scmp.ne.s32.totalorder %s168, %s169
    %p181 = scmp.eq.s32.totalorder %s26, 1
    %p182 = por %p180, %p181
    %p184 = scmp.ne.s32.totalorder %s169, %s183
    %p185 = scmp.eq.s32.totalorder %s26, 0
    %p186 = por %p184, %p185
    %s187 = ssub.s32 %s20, %s27
    %p188 = scmp.eq.s32.totalorder %s187, 0
    %s190 = sadd.s32 %s189, 1
    %s191 = scalar_select %p188, %s189, %s190
    %p194 = pneg %p188
    %p195 = scmp.eq.s32.totalorder %s20, 1
    %p196 = por %p194, %p195
    %p197 = scmp.ne.s32.totalorder %s189, %s192
    %p198 = scmp.eq.s32.totalorder %s20, 0
    %p199 = por %p197, %p198
    %p200 = scmp.ne.s32.totalorder %s189, %s192
    %p201 = scmp.eq.s32.totalorder %s25, 1
    %p202 = por %p200, %p201
    %p203 = scmp.ne.s32.totalorder %s192, %s193
    %p204 = scmp.eq.s32.totalorder %s25, 0
    %p205 = por %p203, %p204
    %p206 = scmp.ne.s32.totalorder %s192, %s193
    %p207 = scmp.eq.s32.totalorder %s26, 1
    %p208 = por %p206, %p207
    %p210 = scmp.ne.s32.totalorder %s193, %s209
    %p211 = scmp.eq.s32.totalorder %s26, 0
    %p212 = por %p210, %p211
    %p213 = scmp.le.s32.totalorder 1, %s20
    %p214 = scmp.lt.s32.totalorder %s20, 3
    %p215 = pnand %p213, %p214
    %p216 = pneg %p215
    // Predicated region
    $region9: #{_predict_multi.1} parent=5 // pred_check
      _
    $region10: #{_predict_multi.1} parent=5 // pred_check_branch
      %218 = sbr.rel (%p215) target = $region12
    $region11: #{_predict_multi.1} parent=5 // pred_region
      %s219 = ssub.s32 %s20, 1
      // Predicated region
      $region13: #{_predict_multi.1} parent=11 // pred_check
        %p220 = pneg %p67
      $region14: #{_predict_multi.1} parent=11 // pred_check_branch
        %222 = sbr.rel (%p220) target = $region16
      $region15: #{_predict_multi.1} parent=11 // pred_region
        _
      $region16: #{_predict_multi.1} parent=11 // pred_fallthru
        _
      // Predicated region
      $region17: #{_predict_multi.1} parent=11 // pred_check
        %p223 = pneg %p116
      $region18: #{_predict_multi.1} parent=11 // pred_check_branch
        %225 = sbr.rel (%p223) target = $region20
      $region19: #{_predict_multi.1} parent=11 // pred_region
        _
      $region20: #{_predict_multi.1} parent=11 // pred_fallthru
        _
      // Predicated region
      $region21: #{_predict_multi.1} parent=11 // pred_check
        %p226 = pneg %p137
      $region22: #{_predict_multi.1} parent=11 // pred_check_branch
        %228 = sbr.rel (%p226) target = $region24
      $region23: #{_predict_multi.1} parent=11 // pred_region
        _
      $region24: #{_predict_multi.1} parent=11 // pred_fallthru
        _
      // Predicated region
      $region25: #{_predict_multi.1} parent=11 // pred_check
        %p229 = pneg %p158
      $region26: #{_predict_multi.1} parent=11 // pred_check_branch
        %231 = sbr.rel (%p229) target = $region28
      $region27: #{_predict_multi.1} parent=11 // pred_region
        _
      $region28: #{_predict_multi.1} parent=11 // pred_fallthru
        _
      // Predicated region
      $region29: #{_predict_multi.1} parent=11 // pred_check
        %p232 = pneg %p179
      $region30: #{_predict_multi.1} parent=11 // pred_check_branch
        %234 = sbr.rel (%p232) target = $region32
      $region31: #{_predict_multi.1} parent=11 // pred_region
        _
      $region32: #{_predict_multi.1} parent=11 // pred_fallthru
        _
    $region12: #{_predict_multi.1} parent=5 // pred_fallthru
      _
    %p235 = scmp.lt.s32.totalorder %s20, 2
    // Predicated region
    $region33: #{_predict_multi.1} parent=5 // pred_check
      %p236 = pneg %p235
    $region34: #{_predict_multi.1} parent=5 // pred_check_branch
      %238 = sbr.rel (%p236) target = $region36
    $region35: #{_predict_multi.1} parent=5 // pred_region
      // Predicated region
      $region37: #{_predict_multi.1} parent=35 // pred_check
        %p239 = pneg %p40
      $region38: #{_predict_multi.1} parent=35 // pred_check_branch
        %241 = sbr.rel (%p239) target = $region40
      $region39: #{_predict_multi.1} parent=35 // pred_region
        %s242 = smul.u32 32, %s20
        %p243 = scmp.lt.s32.totalorder %s242, 63
        %s244 = scalar_select %p243, %s242, 63
        %s245 = smul.addr %s244, 8
        %s246 = scalar_lea.vmem %s1, %s245
        %s247 = smul.u32 32, %s20
      $region40: #{_predict_multi.1} parent=35 // pred_fallthru
        _
      // Predicated region
      $region41: #{_predict_multi.1} parent=35 // pred_check
        %p248 = pneg %p89
      $region42: #{_predict_multi.1} parent=35 // pred_check_branch
        %250 = sbr.rel (%p248) target = $region44
      $region43: #{_predict_multi.1} parent=35 // pred_region
        %s251 = sld [smem:[#allocation3 + %s20]]
        %p252 = scmp.lt.s32.totalorder %s251, 1
        %s253 = scalar_select %p252, %s251, 1
        %s254 = smul.addr %s253, 4
        %s255 = scalar_lea.vmem %s3, %s254
        %s256 = sld [smem:[#allocation3 + %s20]]
      $region44: #{_predict_multi.1} parent=35 // pred_fallthru
        _
    $region36: #{_predict_multi.1} parent=5 // pred_fallthru
      _
    %p257 = scmp.le.s32.totalorder 1, %s20
    %p258 = scmp.lt.s32.totalorder %s20, 3
    %p259 = pnand %p257, %p258
    %p260 = pneg %p259
    // Predicated region
    $region45: #{_predict_multi.1} parent=5 // pred_check
      _
    $region46: #{_predict_multi.1} parent=5 // pred_check_branch
      %262 = sbr.rel (%p259) target = $region48
    $region47: #{_predict_multi.1} parent=5 // pred_region
      %s263 = ssub.s32 %s20, 1
      %s264 = smul.u32 32, %s25
      %p265 = scmp.lt.s32.totalorder %s264, 63
      %s266 = scalar_select %p265, %s264, 63
      %s267 = smul.addr %s266, 8
      %s268 = scalar_lea.vmem %s1, %s267
      %p269 = pneg %p46
      %p270 = pneg %p43
      %p271 = pneg %p67
      %p272 = pneg %p64
      %s273 = sld [smem:[#allocation3 + %s25]]
      %p274 = scmp.lt.s32.totalorder %s273, 1
      %s275 = scalar_select %p274, %s273, 1
      %s276 = smul.addr %s275, 4
      %s277 = scalar_lea.vmem %s3, %s276
      %p278 = pneg %p95
      %p279 = pneg %p92
      %p280 = pneg %p116
      %p281 = pneg %p113
      %p282 = pneg %p137
      %p283 = pneg %p134
      %p284 = pneg %p158
      %p285 = pneg %p155
      %p286 = pneg %p179
      %p287 = pneg %p176
      %p288 = pneg %p205
      %p289 = pneg %p202
      %s290 = smul.u32 32, %s25
      %p291 = scmp.lt.s32.totalorder %s290, 63
      %s292 = scalar_select %p291, %s290, 63
      %s293 = smul.addr %s292, 8
      %s294 = scalar_lea.vmem %s8, %s293
      %s295 = smul.u32 32, %s25
      %p296 = scmp.lt.s32.totalorder %s295, 63
      %s297 = scalar_select %p296, %s295, 63
      %s298 = smul.addr %s297, 8
      %s299 = scalar_lea.vmem %s1, %s298
      %s300 = smul.u32 32, %s25
      %s301 = sld [smem:[#allocation3 + %s25]]
      %p302 = scmp.lt.s32.totalorder %s301, 1
      %s303 = scalar_select %p302, %s301, 1
      %s304 = smul.addr %s303, 4
      %s305 = scalar_lea.vmem %s3, %s304
      %s306 = sld [smem:[#allocation3 + %s25]]
      %s307 = smul.u32 32, %s25
      %p308 = scmp.lt.s32.totalorder %s307, 63
      %s309 = scalar_select %p308, %s307, 63
      %s310 = smul.addr %s309, 8
      %s311 = scalar_lea.vmem %s8, %s310
      %s312 = smul.u32 32, %s25
      %v314 = vlaneseq
      %v315 = vand.u32 %v314, 127
      %v316 = vadd.s32 %v315, 128
      %v317 = vld [vmem:[%s299] sm:$0xff]
      %v318 = vld [vmem:[%s299 + $0x8] sm:$0xff]
      %v319 = vld [vmem:[%s299 + $0x10] sm:$0xff]
      %v320 = vld [vmem:[%s299 + $0x18] sm:$0xff]
      %v321 = vld [vmem:[%s299 + $0x20] sm:$0xff]
      %v322 = vld [vmem:[%s299 + $0x28] sm:$0xff]
      %v323 = vld [vmem:[%s299 + $0x30] sm:$0xff]
      %v324 = vld [vmem:[%s299 + $0x38] sm:$0xff]
      %v325 = vld [vmem:[%s299 + $0x40] sm:$0xff]
      %v326 = vld [vmem:[%s299 + $0x48] sm:$0xff]
      %v327 = vld [vmem:[%s299 + $0x50] sm:$0xff]
      %v328 = vld [vmem:[%s299 + $0x58] sm:$0xff]
      %v329 = vld [vmem:[%s299 + $0x60] sm:$0xff]
      %v330 = vld [vmem:[%s299 + $0x68] sm:$0xff]
      %v331 = vld [vmem:[%s299 + $0x70] sm:$0xff]
      %v332 = vld [vmem:[%s299 + $0x78] sm:$0xff]
      %v333 = vld [vmem:[%s299 + $0x80] sm:$0xff]
      %v334 = vld [vmem:[%s299 + $0x88] sm:$0xff]
      %v335 = vld [vmem:[%s299 + $0x90] sm:$0xff]
      %v336 = vld [vmem:[%s299 + $0x98] sm:$0xff]
      %v337 = vld [vmem:[%s299 + $0xa0] sm:$0xff]
      %v338 = vld [vmem:[%s299 + $0xa8] sm:$0xff]
      %v339 = vld [vmem:[%s299 + $0xb0] sm:$0xff]
      %v340 = vld [vmem:[%s299 + $0xb8] sm:$0xff]
      %v341 = vld [vmem:[%s299 + $0xc0] sm:$0xff]
      %v342 = vld [vmem:[%s299 + $0xc8] sm:$0xff]
      %v343 = vld [vmem:[%s299 + $0xd0] sm:$0xff]
      %v344 = vld [vmem:[%s299 + $0xd8] sm:$0xff]
      %v345 = vld [vmem:[%s299 + $0xe0] sm:$0xff]
      %v346 = vld [vmem:[%s299 + $0xe8] sm:$0xff]
      %v347 = vld [vmem:[%s299 + $0xf0] sm:$0xff]
      %v348 = vld [vmem:[%s299 + $0xf8] sm:$0xff]
      %349 = vset.pattern.permute.xlu0 0
      %350 = vperm.xlu0 %349, %v317
      %v351 = vpop.permute.xlu0 %350
      %352 = vset.pattern.permute.xlu0 0
      %353 = vperm.xlu0 %352, %v318
      %v354 = vpop.permute.xlu0 %353
      %355 = vset.pattern.permute.xlu0 0
      %356 = vperm.xlu0 %355, %v319
      %v357 = vpop.permute.xlu0 %356
      %358 = vset.pattern.permute.xlu0 0
      %359 = vperm.xlu0 %358, %v320
      %v360 = vpop.permute.xlu0 %359
      %361 = vset.pattern.permute.xlu0 0
      %362 = vperm.xlu0 %361, %v321
      %v363 = vpop.permute.xlu0 %362
      %364 = vset.pattern.permute.xlu0 0
      %365 = vperm.xlu0 %364, %v322
      %v366 = vpop.permute.xlu0 %365
      %367 = vset.pattern.permute.xlu0 0
      %368 = vperm.xlu0 %367, %v323
      %v369 = vpop.permute.xlu0 %368
      %370 = vset.pattern.permute.xlu0 0
      %371 = vperm.xlu0 %370, %v324
      %v372 = vpop.permute.xlu0 %371
      %373 = vset.pattern.permute.xlu0 0
      %374 = vperm.xlu0 %373, %v325
      %v375 = vpop.permute.xlu0 %374
      %376 = vset.pattern.permute.xlu0 0
      %377 = vperm.xlu0 %376, %v326
      %v378 = vpop.permute.xlu0 %377
      %379 = vset.pattern.permute.xlu0 0
      %380 = vperm.xlu0 %379, %v327
      %v381 = vpop.permute.xlu0 %380
      %382 = vset.pattern.permute.xlu0 0
      %383 = vperm.xlu0 %382, %v328
      %v384 = vpop.permute.xlu0 %383
      %385 = vset.pattern.permute.xlu0 0
      %386 = vperm.xlu0 %385, %v329
      %v387 = vpop.permute.xlu0 %386
      %388 = vset.pattern.permute.xlu0 0
      %389 = vperm.xlu0 %388, %v330
      %v390 = vpop.permute.xlu0 %389
      %391 = vset.pattern.permute.xlu0 0
      %392 = vperm.xlu0 %391, %v331
      %v393 = vpop.permute.xlu0 %392
      %394 = vset.pattern.permute.xlu0 0
      %395 = vperm.xlu0 %394, %v332
      %v396 = vpop.permute.xlu0 %395
      %397 = vset.pattern.permute.xlu0 0
      %398 = vperm.xlu0 %397, %v333
      %v399 = vpop.permute.xlu0 %398
      %400 = vset.pattern.permute.xlu0 0
      %401 = vperm.xlu0 %400, %v334
      %v402 = vpop.permute.xlu0 %401
      %403 = vset.pattern.permute.xlu0 0
      %404 = vperm.xlu0 %403, %v335
      %v405 = vpop.permute.xlu0 %404
      %406 = vset.pattern.permute.xlu0 0
      %407 = vperm.xlu0 %406, %v336
      %v408 = vpop.permute.xlu0 %407
      %409 = vset.pattern.permute.xlu0 0
      %410 = vperm.xlu0 %409, %v337
      %v411 = vpop.permute.xlu0 %410
      %412 = vset.pattern.permute.xlu0 0
      %413 = vperm.xlu0 %412, %v338
      %v414 = vpop.permute.xlu0 %413
      %415 = vset.pattern.permute.xlu0 0
      %416 = vperm.xlu0 %415, %v339
      %v417 = vpop.permute.xlu0 %416
      %418 = vset.pattern.permute.xlu0 0
      %419 = vperm.xlu0 %418, %v340
      %v420 = vpop.permute.xlu0 %419
      %421 = vset.pattern.permute.xlu0 0
      %422 = vperm.xlu0 %421, %v341
      %v423 = vpop.permute.xlu0 %422
      %424 = vset.pattern.permute.xlu0 0
      %425 = vperm.xlu0 %424, %v342
      %v426 = vpop.permute.xlu0 %425
      %427 = vset.pattern.permute.xlu0 0
      %428 = vperm.xlu0 %427, %v343
      %v429 = vpop.permute.xlu0 %428
      %430 = vset.pattern.permute.xlu0 0
      %431 = vperm.xlu0 %430, %v344
      %v432 = vpop.permute.xlu0 %431
      %433 = vset.pattern.permute.xlu0 0
      %434 = vperm.xlu0 %433, %v345
      %v435 = vpop.permute.xlu0 %434
      %436 = vset.pattern.permute.xlu0 0
      %437 = vperm.xlu0 %436, %v346
      %v438 = vpop.permute.xlu0 %437
      %439 = vset.pattern.permute.xlu0 0
      %440 = vperm.xlu0 %439, %v347
      %v441 = vpop.permute.xlu0 %440
      %442 = vset.pattern.permute.xlu0 0
      %443 = vperm.xlu0 %442, %v348
      %v444 = vpop.permute.xlu0 %443
      %vm445 = vcmp.eq.s32.totalorder %v315, %v351
      %vm446 = vcmp.eq.s32.totalorder %v316, %v351
      %vm447 = vcmp.eq.s32.totalorder %v315, %v354
      %vm448 = vcmp.eq.s32.totalorder %v316, %v354
      %vm449 = vcmp.eq.s32.totalorder %v315, %v357
      %vm450 = vcmp.eq.s32.totalorder %v316, %v357
      %vm451 = vcmp.eq.s32.totalorder %v315, %v360
      %vm452 = vcmp.eq.s32.totalorder %v316, %v360
      %vm453 = vcmp.eq.s32.totalorder %v315, %v363
      %vm454 = vcmp.eq.s32.totalorder %v316, %v363
      %vm455 = vcmp.eq.s32.totalorder %v315, %v366
      %vm456 = vcmp.eq.s32.totalorder %v316, %v366
      %vm457 = vcmp.eq.s32.totalorder %v315, %v369
      %vm458 = vcmp.eq.s32.totalorder %v316, %v369
      %vm459 = vcmp.eq.s32.totalorder %v315, %v372
      %vm460 = vcmp.eq.s32.totalorder %v316, %v372
      %vm461 = vcmp.eq.s32.totalorder %v315, %v375
      %vm462 = vcmp.eq.s32.totalorder %v316, %v375
      %vm463 = vcmp.eq.s32.totalorder %v315, %v378
      %vm464 = vcmp.eq.s32.totalorder %v316, %v378
      %vm465 = vcmp.eq.s32.totalorder %v315, %v381
      %vm466 = vcmp.eq.s32.totalorder %v316, %v381
      %vm467 = vcmp.eq.s32.totalorder %v315, %v384
      %vm468 = vcmp.eq.s32.totalorder %v316, %v384
      %vm469 = vcmp.eq.s32.totalorder %v315, %v387
      %vm470 = vcmp.eq.s32.totalorder %v316, %v387
      %vm471 = vcmp.eq.s32.totalorder %v315, %v390
      %vm472 = vcmp.eq.s32.totalorder %v316, %v390
      %vm473 = vcmp.eq.s32.totalorder %v315, %v393
      %vm474 = vcmp.eq.s32.totalorder %v316, %v393
      %vm475 = vcmp.eq.s32.totalorder %v315, %v396
      %vm476 = vcmp.eq.s32.totalorder %v316, %v396
      %vm477 = vcmp.eq.s32.totalorder %v315, %v399
      %vm478 = vcmp.eq.s32.totalorder %v316, %v399
      %vm479 = vcmp.eq.s32.totalorder %v315, %v402
      %vm480 = vcmp.eq.s32.totalorder %v316, %v402
      %vm481 = vcmp.eq.s32.totalorder %v315, %v405
      %vm482 = vcmp.eq.s32.totalorder %v316, %v405
      %vm483 = vcmp.eq.s32.totalorder %v315, %v408
      %vm484 = vcmp.eq.s32.totalorder %v316, %v408
      %vm485 = vcmp.eq.s32.totalorder %v315, %v411
      %vm486 = vcmp.eq.s32.totalorder %v316, %v411
      %vm487 = vcmp.eq.s32.totalorder %v315, %v414
      %vm488 = vcmp.eq.s32.totalorder %v316, %v414
      %vm489 = vcmp.eq.s32.totalorder %v315, %v417
      %vm490 = vcmp.eq.s32.totalorder %v316, %v417
      %vm491 = vcmp.eq.s32.totalorder %v315, %v420
      %vm492 = vcmp.eq.s32.totalorder %v316, %v420
      %vm493 = vcmp.eq.s32.totalorder %v315, %v423
      %vm494 = vcmp.eq.s32.totalorder %v316, %v423
      %vm495 = vcmp.eq.s32.totalorder %v315, %v426
      %vm496 = vcmp.eq.s32.totalorder %v316, %v426
      %vm497 = vcmp.eq.s32.totalorder %v315, %v429
      %vm498 = vcmp.eq.s32.totalorder %v316, %v429
      %vm499 = vcmp.eq.s32.totalorder %v315, %v432
      %vm500 = vcmp.eq.s32.totalorder %v316, %v432
      %vm501 = vcmp.eq.s32.totalorder %v315, %v435
      %vm502 = vcmp.eq.s32.totalorder %v316, %v435
      %vm503 = vcmp.eq.s32.totalorder %v315, %v438
      %vm504 = vcmp.eq.s32.totalorder %v316, %v438
      %vm505 = vcmp.eq.s32.totalorder %v315, %v441
      %vm506 = vcmp.eq.s32.totalorder %v316, %v441
      %vm507 = vcmp.eq.s32.totalorder %v315, %v444
      %vm508 = vcmp.eq.s32.totalorder %v316, %v444
      %v509 = vsel %vm445, 1, 0
      %v510 = vsel %vm446, 1, 0
      %v511 = vsel %vm447, 1, 0
      %v512 = vsel %vm448, 1, 0
      %v513 = vsel %vm449, 1, 0
      %v514 = vsel %vm450, 1, 0
      %v515 = vsel %vm451, 1, 0
      %v516 = vsel %vm452, 1, 0
      %v517 = vsel %vm453, 1, 0
      %v518 = vsel %vm454, 1, 0
      %v519 = vsel %vm455, 1, 0
      %v520 = vsel %vm456, 1, 0
      %v521 = vsel %vm457, 1, 0
      %v522 = vsel %vm458, 1, 0
      %v523 = vsel %vm459, 1, 0
      %v524 = vsel %vm460, 1, 0
      %v525 = vsel %vm461, 1, 0
      %v526 = vsel %vm462, 1, 0
      %v527 = vsel %vm463, 1, 0
      %v528 = vsel %vm464, 1, 0
      %v529 = vsel %vm465, 1, 0
      %v530 = vsel %vm466, 1, 0
      %v531 = vsel %vm467, 1, 0
      %v532 = vsel %vm468, 1, 0
      %v533 = vsel %vm469, 1, 0
      %v534 = vsel %vm470, 1, 0
      %v535 = vsel %vm471, 1, 0
      %v536 = vsel %vm472, 1, 0
      %v537 = vsel %vm473, 1, 0
      %v538 = vsel %vm474, 1, 0
      %v539 = vsel %vm475, 1, 0
      %v540 = vsel %vm476, 1, 0
      %v541 = vsel %vm477, 1, 0
      %v542 = vsel %vm478, 1, 0
      %v543 = vsel %vm479, 1, 0
      %v544 = vsel %vm480, 1, 0
      %v545 = vsel %vm481, 1, 0
      %v546 = vsel %vm482, 1, 0
      %v547 = vsel %vm483, 1, 0
      %v548 = vsel %vm484, 1, 0
      %v549 = vsel %vm485, 1, 0
      %v550 = vsel %vm486, 1, 0
      %v551 = vsel %vm487, 1, 0
      %v552 = vsel %vm488, 1, 0
      %v553 = vsel %vm489, 1, 0
      %v554 = vsel %vm490, 1, 0
      %v555 = vsel %vm491, 1, 0
      %v556 = vsel %vm492, 1, 0
      %v557 = vsel %vm493, 1, 0
      %v558 = vsel %vm494, 1, 0
      %v559 = vsel %vm495, 1, 0
      %v560 = vsel %vm496, 1, 0
      %v561 = vsel %vm497, 1, 0
      %v562 = vsel %vm498, 1, 0
      %v563 = vsel %vm499, 1, 0
      %v564 = vsel %vm500, 1, 0
      %v565 = vsel %vm501, 1, 0
      %v566 = vsel %vm502, 1, 0
      %v567 = vsel %vm503, 1, 0
      %v568 = vsel %vm504, 1, 0
      %v569 = vsel %vm505, 1, 0
      %v570 = vsel %vm506, 1, 0
      %v571 = vsel %vm507, 1, 0
      %v572 = vsel %vm508, 1, 0
      %v573 = vcvt.s32.f32 %v509
      %v574 = vcvt.s32.f32 %v510
      %v575 = vcvt.s32.f32 %v511
      %v576 = vcvt.s32.f32 %v512
      %v577 = vcvt.s32.f32 %v513
      %v578 = vcvt.s32.f32 %v514
      %v579 = vcvt.s32.f32 %v515
      %v580 = vcvt.s32.f32 %v516
      %v581 = vcvt.s32.f32 %v517
      %v582 = vcvt.s32.f32 %v518
      %v583 = vcvt.s32.f32 %v519
      %v584 = vcvt.s32.f32 %v520
      %v585 = vcvt.s32.f32 %v521
      %v586 = vcvt.s32.f32 %v522
      %v587 = vcvt.s32.f32 %v523
      %v588 = vcvt.s32.f32 %v524
      %v589 = vcvt.s32.f32 %v525
      %v590 = vcvt.s32.f32 %v526
      %v591 = vcvt.s32.f32 %v527
      %v592 = vcvt.s32.f32 %v528
      %v593 = vcvt.s32.f32 %v529
      %v594 = vcvt.s32.f32 %v530
      %v595 = vcvt.s32.f32 %v531
      %v596 = vcvt.s32.f32 %v532
      %v597 = vcvt.s32.f32 %v533
      %v598 = vcvt.s32.f32 %v534
      %v599 = vcvt.s32.f32 %v535
      %v600 = vcvt.s32.f32 %v536
      %v601 = vcvt.s32.f32 %v537
      %v602 = vcvt.s32.f32 %v538
      %v603 = vcvt.s32.f32 %v539
      %v604 = vcvt.s32.f32 %v540
      %v605 = vcvt.s32.f32 %v541
      %v606 = vcvt.s32.f32 %v542
      %v607 = vcvt.s32.f32 %v543
      %v608 = vcvt.s32.f32 %v544
      %v609 = vcvt.s32.f32 %v545
      %v610 = vcvt.s32.f32 %v546
      %v611 = vcvt.s32.f32 %v547
      %v612 = vcvt.s32.f32 %v548
      %v613 = vcvt.s32.f32 %v549
      %v614 = vcvt.s32.f32 %v550
      %v615 = vcvt.s32.f32 %v551
      %v616 = vcvt.s32.f32 %v552
      %v617 = vcvt.s32.f32 %v553
      %v618 = vcvt.s32.f32 %v554
      %v619 = vcvt.s32.f32 %v555
      %v620 = vcvt.s32.f32 %v556
      %v621 = vcvt.s32.f32 %v557
      %v622 = vcvt.s32.f32 %v558
      %v623 = vcvt.s32.f32 %v559
      %v624 = vcvt.s32.f32 %v560
      %v625 = vcvt.s32.f32 %v561
      %v626 = vcvt.s32.f32 %v562
      %v627 = vcvt.s32.f32 %v563
      %v628 = vcvt.s32.f32 %v564
      %v629 = vcvt.s32.f32 %v565
      %v630 = vcvt.s32.f32 %v566
      %v631 = vcvt.s32.f32 %v567
      %v632 = vcvt.s32.f32 %v568
      %v633 = vcvt.s32.f32 %v569
      %v634 = vcvt.s32.f32 %v570
      %v635 = vcvt.s32.f32 %v571
      %v636 = vcvt.s32.f32 %v572
      %v637 = vpack.c.bf16 %v575, %v573
      %v638 = vpack.c.bf16 %v576, %v574
      %v639 = vpack.c.bf16 %v579, %v577
      %v640 = vpack.c.bf16 %v580, %v578
      %v641 = vpack.c.bf16 %v583, %v581
      %v642 = vpack.c.bf16 %v584, %v582
      %v643 = vpack.c.bf16 %v587, %v585
      %v644 = vpack.c.bf16 %v588, %v586
      %v645 = vpack.c.bf16 %v591, %v589
      %v646 = vpack.c.bf16 %v592, %v590
      %v647 = vpack.c.bf16 %v595, %v593
      %v648 = vpack.c.bf16 %v596, %v594
      %v649 = vpack.c.bf16 %v599, %v597
      %v650 = vpack.c.bf16 %v600, %v598
      %v651 = vpack.c.bf16 %v603, %v601
      %v652 = vpack.c.bf16 %v604, %v602
      %v653 = vpack.c.bf16 %v607, %v605
      %v654 = vpack.c.bf16 %v608, %v606
      %v655 = vpack.c.bf16 %v611, %v609
      %v656 = vpack.c.bf16 %v612, %v610
      %v657 = vpack.c.bf16 %v615, %v613
      %v658 = vpack.c.bf16 %v616, %v614
      %v659 = vpack.c.bf16 %v619, %v617
      %v660 = vpack.c.bf16 %v620, %v618
      %v661 = vpack.c.bf16 %v623, %v621
      %v662 = vpack.c.bf16 %v624, %v622
      %v663 = vpack.c.bf16 %v627, %v625
      %v664 = vpack.c.bf16 %v628, %v626
      %v665 = vpack.c.bf16 %v631, %v629
      %v666 = vpack.c.bf16 %v632, %v630
      %v667 = vpack.c.bf16 %v635, %v633
      %v668 = vpack.c.bf16 %v636, %v634
      %v669 = vld [vmem:[%s2] sm:$0xf]
      %v670 = vld [vmem:[%s2 + $0x4] sm:$0xf]
      %v671 = vld [vmem:[%s2 + $0x8] sm:$0xf]
      %v672 = vld [vmem:[%s2 + $0xc] sm:$0xf]
      %v673 = vld [vmem:[%s2 + $0x10] sm:$0xf]
      %v674 = vld [vmem:[%s2 + $0x14] sm:$0xf]
      %v675 = vld [vmem:[%s2 + $0x18] sm:$0xf]
      %v676 = vld [vmem:[%s2 + $0x1c] sm:$0xf]
      %v677 = vld [vmem:[%s2 + $0x20] sm:$0xf]
      %v678 = vld [vmem:[%s2 + $0x24] sm:$0xf]
      %v679 = vld [vmem:[%s2 + $0x28] sm:$0xf]
      %v680 = vld [vmem:[%s2 + $0x2c] sm:$0xf]
      %v681 = vld [vmem:[%s2 + $0x30] sm:$0xf]
      %v682 = vld [vmem:[%s2 + $0x34] sm:$0xf]
      %v683 = vld [vmem:[%s2 + $0x38] sm:$0xf]
      %v684 = vld [vmem:[%s2 + $0x3c] sm:$0xf]
      %v685 = vld [vmem:[%s2 + $0x40] sm:$0xf]
      %v686 = vld [vmem:[%s2 + $0x44] sm:$0xf]
      %v687 = vld [vmem:[%s2 + $0x48] sm:$0xf]
      %v688 = vld [vmem:[%s2 + $0x4c] sm:$0xf]
      %v689 = vld [vmem:[%s2 + $0x50] sm:$0xf]
      %v690 = vld [vmem:[%s2 + $0x54] sm:$0xf]
      %v691 = vld [vmem:[%s2 + $0x58] sm:$0xf]
      %v692 = vld [vmem:[%s2 + $0x5c] sm:$0xf]
      %v693 = vld [vmem:[%s2 + $0x60] sm:$0xf]
      %v694 = vld [vmem:[%s2 + $0x64] sm:$0xf]
      %v695 = vld [vmem:[%s2 + $0x68] sm:$0xf]
      %v696 = vld [vmem:[%s2 + $0x6c] sm:$0xf]
      %v697 = vld [vmem:[%s2 + $0x70] sm:$0xf]
      %v698 = vld [vmem:[%s2 + $0x74] sm:$0xf]
      %v699 = vld [vmem:[%s2 + $0x78] sm:$0xf]
      %v700 = vld [vmem:[%s2 + $0x7c] sm:$0xf]
      %v701 = vld [vmem:[%s305] sm:$0x1]
      %v702 = vunpack.c.l.bf16 %v701
      %v703 = vlaneseq
      %v704 = vshrl.u32 %v703, 7
      %v705 = vsub.s32 0, %v704
      %v706 = vrot.slane %v702, %v705
      %v739 = vunpack.c.l.b16 %v669
      %v740 = vunpack.c.l.b16 %v670
      %v741 = vunpack.c.l.b16 %v671
      %v742 = vunpack.c.l.b16 %v672
      %v743 = vunpack.c.l.b16 %v673
      %v744 = vunpack.c.l.b16 %v674
      %v745 = vunpack.c.l.b16 %v675
      %v746 = vunpack.c.l.b16 %v676
      %v747 = vunpack.c.l.b16 %v677
      %v748 = vunpack.c.l.b16 %v678
      %v749 = vunpack.c.l.b16 %v679
      %v750 = vunpack.c.l.b16 %v680
      %v751 = vunpack.c.l.b16 %v681
      %v752 = vunpack.c.l.b16 %v682
      %v753 = vunpack.c.l.b16 %v683
      %v754 = vunpack.c.l.b16 %v684
      %v755 = vunpack.c.l.b16 %v685
      %v756 = vunpack.c.l.b16 %v686
      %v757 = vunpack.c.l.b16 %v687
      %v758 = vunpack.c.l.b16 %v688
      %v759 = vunpack.c.l.b16 %v689
      %v760 = vunpack.c.l.b16 %v690
      %v761 = vunpack.c.l.b16 %v691
      %v762 = vunpack.c.l.b16 %v692
      %v763 = vunpack.c.l.b16 %v693
      %v764 = vunpack.c.l.b16 %v694
      %v765 = vunpack.c.l.b16 %v695
      %v766 = vunpack.c.l.b16 %v696
      %v767 = vunpack.c.l.b16 %v697
      %v768 = vunpack.c.l.b16 %v698
      %v769 = vunpack.c.l.b16 %v699
      %v770 = vunpack.c.l.b16 %v700
      %v771 = vpack.c.b16 %v740, %v739
      %v772 = vpack.c.b16 %v742, %v741
      %v773 = vpack.c.b16 %v744, %v743
      %v774 = vpack.c.b16 %v746, %v745
      %v775 = vpack.c.b16 %v748, %v747
      %v776 = vpack.c.b16 %v750, %v749
      %v777 = vpack.c.b16 %v752, %v751
      %v778 = vpack.c.b16 %v754, %v753
      %v779 = vpack.c.b16 %v756, %v755
      %v780 = vpack.c.b16 %v758, %v757
      %v781 = vpack.c.b16 %v760, %v759
      %v782 = vpack.c.b16 %v762, %v761
      %v783 = vpack.c.b16 %v764, %v763
      %v784 = vpack.c.b16 %v766, %v765
      %v785 = vpack.c.b16 %v768, %v767
      %v786 = vpack.c.b16 %v770, %v769
      %803 = vmatprep.subr.bf16.mxu0 0
      %804 = vmatpush1.bf16.msra.mxu0 %v771
      %805 = vmatprep.subr.bf16.mxu0 0
      %806 = vmatpush1.bf16.msra.mxu0 %v772
      %807 = vmatprep.subr.bf16.mxu0 0
      %808 = vmatpush1.bf16.msra.mxu0 %v773
      %809 = vmatprep.subr.bf16.mxu0 0
      %810 = vmatpush1.bf16.msra.mxu0 %v774
      %811 = vmatprep.subr.bf16.mxu0 0
      %812 = vmatpush1.bf16.msra.mxu0 %v775
      %813 = vmatprep.subr.bf16.mxu0 0
      %814 = vmatpush1.bf16.msra.mxu0 %v776
      %815 = vmatprep.subr.bf16.mxu0 0
      %816 = vmatpush1.bf16.msra.mxu0 %v777
      %817 = vmatprep.subr.bf16.mxu0 0
      %818 = vmatpush1.bf16.msra.mxu0 %v778
      %819 = vmatprep.subr.bf16.mxu0 0
      %820 = vmatpush1.bf16.msra.mxu0 %v779
      %821 = vmatprep.subr.bf16.mxu0 0
      %822 = vmatpush1.bf16.msra.mxu0 %v780
      %823 = vmatprep.subr.bf16.mxu0 0
      %824 = vmatpush1.bf16.msra.mxu0 %v781
      %825 = vmatprep.subr.bf16.mxu0 0
      %826 = vmatpush1.bf16.msra.mxu0 %v782
      %827 = vmatprep.subr.bf16.mxu0 0
      %828 = vmatpush1.bf16.msra.mxu0 %v783
      %829 = vmatprep.subr.bf16.mxu0 0
      %830 = vmatpush1.bf16.msra.mxu0 %v784
      %831 = vmatprep.subr.bf16.mxu0 0
      %832 = vmatpush1.bf16.msra.mxu0 %v785
      %833 = vmatprep.subr.bf16.mxu0 0
      %834 = vmatpush1.bf16.msra.mxu0 %v786
      %835 = vmatprep.mubr.bf16.mxu0 %v638
      %836 = vmatmul.mubr.bf16.gmra.mrb[0].mxu0 %v637
      %v837 = vpop.f32.mrb[0].mxu0
      %v838 = vadd.f32 %v706, %v837
      %v839 = vpop.f32.mrb[0].mxu0
      %v840 = vpop.f32.mrb[0].mxu0
      %v841 = vadd.f32 %v706, %v840
      %v842 = vpop.f32.mrb[0].mxu0
      %843 = vmatprep.mubr.bf16.mxu0 %v640
      %844 = vmatmul.mubr.bf16.gmra.mrb[0].mxu0 %v639
      %v845 = vpop.f32.mrb[0].mxu0
      %v846 = vadd.f32 %v706, %v845
      %v847 = vpop.f32.mrb[0].mxu0
      %v848 = vpop.f32.mrb[0].mxu0
      %v849 = vadd.f32 %v706, %v848
      %v850 = vpop.f32.mrb[0].mxu0
      %851 = vmatprep.mubr.bf16.mxu0 %v642
      %852 = vmatmul.mubr.bf16.gmra.mrb[0].mxu0 %v641
      %v853 = vpop.f32.mrb[0].mxu0
      %v854 = vadd.f32 %v706, %v853
      %v855 = vpop.f32.mrb[0].mxu0
      %v856 = vpop.f32.mrb[0].mxu0
      %v857 = vadd.f32 %v706, %v856
      %v858 = vpop.f32.mrb[0].mxu0
      %859 = vmatprep.mubr.bf16.mxu0 %v644
      %860 = vmatmul.mubr.bf16.gmra.mrb[0].mxu0 %v643
      %v861 = vpop.f32.mrb[0].mxu0
      %v862 = vadd.f32 %v706, %v861
      %v863 = vpop.f32.mrb[0].mxu0
      %v864 = vpop.f32.mrb[0].mxu0
      %v865 = vadd.f32 %v706, %v864
      %v866 = vpop.f32.mrb[0].mxu0
      %867 = vmatprep.mubr.bf16.mxu0 %v646
      %868 = vmatmul.mubr.bf16.gmra.mrb[0].mxu0 %v645
      %v869 = vpop.f32.mrb[0].mxu0
      %v870 = vadd.f32 %v706, %v869
      %v871 = vpop.f32.mrb[0].mxu0
      %v872 = vpop.f32.mrb[0].mxu0
      %v873 = vadd.f32 %v706, %v872
      %v874 = vpop.f32.mrb[0].mxu0
      %875 = vmatprep.mubr.bf16.mxu0 %v648
      %876 = vmatmul.mubr.bf16.gmra.mrb[0].mxu0 %v647
      %v877 = vpop.f32.mrb[0].mxu0
      %v878 = vadd.f32 %v706, %v877
      %v879 = vpop.f32.mrb[0].mxu0
      %v880 = vpop.f32.mrb[0].mxu0
      %v881 = vadd.f32 %v706, %v880
      %v882 = vpop.f32.mrb[0].mxu0
      %883 = vmatprep.mubr.bf16.mxu0 %v650
      %884 = vmatmul.mubr.bf16.gmra.mrb[0].mxu0 %v649
      %v885 = vpop.f32.mrb[0].mxu0
      %v886 = vadd.f32 %v706, %v885
      %v887 = vpop.f32.mrb[0].mxu0
      %v888 = vpop.f32.mrb[0].mxu0
      %v889 = vadd.f32 %v706, %v888
      %v890 = vpop.f32.mrb[0].mxu0
      %891 = vmatprep.mubr.bf16.mxu0 %v652
      %892 = vmatmul.mubr.bf16.gmra.mrb[0].mxu0 %v651
      %v893 = vpop.f32.mrb[0].mxu0
      %v894 = vadd.f32 %v706, %v893
      %v895 = vpop.f32.mrb[0].mxu0
      %v896 = vpop.f32.mrb[0].mxu0
      %v897 = vadd.f32 %v706, %v896
      %v898 = vpop.f32.mrb[0].mxu0
      %899 = vmatprep.mubr.bf16.mxu0 %v654
      %900 = vmatmul.mubr.bf16.gmra.mrb[0].mxu0 %v653
      %v901 = vpop.f32.mrb[0].mxu0
      %v902 = vadd.f32 %v706, %v901
      %v903 = vpop.f32.mrb[0].mxu0
      %v904 = vpop.f32.mrb[0].mxu0
      %v905 = vadd.f32 %v706, %v904
      %v906 = vpop.f32.mrb[0].mxu0
      %907 = vmatprep.mubr.bf16.mxu0 %v656
      %908 = vmatmul.mubr.bf16.gmra.mrb[0].mxu0 %v655
      %v909 = vpop.f32.mrb[0].mxu0
      %v910 = vadd.f32 %v706, %v909
      %v911 = vpop.f32.mrb[0].mxu0
      %v912 = vpop.f32.mrb[0].mxu0
      %v913 = vadd.f32 %v706, %v912
      %v914 = vpop.f32.mrb[0].mxu0
      %915 = vmatprep.mubr.bf16.mxu0 %v658
      %916 = vmatmul.mubr.bf16.gmra.mrb[0].mxu0 %v657
      %v917 = vpop.f32.mrb[0].mxu0
      %v918 = vadd.f32 %v706, %v917
      %v919 = vpop.f32.mrb[0].mxu0
      %v920 = vpop.f32.mrb[0].mxu0
      %v921 = vadd.f32 %v706, %v920
      %v922 = vpop.f32.mrb[0].mxu0
      %923 = vmatprep.mubr.bf16.mxu0 %v660
      %924 = vmatmul.mubr.bf16.gmra.mrb[0].mxu0 %v659
      %v925 = vpop.f32.mrb[0].mxu0
      %v926 = vadd.f32 %v706, %v925
      %v927 = vpop.f32.mrb[0].mxu0
      %v928 = vpop.f32.mrb[0].mxu0
      %v929 = vadd.f32 %v706, %v928
      %v930 = vpop.f32.mrb[0].mxu0
      %931 = vmatprep.mubr.bf16.mxu0 %v662
      %932 = vmatmul.mubr.bf16.gmra.mrb[0].mxu0 %v661
      %v933 = vpop.f32.mrb[0].mxu0
      %v934 = vadd.f32 %v706, %v933
      %v935 = vpop.f32.mrb[0].mxu0
      %v936 = vpop.f32.mrb[0].mxu0
      %v937 = vadd.f32 %v706, %v936
      %v938 = vpop.f32.mrb[0].mxu0
      %939 = vmatprep.mubr.bf16.mxu0 %v664
      %940 = vmatmul.mubr.bf16.gmra.mrb[0].mxu0 %v663
      %v941 = vpop.f32.mrb[0].mxu0
      %v942 = vadd.f32 %v706, %v941
      %v943 = vpop.f32.mrb[0].mxu0
      %v944 = vpop.f32.mrb[0].mxu0
      %v945 = vadd.f32 %v706, %v944
      %v946 = vpop.f32.mrb[0].mxu0
      %947 = vmatprep.mubr.bf16.mxu0 %v666
      %948 = vmatmul.mubr.bf16.gmra.mrb[0].mxu0 %v665
      %v949 = vpop.f32.mrb[0].mxu0
      %v950 = vadd.f32 %v706, %v949
      %v951 = vpop.f32.mrb[0].mxu0
      %v952 = vpop.f32.mrb[0].mxu0
      %v953 = vadd.f32 %v706, %v952
      %v954 = vpop.f32.mrb[0].mxu0
      %955 = vmatprep.mubr.bf16.mxu0 %v668
      %956 = vmatmul.mubr.bf16.gmra.mrb[0].mxu0 %v667
      %v957 = vpop.f32.mrb[0].mxu0
      %v958 = vadd.f32 %v706, %v957
      %v959 = vpop.f32.mrb[0].mxu0
      %v960 = vpop.f32.mrb[0].mxu0
      %v961 = vadd.f32 %v706, %v960
      %v962 = vpop.f32.mrb[0].mxu0
      %963 = vdwg.mxu0
      %v964 = vpack.c.bf16 %v841, %v838
      %v965 = vpack.c.bf16 %v849, %v846
      %v966 = vpack.c.bf16 %v857, %v854
      %v967 = vpack.c.bf16 %v865, %v862
      %v968 = vpack.c.bf16 %v873, %v870
      %v969 = vpack.c.bf16 %v881, %v878
      %v970 = vpack.c.bf16 %v889, %v886
      %v971 = vpack.c.bf16 %v897, %v894
      %v972 = vpack.c.bf16 %v905, %v902
      %v973 = vpack.c.bf16 %v913, %v910
      %v974 = vpack.c.bf16 %v921, %v918
      %v975 = vpack.c.bf16 %v929, %v926
      %v976 = vpack.c.bf16 %v937, %v934
      %v977 = vpack.c.bf16 %v945, %v942
      %v978 = vpack.c.bf16 %v953, %v950
      %v979 = vpack.c.bf16 %v961, %v958
      %v980 = vld [vmem:[%s4] sm:$0xff]
      %v981 = vld [vmem:[%s4 + $0x8] sm:$0xff]
      %v982 = vld [vmem:[%s4 + $0x10] sm:$0xff]
      %v983 = vld [vmem:[%s4 + $0x18] sm:$0xff]
      %v984 = vld [vmem:[%s4 + $0x20] sm:$0xff]
      %v985 = vld [vmem:[%s4 + $0x28] sm:$0xff]
      %v986 = vld [vmem:[%s4 + $0x30] sm:$0xff]
      %v987 = vld [vmem:[%s4 + $0x38] sm:$0xff]
      %v988 = vld [vmem:[%s4 + $0x40] sm:$0xff]
      %v989 = vld [vmem:[%s4 + $0x48] sm:$0xff]
      %v990 = vld [vmem:[%s4 + $0x50] sm:$0xff]
      %v991 = vld [vmem:[%s4 + $0x58] sm:$0xff]
      %v992 = vld [vmem:[%s4 + $0x60] sm:$0xff]
      %v993 = vld [vmem:[%s4 + $0x68] sm:$0xff]
      %v994 = vld [vmem:[%s4 + $0x70] sm:$0xff]
      %v995 = vld [vmem:[%s4 + $0x78] sm:$0xff]
      %v996 = vld [vmem:[%s5] sm:$0x3]
      %v998 = vlaneseq
      %v999 = vshrl.u32 %v998, 7
      %v1000 = vsub.s32 0, %v999
      %v1001 = vrot.slane %v996, %v1000
      %v1002 = vlaneseq
      %v1003 = vshrl.u32 %v1002, 7
      %v1004 = vsub.s32 1, %v1003
      %v1005 = vrot.slane %v996, %v1004
      %v1024 = vunpack.c.l.b16 %v980
      %v1025 = vunpack.c.h.b16 %v980
      %v1026 = vunpack.c.l.b16 %v981
      %v1027 = vunpack.c.h.b16 %v981
      %v1028 = vunpack.c.l.b16 %v982
      %v1029 = vunpack.c.h.b16 %v982
      %v1030 = vunpack.c.l.b16 %v983
      %v1031 = vunpack.c.h.b16 %v983
      %v1032 = vunpack.c.l.b16 %v984
      %v1033 = vunpack.c.h.b16 %v984
      %v1034 = vunpack.c.l.b16 %v985
      %v1035 = vunpack.c.h.b16 %v985
      %v1036 = vunpack.c.l.b16 %v986
      %v1037 = vunpack.c.h.b16 %v986
      %v1038 = vunpack.c.l.b16 %v987
      %v1039 = vunpack.c.h.b16 %v987
      %v1040 = vunpack.c.l.b16 %v988
      %v1041 = vunpack.c.h.b16 %v988
      %v1042 = vunpack.c.l.b16 %v989
      %v1043 = vunpack.c.h.b16 %v989
      %v1044 = vunpack.c.l.b16 %v990
      %v1045 = vunpack.c.h.b16 %v990
      %v1046 = vunpack.c.l.b16 %v991
      %v1047 = vunpack.c.h.b16 %v991
      %v1048 = vunpack.c.l.b16 %v992
      %v1049 = vunpack.c.h.b16 %v992
      %v1050 = vunpack.c.l.b16 %v993
      %v1051 = vunpack.c.h.b16 %v993
      %v1052 = vunpack.c.l.b16 %v994
      %v1053 = vunpack.c.h.b16 %v994
      %v1054 = vunpack.c.l.b16 %v995
      %v1055 = vunpack.c.h.b16 %v995
      %v1056 = vpack.c.b16 %v1026, %v1024
      %v1057 = vpack.c.b16 %v1027, %v1025
      %v1058 = vpack.c.b16 %v1030, %v1028
      %v1059 = vpack.c.b16 %v1031, %v1029
      %v1060 = vpack.c.b16 %v1034, %v1032
      %v1061 = vpack.c.b16 %v1035, %v1033
      %v1062 = vpack.c.b16 %v1038, %v1036
      %v1063 = vpack.c.b16 %v1039, %v1037
      %v1064 = vpack.c.b16 %v1042, %v1040
      %v1065 = vpack.c.b16 %v1043, %v1041
      %v1066 = vpack.c.b16 %v1046, %v1044
      %v1067 = vpack.c.b16 %v1047, %v1045
      %v1068 = vpack.c.b16 %v1050, %v1048
      %v1069 = vpack.c.b16 %v1051, %v1049
      %v1070 = vpack.c.b16 %v1054, %v1052
      %v1071 = vpack.c.b16 %v1055, %v1053
      %1088 = vmatprep.subr.bf16.mxu0 %v1057
      %1089 = vmatpush1.bf16.msra.mxu0 %v1056
      %1090 = vmatprep.subr.bf16.mxu0 %v1059
      %1091 = vmatpush1.bf16.msra.mxu0 %v1058
      %1092 = vmatprep.subr.bf16.mxu0 %v1061
      %1093 = vmatpush1.bf16.msra.mxu0 %v1060
      %1094 = vmatprep.subr.bf16.mxu0 %v1063
      %1095 = vmatpush1.bf16.msra.mxu0 %v1062
      %1096 = vmatprep.subr.bf16.mxu0 %v1065
      %1097 = vmatpush1.bf16.msra.mxu0 %v1064
      %1098 = vmatprep.subr.bf16.mxu0 %v1067
      %1099 = vmatpush1.bf16.msra.mxu0 %v1066
      %1100 = vmatprep.subr.bf16.mxu0 %v1069
      %1101 = vmatpush1.bf16.msra.mxu0 %v1068
      %1102 = vmatprep.subr.bf16.mxu0 %v1071
      %1103 = vmatpush1.bf16.msra.mxu0 %v1070
      %1104 = vmatprep.subr.bf16.mxu0 0
      %1105 = vmatpush1.bf16.msra.mxu0 0
      %1106 = vmatprep.subr.bf16.mxu0 0
      %1107 = vmatpush1.bf16.msra.mxu0 0
      %1108 = vmatprep.subr.bf16.mxu0 0
      %1109 = vmatpush1.bf16.msra.mxu0 0
      %1110 = vmatprep.subr.bf16.mxu0 0
      %1111 = vmatpush1.bf16.msra.mxu0 0
      %1112 = vmatprep.subr.bf16.mxu0 0
      %1113 = vmatpush1.bf16.msra.mxu0 0
      %1114 = vmatprep.subr.bf16.mxu0 0
      %1115 = vmatpush1.bf16.msra.mxu0 0
      %1116 = vmatprep.subr.bf16.mxu0 0
      %1117 = vmatpush1.bf16.msra.mxu0 0
      %1118 = vmatprep.subr.bf16.mxu0 0
      %1119 = vmatpush1.bf16.msra.mxu0 0
      %1120 = vmatprep.mubr.bf16.mxu0 0
      %1121 = vmatmul.mubr.bf16.gmra.mrb[0].mxu0 %v964
      %v1122 = vpop.f32.mrb[0].mxu0
      %v1123 = vadd.f32 %v1001, %v1122
      %v1124 = vpop.f32.mrb[0].mxu0
      %v1125 = vadd.f32 %v1005, %v1124
      %v1126 = vpop.f32.mrb[0].mxu0
      %v1127 = vadd.f32 %v1001, %v1126
      %v1128 = vpop.f32.mrb[0].mxu0
      %v1129 = vadd.f32 %v1005, %v1128
      %1130 = vmatprep.mubr.bf16.mxu0 0
      %1131 = vmatmul.mubr.bf16.gmra.mrb[0].mxu0 %v965
      %v1132 = vpop.f32.mrb[0].mxu0
      %v1133 = vadd.f32 %v1001, %v1132
      %v1134 = vpop.f32.mrb[0].mxu0
      %v1135 = vadd.f32 %v1005, %v1134
      %v1136 = vpop.f32.mrb[0].mxu0
      %v1137 = vadd.f32 %v1001, %v1136
      %v1138 = vpop.f32.mrb[0].mxu0
      %v1139 = vadd.f32 %v1005, %v1138
      %1140 = vmatprep.mubr.bf16.mxu0 0
      %1141 = vmatmul.mubr.bf16.gmra.mrb[0].mxu0 %v966
      %v1142 = vpop.f32.mrb[0].mxu0
      %v1143 = vadd.f32 %v1001, %v1142
      %v1144 = vpop.f32.mrb[0].mxu0
      %v1145 = vadd.f32 %v1005, %v1144
      %v1146 = vpop.f32.mrb[0].mxu0
      %v1147 = vadd.f32 %v1001, %v1146
      %v1148 = vpop.f32.mrb[0].mxu0
      %v1149 = vadd.f32 %v1005, %v1148
      %1150 = vmatprep.mubr.bf16.mxu0 0
      %1151 = vmatmul.mubr.bf16.gmra.mrb[0].mxu0 %v967
      %v1152 = vpop.f32.mrb[0].mxu0
      %v1153 = vadd.f32 %v1001, %v1152
      %v1154 = vpop.f32.mrb[0].mxu0
      %v1155 = vadd.f32 %v1005, %v1154
      %v1156 = vpop.f32.mrb[0].mxu0
      %v1157 = vadd.f32 %v1001, %v1156
      %v1158 = vpop.f32.mrb[0].mxu0
      %v1159 = vadd.f32 %v1005, %v1158
      %1160 = vmatprep.mubr.bf16.mxu0 0
      %1161 = vmatmul.mubr.bf16.gmra.mrb[0].mxu0 %v968
      %v1162 = vpop.f32.mrb[0].mxu0
      %v1163 = vadd.f32 %v1001, %v1162
      %v1164 = vpop.f32.mrb[0].mxu0
      %v1165 = vadd.f32 %v1005, %v1164
      %v1166 = vpop.f32.mrb[0].mxu0
      %v1167 = vadd.f32 %v1001, %v1166
      %v1168 = vpop.f32.mrb[0].mxu0
      %v1169 = vadd.f32 %v1005, %v1168
      %1170 = vmatprep.mubr.bf16.mxu0 0
      %1171 = vmatmul.mubr.bf16.gmra.mrb[0].mxu0 %v969
      %v1172 = vpop.f32.mrb[0].mxu0
      %v1173 = vadd.f32 %v1001, %v1172
      %v1174 = vpop.f32.mrb[0].mxu0
      %v1175 = vadd.f32 %v1005, %v1174
      %v1176 = vpop.f32.mrb[0].mxu0
      %v1177 = vadd.f32 %v1001, %v1176
      %v1178 = vpop.f32.mrb[0].mxu0
      %v1179 = vadd.f32 %v1005, %v1178
      %1180 = vmatprep.mubr.bf16.mxu0 0
      %1181 = vmatmul.mubr.bf16.gmra.mrb[0].mxu0 %v970
      %v1182 = vpop.f32.mrb[0].mxu0
      %v1183 = vadd.f32 %v1001, %v1182
      %v1184 = vpop.f32.mrb[0].mxu0
      %v1185 = vadd.f32 %v1005, %v1184
      %v1186 = vpop.f32.mrb[0].mxu0
      %v1187 = vadd.f32 %v1001, %v1186
      %v1188 = vpop.f32.mrb[0].mxu0
      %v1189 = vadd.f32 %v1005, %v1188
      %1190 = vmatprep.mubr.bf16.mxu0 0
      %1191 = vmatmul.mubr.bf16.gmra.mrb[0].mxu0 %v971
      %v1192 = vpop.f32.mrb[0].mxu0
      %v1193 = vadd.f32 %v1001, %v1192
      %v1194 = vpop.f32.mrb[0].mxu0
      %v1195 = vadd.f32 %v1005, %v1194
      %v1196 = vpop.f32.mrb[0].mxu0
      %v1197 = vadd.f32 %v1001, %v1196
      %v1198 = vpop.f32.mrb[0].mxu0
      %v1199 = vadd.f32 %v1005, %v1198
      %1200 = vmatprep.mubr.bf16.mxu0 0
      %1201 = vmatmul.mubr.bf16.gmra.mrb[0].mxu0 %v972
      %v1202 = vpop.f32.mrb[0].mxu0
      %v1203 = vadd.f32 %v1001, %v1202
      %v1204 = vpop.f32.mrb[0].mxu0
      %v1205 = vadd.f32 %v1005, %v1204
      %v1206 = vpop.f32.mrb[0].mxu0
      %v1207 = vadd.f32 %v1001, %v1206
      %v1208 = vpop.f32.mrb[0].mxu0
      %v1209 = vadd.f32 %v1005, %v1208
      %1210 = vmatprep.mubr.bf16.mxu0 0
      %1211 = vmatmul.mubr.bf16.gmra.mrb[0].mxu0 %v973
      %v1212 = vpop.f32.mrb[0].mxu0
      %v1213 = vadd.f32 %v1001, %v1212
      %v1214 = vpop.f32.mrb[0].mxu0
      %v1215 = vadd.f32 %v1005, %v1214
      %v1216 = vpop.f32.mrb[0].mxu0
      %v1217 = vadd.f32 %v1001, %v1216
      %v1218 = vpop.f32.mrb[0].mxu0
      %v1219 = vadd.f32 %v1005, %v1218
      %1220 = vmatprep.mubr.bf16.mxu0 0
      %1221 = vmatmul.mubr.bf16.gmra.mrb[0].mxu0 %v974
      %v1222 = vpop.f32.mrb[0].mxu0
      %v1223 = vadd.f32 %v1001, %v1222
      %v1224 = vpop.f32.mrb[0].mxu0
      %v1225 = vadd.f32 %v1005, %v1224
      %v1226 = vpop.f32.mrb[0].mxu0
      %v1227 = vadd.f32 %v1001, %v1226
      %v1228 = vpop.f32.mrb[0].mxu0
      %v1229 = vadd.f32 %v1005, %v1228
      %1230 = vmatprep.mubr.bf16.mxu0 0
      %1231 = vmatmul.mubr.bf16.gmra.mrb[0].mxu0 %v975
      %v1232 = vpop.f32.mrb[0].mxu0
      %v1233 = vadd.f32 %v1001, %v1232
      %v1234 = vpop.f32.mrb[0].mxu0
      %v1235 = vadd.f32 %v1005, %v1234
      %v1236 = vpop.f32.mrb[0].mxu0
      %v1237 = vadd.f32 %v1001, %v1236
      %v1238 = vpop.f32.mrb[0].mxu0
      %v1239 = vadd.f32 %v1005, %v1238
      %1240 = vmatprep.mubr.bf16.mxu0 0
      %1241 = vmatmul.mubr.bf16.gmra.mrb[0].mxu0 %v976
      %v1242 = vpop.f32.mrb[0].mxu0
      %v1243 = vadd.f32 %v1001, %v1242
      %v1244 = vpop.f32.mrb[0].mxu0
      %v1245 = vadd.f32 %v1005, %v1244
      %v1246 = vpop.f32.mrb[0].mxu0
      %v1247 = vadd.f32 %v1001, %v1246
      %v1248 = vpop.f32.mrb[0].mxu0
      %v1249 = vadd.f32 %v1005, %v1248
      %1250 = vmatprep.mubr.bf16.mxu0 0
      %1251 = vmatmul.mubr.bf16.gmra.mrb[0].mxu0 %v977
      %v1252 = vpop.f32.mrb[0].mxu0
      %v1253 = vadd.f32 %v1001, %v1252
      %v1254 = vpop.f32.mrb[0].mxu0
      %v1255 = vadd.f32 %v1005, %v1254
      %v1256 = vpop.f32.mrb[0].mxu0
      %v1257 = vadd.f32 %v1001, %v1256
      %v1258 = vpop.f32.mrb[0].mxu0
      %v1259 = vadd.f32 %v1005, %v1258
      %1260 = vmatprep.mubr.bf16.mxu0 0
      %1261 = vmatmul.mubr.bf16.gmra.mrb[0].mxu0 %v978
      %v1262 = vpop.f32.mrb[0].mxu0
      %v1263 = vadd.f32 %v1001, %v1262
      %v1264 = vpop.f32.mrb[0].mxu0
      %v1265 = vadd.f32 %v1005, %v1264
      %v1266 = vpop.f32.mrb[0].mxu0
      %v1267 = vadd.f32 %v1001, %v1266
      %v1268 = vpop.f32.mrb[0].mxu0
      %v1269 = vadd.f32 %v1005, %v1268
      %1270 = vmatprep.mubr.bf16.mxu0 0
      %1271 = vmatmul.mubr.bf16.gmra.mrb[0].mxu0 %v979
      %v1272 = vpop.f32.mrb[0].mxu0
      %v1273 = vadd.f32 %v1001, %v1272
      %v1274 = vpop.f32.mrb[0].mxu0
      %v1275 = vadd.f32 %v1005, %v1274
      %v1276 = vpop.f32.mrb[0].mxu0
      %v1277 = vadd.f32 %v1001, %v1276
      %v1278 = vpop.f32.mrb[0].mxu0
      %v1279 = vadd.f32 %v1005, %v1278
      %1280 = vdwg.mxu0
      %v1281 = vmul.f32 %v1123, %v1123
      %v1282 = vmul.f32 %v1125, %v1125
      %v1283 = vmul.f32 %v1127, %v1127
      %v1284 = vmul.f32 %v1129, %v1129
      %v1285 = vmul.f32 %v1133, %v1133
      %v1286 = vmul.f32 %v1135, %v1135
      %v1287 = vmul.f32 %v1137, %v1137
      %v1288 = vmul.f32 %v1139, %v1139
      %v1289 = vmul.f32 %v1143, %v1143
      %v1290 = vmul.f32 %v1145, %v1145
      %v1291 = vmul.f32 %v1147, %v1147
      %v1292 = vmul.f32 %v1149, %v1149
      %v1293 = vmul.f32 %v1153, %v1153
      %v1294 = vmul.f32 %v1155, %v1155
      %v1295 = vmul.f32 %v1157, %v1157
      %v1296 = vmul.f32 %v1159, %v1159
      %v1297 = vmul.f32 %v1163, %v1163
      %v1298 = vmul.f32 %v1165, %v1165
      %v1299 = vmul.f32 %v1167, %v1167
      %v1300 = vmul.f32 %v1169, %v1169
      %v1301 = vmul.f32 %v1173, %v1173
      %v1302 = vmul.f32 %v1175, %v1175
      %v1303 = vmul.f32 %v1177, %v1177
      %v1304 = vmul.f32 %v1179, %v1179
      %v1305 = vmul.f32 %v1183, %v1183
      %v1306 = vmul.f32 %v1185, %v1185
      %v1307 = vmul.f32 %v1187, %v1187
      %v1308 = vmul.f32 %v1189, %v1189
      %v1309 = vmul.f32 %v1193, %v1193
      %v1310 = vmul.f32 %v1195, %v1195
      %v1311 = vmul.f32 %v1197, %v1197
      %v1312 = vmul.f32 %v1199, %v1199
      %v1313 = vmul.f32 %v1203, %v1203
      %v1314 = vmul.f32 %v1205, %v1205
      %v1315 = vmul.f32 %v1207, %v1207
      %v1316 = vmul.f32 %v1209, %v1209
      %v1317 = vmul.f32 %v1213, %v1213
      %v1318 = vmul.f32 %v1215, %v1215
      %v1319 = vmul.f32 %v1217, %v1217
      %v1320 = vmul.f32 %v1219, %v1219
      %v1321 = vmul.f32 %v1223, %v1223
      %v1322 = vmul.f32 %v1225, %v1225
      %v1323 = vmul.f32 %v1227, %v1227
      %v1324 = vmul.f32 %v1229, %v1229
      %v1325 = vmul.f32 %v1233, %v1233
      %v1326 = vmul.f32 %v1235, %v1235
      %v1327 = vmul.f32 %v1237, %v1237
      %v1328 = vmul.f32 %v1239, %v1239
      %v1329 = vmul.f32 %v1243, %v1243
      %v1330 = vmul.f32 %v1245, %v1245
      %v1331 = vmul.f32 %v1247, %v1247
      %v1332 = vmul.f32 %v1249, %v1249
      %v1333 = vmul.f32 %v1253, %v1253
      %v1334 = vmul.f32 %v1255, %v1255
      %v1335 = vmul.f32 %v1257, %v1257
      %v1336 = vmul.f32 %v1259, %v1259
      %v1337 = vmul.f32 %v1263, %v1263
      %v1338 = vmul.f32 %v1265, %v1265
      %v1339 = vmul.f32 %v1267, %v1267
      %v1340 = vmul.f32 %v1269, %v1269
      %v1341 = vmul.f32 %v1273, %v1273
      %v1342 = vmul.f32 %v1275, %v1275
      %v1343 = vmul.f32 %v1277, %v1277
      %v1344 = vmul.f32 %v1279, %v1279
      %v1345 = vmul.f32 %v1123, %v1281
      %v1346 = vmul.f32 %v1125, %v1282
      %v1347 = vmul.f32 %v1127, %v1283
      %v1348 = vmul.f32 %v1129, %v1284
      %v1349 = vmul.f32 %v1133, %v1285
      %v1350 = vmul.f32 %v1135, %v1286
      %v1351 = vmul.f32 %v1137, %v1287
      %v1352 = vmul.f32 %v1139, %v1288
      %v1353 = vmul.f32 %v1143, %v1289
      %v1354 = vmul.f32 %v1145, %v1290
      %v1355 = vmul.f32 %v1147, %v1291
      %v1356 = vmul.f32 %v1149, %v1292
      %v1357 = vmul.f32 %v1153, %v1293
      %v1358 = vmul.f32 %v1155, %v1294
      %v1359 = vmul.f32 %v1157, %v1295
      %v1360 = vmul.f32 %v1159, %v1296
      %v1361 = vmul.f32 %v1163, %v1297
      %v1362 = vmul.f32 %v1165, %v1298
      %v1363 = vmul.f32 %v1167, %v1299
      %v1364 = vmul.f32 %v1169, %v1300
      %v1365 = vmul.f32 %v1173, %v1301
      %v1366 = vmul.f32 %v1175, %v1302
      %v1367 = vmul.f32 %v1177, %v1303
      %v1368 = vmul.f32 %v1179, %v1304
      %v1369 = vmul.f32 %v1183, %v1305
      %v1370 = vmul.f32 %v1185, %v1306
      %v1371 = vmul.f32 %v1187, %v1307
      %v1372 = vmul.f32 %v1189, %v1308
      %v1373 = vmul.f32 %v1193, %v1309
      %v1374 = vmul.f32 %v1195, %v1310
      %v1375 = vmul.f32 %v1197, %v1311
      %v1376 = vmul.f32 %v1199, %v1312
      %v1377 = vmul.f32 %v1203, %v1313
      %v1378 = vmul.f32 %v1205, %v1314
      %v1379 = vmul.f32 %v1207, %v1315
      %v1380 = vmul.f32 %v1209, %v1316
      %v1381 = vmul.f32 %v1213, %v1317
      %v1382 = vmul.f32 %v1215, %v1318
      %v1383 = vmul.f32 %v1217, %v1319
      %v1384 = vmul.f32 %v1219, %v1320
      %v1385 = vmul.f32 %v1223, %v1321
      %v1386 = vmul.f32 %v1225, %v1322
      %v1387 = vmul.f32 %v1227, %v1323
      %v1388 = vmul.f32 %v1229, %v1324
      %v1389 = vmul.f32 %v1233, %v1325
      %v1390 = vmul.f32 %v1235, %v1326
      %v1391 = vmul.f32 %v1237, %v1327
      %v1392 = vmul.f32 %v1239, %v1328
      %v1393 = vmul.f32 %v1243, %v1329
      %v1394 = vmul.f32 %v1245, %v1330
      %v1395 = vmul.f32 %v1247, %v1331
      %v1396 = vmul.f32 %v1249, %v1332
      %v1397 = vmul.f32 %v1253, %v1333
      %v1398 = vmul.f32 %v1255, %v1334
      %v1399 = vmul.f32 %v1257, %v1335
      %v1400 = vmul.f32 %v1259, %v1336
      %v1401 = vmul.f32 %v1263, %v1337
      %v1402 = vmul.f32 %v1265, %v1338
      %v1403 = vmul.f32 %v1267, %v1339
      %v1404 = vmul.f32 %v1269, %v1340
      %v1405 = vmul.f32 %v1273, %v1341
      %v1406 = vmul.f32 %v1275, %v1342
      %v1407 = vmul.f32 %v1277, %v1343
      %v1408 = vmul.f32 %v1279, %v1344
      %v1409 = vmul.f32 %v1345, 0.044715
      %v1410 = vmul.f32 %v1346, 0.044715
      %v1411 = vmul.f32 %v1347, 0.044715
      %v1412 = vmul.f32 %v1348, 0.044715
      %v1413 = vmul.f32 %v1349, 0.044715
      %v1414 = vmul.f32 %v1350, 0.044715
      %v1415 = vmul.f32 %v1351, 0.044715
      %v1416 = vmul.f32 %v1352, 0.044715
      %v1417 = vmul.f32 %v1353, 0.044715
      %v1418 = vmul.f32 %v1354, 0.044715
      %v1419 = vmul.f32 %v1355, 0.044715
      %v1420 = vmul.f32 %v1356, 0.044715
      %v1421 = vmul.f32 %v1357, 0.044715
      %v1422 = vmul.f32 %v1358, 0.044715
      %v1423 = vmul.f32 %v1359, 0.044715
      %v1424 = vmul.f32 %v1360, 0.044715
      %v1425 = vmul.f32 %v1361, 0.044715
      %v1426 = vmul.f32 %v1362, 0.044715
      %v1427 = vmul.f32 %v1363, 0.044715
      %v1428 = vmul.f32 %v1364, 0.044715
      %v1429 = vmul.f32 %v1365, 0.044715
      %v1430 = vmul.f32 %v1366, 0.044715
      %v1431 = vmul.f32 %v1367, 0.044715
      %v1432 = vmul.f32 %v1368, 0.044715
      %v1433 = vmul.f32 %v1369, 0.044715
      %v1434 = vmul.f32 %v1370, 0.044715
      %v1435 = vmul.f32 %v1371, 0.044715
      %v1436 = vmul.f32 %v1372, 0.044715
      %v1437 = vmul.f32 %v1373, 0.044715
      %v1438 = vmul.f32 %v1374, 0.044715
      %v1439 = vmul.f32 %v1375, 0.044715
      %v1440 = vmul.f32 %v1376, 0.044715
      %v1441 = vmul.f32 %v1377, 0.044715
      %v1442 = vmul.f32 %v1378, 0.044715
      %v1443 = vmul.f32 %v1379, 0.044715
      %v1444 = vmul.f32 %v1380, 0.044715
      %v1445 = vmul.f32 %v1381, 0.044715
      %v1446 = vmul.f32 %v1382, 0.044715
      %v1447 = vmul.f32 %v1383, 0.044715
      %v1448 = vmul.f32 %v1384, 0.044715
      %v1449 = vmul.f32 %v1385, 0.044715
      %v1450 = vmul.f32 %v1386, 0.044715
      %v1451 = vmul.f32 %v1387, 0.044715
      %v1452 = vmul.f32 %v1388, 0.044715
      %v1453 = vmul.f32 %v1389, 0.044715
      %v1454 = vmul.f32 %v1390, 0.044715
      %v1455 = vmul.f32 %v1391, 0.044715
      %v1456 = vmul.f32 %v1392, 0.044715
      %v1457 = vmul.f32 %v1393, 0.044715
      %v1458 = vmul.f32 %v1394, 0.044715
      %v1459 = vmul.f32 %v1395, 0.044715
      %v1460 = vmul.f32 %v1396, 0.044715
      %v1461 = vmul.f32 %v1397, 0.044715
      %v1462 = vmul.f32 %v1398, 0.044715
      %v1463 = vmul.f32 %v1399, 0.044715
      %v1464 = vmul.f32 %v1400, 0.044715
      %v1465 = vmul.f32 %v1401, 0.044715
      %v1466 = vmul.f32 %v1402, 0.044715
      %v1467 = vmul.f32 %v1403, 0.044715
      %v1468 = vmul.f32 %v1404, 0.044715
      %v1469 = vmul.f32 %v1405, 0.044715
      %v1470 = vmul.f32 %v1406, 0.044715
      %v1471 = vmul.f32 %v1407, 0.044715
      %v1472 = vmul.f32 %v1408, 0.044715
      %v1473 = vadd.f32 %v1123, %v1409
      %v1474 = vadd.f32 %v1125, %v1410
      %v1475 = vadd.f32 %v1127, %v1411
      %v1476 = vadd.f32 %v1129, %v1412
      %v1477 = vadd.f32 %v1133, %v1413
      %v1478 = vadd.f32 %v1135, %v1414
      %v1479 = vadd.f32 %v1137, %v1415
      %v1480 = vadd.f32 %v1139, %v1416
      %v1481 = vadd.f32 %v1143, %v1417
      %v1482 = vadd.f32 %v1145, %v1418
      %v1483 = vadd.f32 %v1147, %v1419
      %v1484 = vadd.f32 %v1149, %v1420
      %v1485 = vadd.f32 %v1153, %v1421
      %v1486 = vadd.f32 %v1155, %v1422
      %v1487 = vadd.f32 %v1157, %v1423
      %v1488 = vadd.f32 %v1159, %v1424
      %v1489 = vadd.f32 %v1163, %v1425
      %v1490 = vadd.f32 %v1165, %v1426
      %v1491 = vadd.f32 %v1167, %v1427
      %v1492 = vadd.f32 %v1169, %v1428
      %v1493 = vadd.f32 %v1173, %v1429
      %v1494 = vadd.f32 %v1175, %v1430
      %v1495 = vadd.f32 %v1177, %v1431
      %v1496 = vadd.f32 %v1179, %v1432
      %v1497 = vadd.f32 %v1183, %v1433
      %v1498 = vadd.f32 %v1185, %v1434
      %v1499 = vadd.f32 %v1187, %v1435
      %v1500 = vadd.f32 %v1189, %v1436
      %v1501 = vadd.f32 %v1193, %v1437
      %v1502 = vadd.f32 %v1195, %v1438
      %v1503 = vadd.f32 %v1197, %v1439
      %v1504 = vadd.f32 %v1199, %v1440
      %v1505 = vadd.f32 %v1203, %v1441
      %v1506 = vadd.f32 %v1205, %v1442
      %v1507 = vadd.f32 %v1207, %v1443
      %v1508 = vadd.f32 %v1209, %v1444
      %v1509 = vadd.f32 %v1213, %v1445
      %v1510 = vadd.f32 %v1215, %v1446
      %v1511 = vadd.f32 %v1217, %v1447
      %v1512 = vadd.f32 %v1219, %v1448
      %v1513 = vadd.f32 %v1223, %v1449
      %v1514 = vadd.f32 %v1225, %v1450
      %v1515 = vadd.f32 %v1227, %v1451
      %v1516 = vadd.f32 %v1229, %v1452
      %v1517 = vadd.f32 %v1233, %v1453
      %v1518 = vadd.f32 %v1235, %v1454
      %v1519 = vadd.f32 %v1237, %v1455
      %v1520 = vadd.f32 %v1239, %v1456
      %v1521 = vadd.f32 %v1243, %v1457
      %v1522 = vadd.f32 %v1245, %v1458
      %v1523 = vadd.f32 %v1247, %v1459
      %v1524 = vadd.f32 %v1249, %v1460
      %v1525 = vadd.f32 %v1253, %v1461
      %v1526 = vadd.f32 %v1255, %v1462
      %v1527 = vadd.f32 %v1257, %v1463
      %v1528 = vadd.f32 %v1259, %v1464
      %v1529 = vadd.f32 %v1263, %v1465
      %v1530 = vadd.f32 %v1265, %v1466
      %v1531 = vadd.f32 %v1267, %v1467
      %v1532 = vadd.f32 %v1269, %v1468
      %v1533 = vadd.f32 %v1273, %v1469
      %v1534 = vadd.f32 %v1275, %v1470
      %v1535 = vadd.f32 %v1277, %v1471
      %v1536 = vadd.f32 %v1279, %v1472
      %v1537 = vmul.f32 %v1473, 0.7978846
      %v1538 = vmul.f32 %v1474, 0.7978846
      %v1539 = vmul.f32 %v1475, 0.7978846
      %v1540 = vmul.f32 %v1476, 0.7978846
      %v1541 = vmul.f32 %v1477, 0.7978846
      %v1542 = vmul.f32 %v1478, 0.7978846
      %v1543 = vmul.f32 %v1479, 0.7978846
      %v1544 = vmul.f32 %v1480, 0.7978846
      %v1545 = vmul.f32 %v1481, 0.7978846
      %v1546 = vmul.f32 %v1482, 0.7978846
      %v1547 = vmul.f32 %v1483, 0.7978846
      %v1548 = vmul.f32 %v1484, 0.7978846
      %v1549 = vmul.f32 %v1485, 0.7978846
      %v1550 = vmul.f32 %v1486, 0.7978846
      %v1551 = vmul.f32 %v1487, 0.7978846
      %v1552 = vmul.f32 %v1488, 0.7978846
      %v1553 = vmul.f32 %v1489, 0.7978846
      %v1554 = vmul.f32 %v1490, 0.7978846
      %v1555 = vmul.f32 %v1491, 0.7978846
      %v1556 = vmul.f32 %v1492, 0.7978846
      %v1557 = vmul.f32 %v1493, 0.7978846
      %v1558 = vmul.f32 %v1494, 0.7978846
      %v1559 = vmul.f32 %v1495, 0.7978846
      %v1560 = vmul.f32 %v1496, 0.7978846
      %v1561 = vmul.f32 %v1497, 0.7978846
      %v1562 = vmul.f32 %v1498, 0.7978846
      %v1563 = vmul.f32 %v1499, 0.7978846
      %v1564 = vmul.f32 %v1500, 0.7978846
      %v1565 = vmul.f32 %v1501, 0.7978846
      %v1566 = vmul.f32 %v1502, 0.7978846
      %v1567 = vmul.f32 %v1503, 0.7978846
      %v1568 = vmul.f32 %v1504, 0.7978846
      %v1569 = vmul.f32 %v1505, 0.7978846
      %v1570 = vmul.f32 %v1506, 0.7978846
      %v1571 = vmul.f32 %v1507, 0.7978846
      %v1572 = vmul.f32 %v1508, 0.7978846
      %v1573 = vmul.f32 %v1509, 0.7978846
      %v1574 = vmul.f32 %v1510, 0.7978846
      %v1575 = vmul.f32 %v1511, 0.7978846
      %v1576 = vmul.f32 %v1512, 0.7978846
      %v1577 = vmul.f32 %v1513, 0.7978846
      %v1578 = vmul.f32 %v1514, 0.7978846
      %v1579 = vmul.f32 %v1515, 0.7978846
      %v1580 = vmul.f32 %v1516, 0.7978846
      %v1581 = vmul.f32 %v1517, 0.7978846
      %v1582 = vmul.f32 %v1518, 0.7978846
      %v1583 = vmul.f32 %v1519, 0.7978846
      %v1584 = vmul.f32 %v1520, 0.7978846
      %v1585 = vmul.f32 %v1521, 0.7978846
      %v1586 = vmul.f32 %v1522, 0.7978846
      %v1587 = vmul.f32 %v1523, 0.7978846
      %v1588 = vmul.f32 %v1524, 0.7978846
      %v1589 = vmul.f32 %v1525, 0.7978846
      %v1590 = vmul.f32 %v1526, 0.7978846
      %v1591 = vmul.f32 %v1527, 0.7978846
      %v1592 = vmul.f32 %v1528, 0.7978846
      %v1593 = vmul.f32 %v1529, 0.7978846
      %v1594 = vmul.f32 %v1530, 0.7978846
      %v1595 = vmul.f32 %v1531, 0.7978846
      %v1596 = vmul.f32 %v1532, 0.7978846
      %v1597 = vmul.f32 %v1533, 0.7978846
      %v1598 = vmul.f32 %v1534, 0.7978846
      %v1599 = vmul.f32 %v1535, 0.7978846
      %v1600 = vmul.f32 %v1536, 0.7978846
      %v1601 = vtanh.pop %v1537
      %v1602 = vtanh.pop %v1538
      %v1603 = vtanh.pop %v1539
      %v1604 = vtanh.pop %v1540
      %v1605 = vtanh.pop %v1541
      %v1606 = vtanh.pop %v1542
      %v1607 = vtanh.pop %v1543
      %v1608 = vtanh.pop %v1544
      %v1609 = vtanh.pop %v1545
      %v1610 = vtanh.pop %v1546
      %v1611 = vtanh.pop %v1547
      %v1612 = vtanh.pop %v1548
      %v1613 = vtanh.pop %v1549
      %v1614 = vtanh.pop %v1550
      %v1615 = vtanh.pop %v1551
      %v1616 = vtanh.pop %v1552
      %v1617 = vtanh.pop %v1553
      %v1618 = vtanh.pop %v1554
      %v1619 = vtanh.pop %v1555
      %v1620 = vtanh.pop %v1556
      %v1621 = vtanh.pop %v1557
      %v1622 = vtanh.pop %v1558
      %v1623 = vtanh.pop %v1559
      %v1624 = vtanh.pop %v1560
      %v1625 = vtanh.pop %v1561
      %v1626 = vtanh.pop %v1562
      %v1627 = vtanh.pop %v1563
      %v1628 = vtanh.pop %v1564
      %v1629 = vtanh.pop %v1565
      %v1630 = vtanh.pop %v1566
      %v1631 = vtanh.pop %v1567
      %v1632 = vtanh.pop %v1568
      %v1633 = vtanh.pop %v1569
      %v1634 = vtanh.pop %v1570
      %v1635 = vtanh.pop %v1571
      %v1636 = vtanh.pop %v1572
      %v1637 = vtanh.pop %v1573
      %v1638 = vtanh.pop %v1574
      %v1639 = vtanh.pop %v1575
      %v1640 = vtanh.pop %v1576
      %v1641 = vtanh.pop %v1577
      %v1642 = vtanh.pop %v1578
      %v1643 = vtanh.pop %v1579
      %v1644 = vtanh.pop %v1580
      %v1645 = vtanh.pop %v1581
      %v1646 = vtanh.pop %v1582
      %v1647 = vtanh.pop %v1583
      %v1648 = vtanh.pop %v1584
      %v1649 = vtanh.pop %v1585
      %v1650 = vtanh.pop %v1586
      %v1651 = vtanh.pop %v1587
      %v1652 = vtanh.pop %v1588
      %v1653 = vtanh.pop %v1589
      %v1654 = vtanh.pop %v1590
      %v1655 = vtanh.pop %v1591
      %v1656 = vtanh.pop %v1592
      %v1657 = vtanh.pop %v1593
      %v1658 = vtanh.pop %v1594
      %v1659 = vtanh.pop %v1595
      %v1660 = vtanh.pop %v1596
      %v1661 = vtanh.pop %v1597
      %v1662 = vtanh.pop %v1598
      %v1663 = vtanh.pop %v1599
      %v1664 = vtanh.pop %v1600
      %v1665 = vadd.f32 %v1601, 1.0
      %v1666 = vadd.f32 %v1602, 1.0
      %v1667 = vadd.f32 %v1603, 1.0
      %v1668 = vadd.f32 %v1604, 1.0
      %v1669 = vadd.f32 %v1605, 1.0
      %v1670 = vadd.f32 %v1606, 1.0
      %v1671 = vadd.f32 %v1607, 1.0
      %v1672 = vadd.f32 %v1608, 1.0
      %v1673 = vadd.f32 %v1609, 1.0
      %v1674 = vadd.f32 %v1610, 1.0
      %v1675 = vadd.f32 %v1611, 1.0
      %v1676 = vadd.f32 %v1612, 1.0
      %v1677 = vadd.f32 %v1613, 1.0
      %v1678 = vadd.f32 %v1614, 1.0
      %v1679 = vadd.f32 %v1615, 1.0
      %v1680 = vadd.f32 %v1616, 1.0
      %v1681 = vadd.f32 %v1617, 1.0
      %v1682 = vadd.f32 %v1618, 1.0
      %v1683 = vadd.f32 %v1619, 1.0
      %v1684 = vadd.f32 %v1620, 1.0
      %v1685 = vadd.f32 %v1621, 1.0
      %v1686 = vadd.f32 %v1622, 1.0
      %v1687 = vadd.f32 %v1623, 1.0
      %v1688 = vadd.f32 %v1624, 1.0
      %v1689 = vadd.f32 %v1625, 1.0
      %v1690 = vadd.f32 %v1626, 1.0
      %v1691 = vadd.f32 %v1627, 1.0
      %v1692 = vadd.f32 %v1628, 1.0
      %v1693 = vadd.f32 %v1629, 1.0
      %v1694 = vadd.f32 %v1630, 1.0
      %v1695 = vadd.f32 %v1631, 1.0
      %v1696 = vadd.f32 %v1632, 1.0
      %v1697 = vadd.f32 %v1633, 1.0
      %v1698 = vadd.f32 %v1634, 1.0
      %v1699 = vadd.f32 %v1635, 1.0
      %v1700 = vadd.f32 %v1636, 1.0
      %v1701 = vadd.f32 %v1637, 1.0
      %v1702 = vadd.f32 %v1638, 1.0
      %v1703 = vadd.f32 %v1639, 1.0
      %v1704 = vadd.f32 %v1640, 1.0
      %v1705 = vadd.f32 %v1641, 1.0
      %v1706 = vadd.f32 %v1642, 1.0
      %v1707 = vadd.f32 %v1643, 1.0
      %v1708 = vadd.f32 %v1644, 1.0
      %v1709 = vadd.f32 %v1645, 1.0
      %v1710 = vadd.f32 %v1646, 1.0
      %v1711 = vadd.f32 %v1647, 1.0
      %v1712 = vadd.f32 %v1648, 1.0
      %v1713 = vadd.f32 %v1649, 1.0
      %v1714 = vadd.f32 %v1650, 1.0
      %v1715 = vadd.f32 %v1651, 1.0
      %v1716 = vadd.f32 %v1652, 1.0
      %v1717 = vadd.f32 %v1653, 1.0
      %v1718 = vadd.f32 %v1654, 1.0
      %v1719 = vadd.f32 %v1655, 1.0
      %v1720 = vadd.f32 %v1656, 1.0
      %v1721 = vadd.f32 %v1657, 1.0
      %v1722 = vadd.f32 %v1658, 1.0
      %v1723 = vadd.f32 %v1659, 1.0
      %v1724 = vadd.f32 %v1660, 1.0
      %v1725 = vadd.f32 %v1661, 1.0
      %v1726 = vadd.f32 %v1662, 1.0
      %v1727 = vadd.f32 %v1663, 1.0
      %v1728 = vadd.f32 %v1664, 1.0
      %v1729 = vmul.f32 %v1665, 0.5
      %v1730 = vmul.f32 %v1666, 0.5
      %v1731 = vmul.f32 %v1667, 0.5
      %v1732 = vmul.f32 %v1668, 0.5
      %v1733 = vmul.f32 %v1669, 0.5
      %v1734 = vmul.f32 %v1670, 0.5
      %v1735 = vmul.f32 %v1671, 0.5
      %v1736 = vmul.f32 %v1672, 0.5
      %v1737 = vmul.f32 %v1673, 0.5
      %v1738 = vmul.f32 %v1674, 0.5
      %v1739 = vmul.f32 %v1675, 0.5
      %v1740 = vmul.f32 %v1676, 0.5
      %v1741 = vmul.f32 %v1677, 0.5
      %v1742 = vmul.f32 %v1678, 0.5
      %v1743 = vmul.f32 %v1679, 0.5
      %v1744 = vmul.f32 %v1680, 0.5
      %v1745 = vmul.f32 %v1681, 0.5
      %v1746 = vmul.f32 %v1682, 0.5
      %v1747 = vmul.f32 %v1683, 0.5
      %v1748 = vmul.f32 %v1684, 0.5
      %v1749 = vmul.f32 %v1685, 0.5
      %v1750 = vmul.f32 %v1686, 0.5
      %v1751 = vmul.f32 %v1687, 0.5
      %v1752 = vmul.f32 %v1688, 0.5
      %v1753 = vmul.f32 %v1689, 0.5
      %v1754 = vmul.f32 %v1690, 0.5
      %v1755 = vmul.f32 %v1691, 0.5
      %v1756 = vmul.f32 %v1692, 0.5
      %v1757 = vmul.f32 %v1693, 0.5
      %v1758 = vmul.f32 %v1694, 0.5
      %v1759 = vmul.f32 %v1695, 0.5
      %v1760 = vmul.f32 %v1696, 0.5
      %v1761 = vmul.f32 %v1697, 0.5
      %v1762 = vmul.f32 %v1698, 0.5
      %v1763 = vmul.f32 %v1699, 0.5
      %v1764 = vmul.f32 %v1700, 0.5
      %v1765 = vmul.f32 %v1701, 0.5
      %v1766 = vmul.f32 %v1702, 0.5
      %v1767 = vmul.f32 %v1703, 0.5
      %v1768 = vmul.f32 %v1704, 0.5
      %v1769 = vmul.f32 %v1705, 0.5
      %v1770 = vmul.f32 %v1706, 0.5
      %v1771 = vmul.f32 %v1707, 0.5
      %v1772 = vmul.f32 %v1708, 0.5
      %v1773 = vmul.f32 %v1709, 0.5
      %v1774 = vmul.f32 %v1710, 0.5
      %v1775 = vmul.f32 %v1711, 0.5
      %v1776 = vmul.f32 %v1712, 0.5
      %v1777 = vmul.f32 %v1713, 0.5
      %v1778 = vmul.f32 %v1714, 0.5
      %v1779 = vmul.f32 %v1715, 0.5
      %v1780 = vmul.f32 %v1716, 0.5
      %v1781 = vmul.f32 %v1717, 0.5
      %v1782 = vmul.f32 %v1718, 0.5
      %v1783 = vmul.f32 %v1719, 0.5
      %v1784 = vmul.f32 %v1720, 0.5
      %v1785 = vmul.f32 %v1721, 0.5
      %v1786 = vmul.f32 %v1722, 0.5
      %v1787 = vmul.f32 %v1723, 0.5
      %v1788 = vmul.f32 %v1724, 0.5
      %v1789 = vmul.f32 %v1725, 0.5
      %v1790 = vmul.f32 %v1726, 0.5
      %v1791 = vmul.f32 %v1727, 0.5
      %v1792 = vmul.f32 %v1728, 0.5
      %v1793 = vmul.f32 %v1123, %v1729
      %v1794 = vmul.f32 %v1125, %v1730
      %v1795 = vmul.f32 %v1127, %v1731
      %v1796 = vmul.f32 %v1129, %v1732
      %v1797 = vmul.f32 %v1133, %v1733
      %v1798 = vmul.f32 %v1135, %v1734
      %v1799 = vmul.f32 %v1137, %v1735
      %v1800 = vmul.f32 %v1139, %v1736
      %v1801 = vmul.f32 %v1143, %v1737
      %v1802 = vmul.f32 %v1145, %v1738
      %v1803 = vmul.f32 %v1147, %v1739
      %v1804 = vmul.f32 %v1149, %v1740
      %v1805 = vmul.f32 %v1153, %v1741
      %v1806 = vmul.f32 %v1155, %v1742
      %v1807 = vmul.f32 %v1157, %v1743
      %v1808 = vmul.f32 %v1159, %v1744
      %v1809 = vmul.f32 %v1163, %v1745
      %v1810 = vmul.f32 %v1165, %v1746
      %v1811 = vmul.f32 %v1167, %v1747
      %v1812 = vmul.f32 %v1169, %v1748
      %v1813 = vmul.f32 %v1173, %v1749
      %v1814 = vmul.f32 %v1175, %v1750
      %v1815 = vmul.f32 %v1177, %v1751
      %v1816 = vmul.f32 %v1179, %v1752
      %v1817 = vmul.f32 %v1183, %v1753
      %v1818 = vmul.f32 %v1185, %v1754
      %v1819 = vmul.f32 %v1187, %v1755
      %v1820 = vmul.f32 %v1189, %v1756
      %v1821 = vmul.f32 %v1193, %v1757
      %v1822 = vmul.f32 %v1195, %v1758
      %v1823 = vmul.f32 %v1197, %v1759
      %v1824 = vmul.f32 %v1199, %v1760
      %v1825 = vmul.f32 %v1203, %v1761
      %v1826 = vmul.f32 %v1205, %v1762
      %v1827 = vmul.f32 %v1207, %v1763
      %v1828 = vmul.f32 %v1209, %v1764
      %v1829 = vmul.f32 %v1213, %v1765
      %v1830 = vmul.f32 %v1215, %v1766
      %v1831 = vmul.f32 %v1217, %v1767
      %v1832 = vmul.f32 %v1219, %v1768
      %v1833 = vmul.f32 %v1223, %v1769
      %v1834 = vmul.f32 %v1225, %v1770
      %v1835 = vmul.f32 %v1227, %v1771
      %v1836 = vmul.f32 %v1229, %v1772
      %v1837 = vmul.f32 %v1233, %v1773
      %v1838 = vmul.f32 %v1235, %v1774
      %v1839 = vmul.f32 %v1237, %v1775
      %v1840 = vmul.f32 %v1239, %v1776
      %v1841 = vmul.f32 %v1243, %v1777
      %v1842 = vmul.f32 %v1245, %v1778
      %v1843 = vmul.f32 %v1247, %v1779
      %v1844 = vmul.f32 %v1249, %v1780
      %v1845 = vmul.f32 %v1253, %v1781
      %v1846 = vmul.f32 %v1255, %v1782
      %v1847 = vmul.f32 %v1257, %v1783
      %v1848 = vmul.f32 %v1259, %v1784
      %v1849 = vmul.f32 %v1263, %v1785
      %v1850 = vmul.f32 %v1265, %v1786
      %v1851 = vmul.f32 %v1267, %v1787
      %v1852 = vmul.f32 %v1269, %v1788
      %v1853 = vmul.f32 %v1273, %v1789
      %v1854 = vmul.f32 %v1275, %v1790
      %v1855 = vmul.f32 %v1277, %v1791
      %v1856 = vmul.f32 %v1279, %v1792
      %v1857 = vpack.c.bf16 %v1795, %v1793
      %v1858 = vpack.c.bf16 %v1796, %v1794
      %v1859 = vpack.c.bf16 %v1799, %v1797
      %v1860 = vpack.c.bf16 %v1800, %v1798
      %v1861 = vpack.c.bf16 %v1803, %v1801
      %v1862 = vpack.c.bf16 %v1804, %v1802
      %v1863 = vpack.c.bf16 %v1807, %v1805
      %v1864 = vpack.c.bf16 %v1808, %v1806
      %v1865 = vpack.c.bf16 %v1811, %v1809
      %v1866 = vpack.c.bf16 %v1812, %v1810
      %v1867 = vpack.c.bf16 %v1815, %v1813
      %v1868 = vpack.c.bf16 %v1816, %v1814
      %v1869 = vpack.c.bf16 %v1819, %v1817
      %v1870 = vpack.c.bf16 %v1820, %v1818
      %v1871 = vpack.c.bf16 %v1823, %v1821
      %v1872 = vpack.c.bf16 %v1824, %v1822
      %v1873 = vpack.c.bf16 %v1827, %v1825
      %v1874 = vpack.c.bf16 %v1828, %v1826
      %v1875 = vpack.c.bf16 %v1831, %v1829
      %v1876 = vpack.c.bf16 %v1832, %v1830
      %v1877 = vpack.c.bf16 %v1835, %v1833
      %v1878 = vpack.c.bf16 %v1836, %v1834
      %v1879 = vpack.c.bf16 %v1839, %v1837
      %v1880 = vpack.c.bf16 %v1840, %v1838
      %v1881 = vpack.c.bf16 %v1843, %v1841
      %v1882 = vpack.c.bf16 %v1844, %v1842
      %v1883 = vpack.c.bf16 %v1847, %v1845
      %v1884 = vpack.c.bf16 %v1848, %v1846
      %v1885 = vpack.c.bf16 %v1851, %v1849
      %v1886 = vpack.c.bf16 %v1852, %v1850
      %v1887 = vpack.c.bf16 %v1855, %v1853
      %v1888 = vpack.c.bf16 %v1856, %v1854
      %v1889 = vld [vmem:[%s6] sm:$0xf]
      %v1890 = vld [vmem:[%s6 + $0x4] sm:$0xf]
      %v1891 = vld [vmem:[%s6 + $0x8] sm:$0xf]
      %v1892 = vld [vmem:[%s6 + $0xc] sm:$0xf]
      %v1893 = vld [vmem:[%s6 + $0x10] sm:$0xf]
      %v1894 = vld [vmem:[%s6 + $0x14] sm:$0xf]
      %v1895 = vld [vmem:[%s6 + $0x18] sm:$0xf]
      %v1896 = vld [vmem:[%s6 + $0x1c] sm:$0xf]
      %v1897 = vld [vmem:[%s6 + $0x20] sm:$0xf]
      %v1898 = vld [vmem:[%s6 + $0x24] sm:$0xf]
      %v1899 = vld [vmem:[%s6 + $0x28] sm:$0xf]
      %v1900 = vld [vmem:[%s6 + $0x2c] sm:$0xf]
      %v1901 = vld [vmem:[%s6 + $0x30] sm:$0xf]
      %v1902 = vld [vmem:[%s6 + $0x34] sm:$0xf]
      %v1903 = vld [vmem:[%s6 + $0x38] sm:$0xf]
      %v1904 = vld [vmem:[%s6 + $0x3c] sm:$0xf]
      %v1905 = vld [vmem:[%s6 + $0x40] sm:$0xf]
      %v1906 = vld [vmem:[%s6 + $0x44] sm:$0xf]
      %v1907 = vld [vmem:[%s6 + $0x48] sm:$0xf]
      %v1908 = vld [vmem:[%s6 + $0x4c] sm:$0xf]
      %v1909 = vld [vmem:[%s6 + $0x50] sm:$0xf]
      %v1910 = vld [vmem:[%s6 + $0x54] sm:$0xf]
      %v1911 = vld [vmem:[%s6 + $0x58] sm:$0xf]
      %v1912 = vld [vmem:[%s6 + $0x5c] sm:$0xf]
      %v1913 = vld [vmem:[%s6 + $0x60] sm:$0xf]
      %v1914 = vld [vmem:[%s6 + $0x64] sm:$0xf]
      %v1915 = vld [vmem:[%s6 + $0x68] sm:$0xf]
      %v1916 = vld [vmem:[%s6 + $0x6c] sm:$0xf]
      %v1917 = vld [vmem:[%s6 + $0x70] sm:$0xf]
      %v1918 = vld [vmem:[%s6 + $0x74] sm:$0xf]
      %v1919 = vld [vmem:[%s6 + $0x78] sm:$0xf]
      %v1920 = vld [vmem:[%s6 + $0x7c] sm:$0xf]
      %v1921 = vld [vmem:[%s7] sm:$0x1]
      %v1923 = vlaneseq
      %v1924 = vshrl.u32 %v1923, 7
      %v1925 = vsub.s32 0, %v1924
      %v1926 = vrot.slane %v1921, %v1925
      %v1960 = vunpack.c.l.b16 %v1889
      %v1961 = vunpack.c.l.b16 %v1890
      %v1962 = vunpack.c.l.b16 %v1891
      %v1963 = vunpack.c.l.b16 %v1892
      %v1964 = vunpack.c.l.b16 %v1893
      %v1965 = vunpack.c.l.b16 %v1894
      %v1966 = vunpack.c.l.b16 %v1895
      %v1967 = vunpack.c.l.b16 %v1896
      %v1968 = vunpack.c.l.b16 %v1897
      %v1969 = vunpack.c.l.b16 %v1898
      %v1970 = vunpack.c.l.b16 %v1899
      %v1971 = vunpack.c.l.b16 %v1900
      %v1972 = vunpack.c.l.b16 %v1901
      %v1973 = vunpack.c.l.b16 %v1902
      %v1974 = vunpack.c.l.b16 %v1903
      %v1975 = vunpack.c.l.b16 %v1904
      %v1976 = vunpack.c.l.b16 %v1905
      %v1977 = vunpack.c.l.b16 %v1906
      %v1978 = vunpack.c.l.b16 %v1907
      %v1979 = vunpack.c.l.b16 %v1908
      %v1980 = vunpack.c.l.b16 %v1909
      %v1981 = vunpack.c.l.b16 %v1910
      %v1982 = vunpack.c.l.b16 %v1911
      %v1983 = vunpack.c.l.b16 %v1912
      %v1984 = vunpack.c.l.b16 %v1913
      %v1985 = vunpack.c.l.b16 %v1914
      %v1986 = vunpack.c.l.b16 %v1915
      %v1987 = vunpack.c.l.b16 %v1916
      %v1988 = vunpack.c.l.b16 %v1917
      %v1989 = vunpack.c.l.b16 %v1918
      %v1990 = vunpack.c.l.b16 %v1919
      %v1991 = vunpack.c.l.b16 %v1920
      %v1992 = vpack.c.b16 %v1961, %v1960
      %v1993 = vpack.c.b16 %v1963, %v1962
      %v1994 = vpack.c.b16 %v1965, %v1964
      %v1995 = vpack.c.b16 %v1967, %v1966
      %v1996 = vpack.c.b16 %v1969, %v1968
      %v1997 = vpack.c.b16 %v1971, %v1970
      %v1998 = vpack.c.b16 %v1973, %v1972
      %v1999 = vpack.c.b16 %v1975, %v1974
      %v2000 = vpack.c.b16 %v1977, %v1976
      %v2001 = vpack.c.b16 %v1979, %v1978
      %v2002 = vpack.c.b16 %v1981, %v1980
      %v2003 = vpack.c.b16 %v1983, %v1982
      %v2004 = vpack.c.b16 %v1985, %v1984
      %v2005 = vpack.c.b16 %v1987, %v1986
      %v2006 = vpack.c.b16 %v1989, %v1988
      %v2007 = vpack.c.b16 %v1991, %v1990
      %2024 = vmatprep.subr.bf16.mxu0 0
      %2025 = vmatpush1.bf16.msra.mxu0 %v1992
      %2026 = vmatprep.subr.bf16.mxu0 0
      %2027 = vmatpush1.bf16.msra.mxu0 %v1993
      %2028 = vmatprep.subr.bf16.mxu0 0
      %2029 = vmatpush1.bf16.msra.mxu0 %v1994
      %2030 = vmatprep.subr.bf16.mxu0 0
      %2031 = vmatpush1.bf16.msra.mxu0 %v1995
      %2032 = vmatprep.subr.bf16.mxu0 0
      %2033 = vmatpush1.bf16.msra.mxu0 %v1996
      %2034 = vmatprep.subr.bf16.mxu0 0
      %2035 = vmatpush1.bf16.msra.mxu0 %v1997
      %2036 = vmatprep.subr.bf16.mxu0 0
      %2037 = vmatpush1.bf16.msra.mxu0 %v1998
      %2038 = vmatprep.subr.bf16.mxu0 0
      %2039 = vmatpush1.bf16.msra.mxu0 %v1999
      %2040 = vmatprep.subr.bf16.mxu0 0
      %2041 = vmatpush1.bf16.msra.mxu0 %v2000
      %2042 = vmatprep.subr.bf16.mxu0 0
      %2043 = vmatpush1.bf16.msra.mxu0 %v2001
      %2044 = vmatprep.subr.bf16.mxu0 0
      %2045 = vmatpush1.bf16.msra.mxu0 %v2002
      %2046 = vmatprep.subr.bf16.mxu0 0
      %2047 = vmatpush1.bf16.msra.mxu0 %v2003
      %2048 = vmatprep.subr.bf16.mxu0 0
      %2049 = vmatpush1.bf16.msra.mxu0 %v2004
      %2050 = vmatprep.subr.bf16.mxu0 0
      %2051 = vmatpush1.bf16.msra.mxu0 %v2005
      %2052 = vmatprep.subr.bf16.mxu0 0
      %2053 = vmatpush1.bf16.msra.mxu0 %v2006
      %2054 = vmatprep.subr.bf16.mxu0 0
      %2055 = vmatpush1.bf16.msra.mxu0 %v2007
      %2056 = vmatprep.mubr.bf16.mxu0 %v1858
      %2057 = vmatmul.mubr.bf16.gmra.mrb[0].mxu0 %v1857
      %v2058 = vpop.f32.mrb[0].mxu0
      %v2059 = vadd.f32 %v1926, %v2058
      %v2060 = vpop.f32.mrb[0].mxu0
      %v2061 = vpop.f32.mrb[0].mxu0
      %v2062 = vadd.f32 %v1926, %v2061
      %v2063 = vpop.f32.mrb[0].mxu0
      %2064 = vmatprep.mubr.bf16.mxu0 %v1860
      %2065 = vmatmul.mubr.bf16.gmra.mrb[0].mxu0 %v1859
      %v2066 = vpop.f32.mrb[0].mxu0
      %v2067 = vadd.f32 %v1926, %v2066
      %v2068 = vpop.f32.mrb[0].mxu0
      %v2069 = vpop.f32.mrb[0].mxu0
      %v2070 = vadd.f32 %v1926, %v2069
      %v2071 = vpop.f32.mrb[0].mxu0
      %2072 = vmatprep.mubr.bf16.mxu0 %v1862
      %2073 = vmatmul.mubr.bf16.gmra.mrb[0].mxu0 %v1861
      %v2074 = vpop.f32.mrb[0].mxu0
      %v2075 = vadd.f32 %v1926, %v2074
      %v2076 = vpop.f32.mrb[0].mxu0
      %v2077 = vpop.f32.mrb[0].mxu0
      %v2078 = vadd.f32 %v1926, %v2077
      %v2079 = vpop.f32.mrb[0].mxu0
      %2080 = vmatprep.mubr.bf16.mxu0 %v1864
      %2081 = vmatmul.mubr.bf16.gmra.mrb[0].mxu0 %v1863
      %v2082 = vpop.f32.mrb[0].mxu0
      %v2083 = vadd.f32 %v1926, %v2082
      %v2084 = vpop.f32.mrb[0].mxu0
      %v2085 = vpop.f32.mrb[0].mxu0
      %v2086 = vadd.f32 %v1926, %v2085
      %v2087 = vpop.f32.mrb[0].mxu0
      %2088 = vmatprep.mubr.bf16.mxu0 %v1866
      %2089 = vmatmul.mubr.bf16.gmra.mrb[0].mxu0 %v1865
      %v2090 = vpop.f32.mrb[0].mxu0
      %v2091 = vadd.f32 %v1926, %v2090
      %v2092 = vpop.f32.mrb[0].mxu0
      %v2093 = vpop.f32.mrb[0].mxu0
      %v2094 = vadd.f32 %v1926, %v2093
      %v2095 = vpop.f32.mrb[0].mxu0
      %2096 = vmatprep.mubr.bf16.mxu0 %v1868
      %2097 = vmatmul.mubr.bf16.gmra.mrb[0].mxu0 %v1867
      %v2098 = vpop.f32.mrb[0].mxu0
      %v2099 = vadd.f32 %v1926, %v2098
      %v2100 = vpop.f32.mrb[0].mxu0
      %v2101 = vpop.f32.mrb[0].mxu0
      %v2102 = vadd.f32 %v1926, %v2101
      %v2103 = vpop.f32.mrb[0].mxu0
      %2104 = vmatprep.mubr.bf16.mxu0 %v1870
      %2105 = vmatmul.mubr.bf16.gmra.mrb[0].mxu0 %v1869
      %v2106 = vpop.f32.mrb[0].mxu0
      %v2107 = vadd.f32 %v1926, %v2106
      %v2108 = vpop.f32.mrb[0].mxu0
      %v2109 = vpop.f32.mrb[0].mxu0
      %v2110 = vadd.f32 %v1926, %v2109
      %v2111 = vpop.f32.mrb[0].mxu0
      %2112 = vmatprep.mubr.bf16.mxu0 %v1872
      %2113 = vmatmul.mubr.bf16.gmra.mrb[0].mxu0 %v1871
      %v2114 = vpop.f32.mrb[0].mxu0
      %v2115 = vadd.f32 %v1926, %v2114
      %v2116 = vpop.f32.mrb[0].mxu0
      %v2117 = vpop.f32.mrb[0].mxu0
      %v2118 = vadd.f32 %v1926, %v2117
      %v2119 = vpop.f32.mrb[0].mxu0
      %2120 = vmatprep.mubr.bf16.mxu0 %v1874
      %2121 = vmatmul.mubr.bf16.gmra.mrb[0].mxu0 %v1873
      %v2122 = vpop.f32.mrb[0].mxu0
      %v2123 = vadd.f32 %v1926, %v2122
      %v2124 = vpop.f32.mrb[0].mxu0
      %v2125 = vpop.f32.mrb[0].mxu0
      %v2126 = vadd.f32 %v1926, %v2125
      %v2127 = vpop.f32.mrb[0].mxu0
      %2128 = vmatprep.mubr.bf16.mxu0 %v1876
      %2129 = vmatmul.mubr.bf16.gmra.mrb[0].mxu0 %v1875
      %v2130 = vpop.f32.mrb[0].mxu0
      %v2131 = vadd.f32 %v1926, %v2130
      %v2132 = vpop.f32.mrb[0].mxu0
      %v2133 = vpop.f32.mrb[0].mxu0
      %v2134 = vadd.f32 %v1926, %v2133
      %v2135 = vpop.f32.mrb[0].mxu0
      %2136 = vmatprep.mubr.bf16.mxu0 %v1878
      %2137 = vmatmul.mubr.bf16.gmra.mrb[0].mxu0 %v1877
      %v2138 = vpop.f32.mrb[0].mxu0
      %v2139 = vadd.f32 %v1926, %v2138
      %v2140 = vpop.f32.mrb[0].mxu0
      %v2141 = vpop.f32.mrb[0].mxu0
      %v2142 = vadd.f32 %v1926, %v2141
      %v2143 = vpop.f32.mrb[0].mxu0
      %2144 = vmatprep.mubr.bf16.mxu0 %v1880
      %2145 = vmatmul.mubr.bf16.gmra.mrb[0].mxu0 %v1879
      %v2146 = vpop.f32.mrb[0].mxu0
      %v2147 = vadd.f32 %v1926, %v2146
      %v2148 = vpop.f32.mrb[0].mxu0
      %v2149 = vpop.f32.mrb[0].mxu0
      %v2150 = vadd.f32 %v1926, %v2149
      %v2151 = vpop.f32.mrb[0].mxu0
      %2152 = vmatprep.mubr.bf16.mxu0 %v1882
      %2153 = vmatmul.mubr.bf16.gmra.mrb[0].mxu0 %v1881
      %v2154 = vpop.f32.mrb[0].mxu0
      %v2155 = vadd.f32 %v1926, %v2154
      %v2156 = vpop.f32.mrb[0].mxu0
      %v2157 = vpop.f32.mrb[0].mxu0
      %v2158 = vadd.f32 %v1926, %v2157
      %v2159 = vpop.f32.mrb[0].mxu0
      %2160 = vmatprep.mubr.bf16.mxu0 %v1884
      %2161 = vmatmul.mubr.bf16.gmra.mrb[0].mxu0 %v1883
      %v2162 = vpop.f32.mrb[0].mxu0
      %v2163 = vadd.f32 %v1926, %v2162
      %v2164 = vpop.f32.mrb[0].mxu0
      %v2165 = vpop.f32.mrb[0].mxu0
      %v2166 = vadd.f32 %v1926, %v2165
      %v2167 = vpop.f32.mrb[0].mxu0
      %2168 = vmatprep.mubr.bf16.mxu0 %v1886
      %2169 = vmatmul.mubr.bf16.gmra.mrb[0].mxu0 %v1885
      %v2170 = vpop.f32.mrb[0].mxu0
      %v2171 = vadd.f32 %v1926, %v2170
      %v2172 = vpop.f32.mrb[0].mxu0
      %v2173 = vpop.f32.mrb[0].mxu0
      %v2174 = vadd.f32 %v1926, %v2173
      %v2175 = vpop.f32.mrb[0].mxu0
      %2176 = vmatprep.mubr.bf16.mxu0 %v1888
      %2177 = vmatmul.mubr.bf16.gmra.mrb[0].mxu0 %v1887
      %v2178 = vpop.f32.mrb[0].mxu0
      %v2179 = vadd.f32 %v1926, %v2178
      %v2180 = vpop.f32.mrb[0].mxu0
      %v2181 = vpop.f32.mrb[0].mxu0
      %v2182 = vadd.f32 %v1926, %v2181
      %v2183 = vpop.f32.mrb[0].mxu0
      %2184 = vdwg.mxu0
      %2185 = vst [vmem:[%s311] sm:$0xff] %v2059
      %2186 = vst [vmem:[%s311 + $0x8] sm:$0xff] %v2062
      %2187 = vst [vmem:[%s311 + $0x10] sm:$0xff] %v2067
      %2188 = vst [vmem:[%s311 + $0x18] sm:$0xff] %v2070
      %2189 = vst [vmem:[%s311 + $0x20] sm:$0xff] %v2075
      %2190 = vst [vmem:[%s311 + $0x28] sm:$0xff] %v2078
      %2191 = vst [vmem:[%s311 + $0x30] sm:$0xff] %v2083
      %2192 = vst [vmem:[%s311 + $0x38] sm:$0xff] %v2086
      %2193 = vst [vmem:[%s311 + $0x40] sm:$0xff] %v2091
      %2194 = vst [vmem:[%s311 + $0x48] sm:$0xff] %v2094
      %2195 = vst [vmem:[%s311 + $0x50] sm:$0xff] %v2099
      %2196 = vst [vmem:[%s311 + $0x58] sm:$0xff] %v2102
      %2197 = vst [vmem:[%s311 + $0x60] sm:$0xff] %v2107
      %2198 = vst [vmem:[%s311 + $0x68] sm:$0xff] %v2110
      %2199 = vst [vmem:[%s311 + $0x70] sm:$0xff] %v2115
      %2200 = vst [vmem:[%s311 + $0x78] sm:$0xff] %v2118
      %2201 = vst [vmem:[%s311 + $0x80] sm:$0xff] %v2123
      %2202 = vst [vmem:[%s311 + $0x88] sm:$0xff] %v2126
      %2203 = vst [vmem:[%s311 + $0x90] sm:$0xff] %v2131
      %2204 = vst [vmem:[%s311 + $0x98] sm:$0xff] %v2134
      %2205 = vst [vmem:[%s311 + $0xa0] sm:$0xff] %v2139
      %2206 = vst [vmem:[%s311 + $0xa8] sm:$0xff] %v2142
      %2207 = vst [vmem:[%s311 + $0xb0] sm:$0xff] %v2147
      %2208 = vst [vmem:[%s311 + $0xb8] sm:$0xff] %v2150
      %2209 = vst [vmem:[%s311 + $0xc0] sm:$0xff] %v2155
      %2210 = vst [vmem:[%s311 + $0xc8] sm:$0xff] %v2158
      %2211 = vst [vmem:[%s311 + $0xd0] sm:$0xff] %v2163
      %2212 = vst [vmem:[%s311 + $0xd8] sm:$0xff] %v2166
      %2213 = vst [vmem:[%s311 + $0xe0] sm:$0xff] %v2171
      %2214 = vst [vmem:[%s311 + $0xe8] sm:$0xff] %v2174
      %2215 = vst [vmem:[%s311 + $0xf0] sm:$0xff] %v2179
      %2216 = vst [vmem:[%s311 + $0xf8] sm:$0xff] %v2182
      %s2217 = smul.u32 32, %s25
      %p2218 = scmp.lt.s32.totalorder %s2217, 63
      %s2219 = scalar_select %p2218, %s2217, 63
      %s2220 = smul.addr %s2219, 8
      %s2221 = scalar_lea.vmem %s8, %s2220
      // Predicated region
      $region49: #{_predict_multi.1} parent=47 // pred_check
        %p2222 = pneg %p202
      $region50: #{_predict_multi.1} parent=47 // pred_check_branch
        %2224 = sbr.rel (%p2222) target = $region52
      $region51: #{_predict_multi.1} parent=47 // pred_region
        %s2225 = smul.u32 32, %s25
      $region52: #{_predict_multi.1} parent=47 // pred_fallthru
        _
    $region48: #{_predict_multi.1} parent=5 // pred_fallthru
      _
    %p2226 = scmp.le.s32.totalorder 2, %s20
    // Predicated region
    $region53: #{_predict_multi.1} parent=5 // pred_check
      %p2227 = pneg %p2226
    $region54: #{_predict_multi.1} parent=5 // pred_check_branch
      %2229 = sbr.rel (%p2227) target = $region56
    $region55: #{_predict_multi.1} parent=5 // pred_region
      %s2230 = ssub.s32 %s20, 2
      // Predicated region
      $region57: #{_predict_multi.1} parent=55 // pred_check
        %p2231 = pneg %p208
      $region58: #{_predict_multi.1} parent=55 // pred_check_branch
        %2233 = sbr.rel (%p2231) target = $region60
      $region59: #{_predict_multi.1} parent=55 // pred_region
        %s2234 = smul.u32 32, %s26
        %p2235 = scmp.lt.s32.totalorder %s2234, 63
        %s2236 = scalar_select %p2235, %s2234, 63
        %s2237 = smul.addr %s2236, 8
        %s2238 = scalar_lea.vmem %s8, %s2237
      $region60: #{_predict_multi.1} parent=55 // pred_fallthru
        _
    $region56: #{_predict_multi.1} parent=5 // pred_fallthru
      _
  $region6: #{_predict_multi.1} parent=0 // loop_footer
    %s24 = sadd.s32 1, %s20
  $region7: #{_predict_multi.1} parent=0 // loop_footer_branch
    %19 = sbr.rel target = $region3
  $region8: #{_predict_multi.1} parent=0 // loop_exit
    _

</llo_original>
